<compile_context>
chip_gen: v5e
topology: v5e:2x2
jax: 0.10.0
libtpu: 0.0.40
codegen_flags: <defaults>
</compile_context>

<pallas_src>
import functools

import jax
import jax.numpy as jnp
from jax.experimental import pallas as pl
from jax.experimental.pallas import tpu as pltpu


_VMEM_SPEC = pl.BlockSpec(memory_space=pltpu.MemorySpace.VMEM)


# ----------------------------------------------------------------------------
# Pallas kernels
# ----------------------------------------------------------------------------
def _bilstm_layer_kernel(x_ref, h0_ref, c0_ref, w_ih_ref, w_hh_ref, b_ref,
                         out_ref, hN_ref, cN_ref,
                         gx_scr, h_scr, c_scr, *, T, B, H):
    """Fused bidirectional LSTM layer (both directions, whole sequence).

    x_ref:    (T*B, F)    bf16, time-major rows (row t*B + b holds (t, b))
    h0/c0:    (2, B, H)   f32, [fwd, bwd] initial states
    w_ih_ref: (F, 8H)     bf16, [W_ih_fwd^T | W_ih_bwd^T]
    w_hh_ref: (2, H, 4H)  bf16, per-direction W_hh^T
    b_ref:    (2, 1, 4H)  f32,  per-direction b_ih + b_hh
    out_ref:  (2, T*B, H) bf16, per-direction hidden states in true time order
    hN/cN:    (2, B, H)   f32,  final states
    """
    # Hoisted input projection: ONE MXU matmul covering every timestep and
    # both directions, instead of 2*T tiny per-step matmuls.
    gx_scr[...] = jnp.dot(x_ref[...], w_ih_ref[...],
                          preferred_element_type=jnp.float32)

    h_scr[...] = h0_ref[...]
    c_scr[...] = c0_ref[...]

    # Loop-invariant loads hoisted out of the recurrence.
    w_hh_f = w_hh_ref[0]
    w_hh_b = w_hh_ref[1]
    b_f = b_ref[0]
    b_b = b_ref[1]

    def gate_math(gates, c_prev):
        # PyTorch gate order: i, f, g, o.  Elementwise math kept in f32.
        i = jax.nn.sigmoid(gates[:, 0 * H:1 * H])
        f = jax.nn.sigmoid(gates[:, 1 * H:2 * H])
        g = jnp.tanh(gates[:, 2 * H:3 * H])
        o = jax.nn.sigmoid(gates[:, 3 * H:4 * H])
        c = f * c_prev + i * g
        h = o * jnp.tanh(c)
        return h, c

    def step(t, carry):
        rev = T - 1 - t

        # Forward direction consumes time t.
        gates_f = (gx_scr[pl.ds(t * B, B), 0:4 * H]
                   + jnp.dot(h_scr[0].astype(jnp.bfloat16), w_hh_f,
                             preferred_element_type=jnp.float32)
                   + b_f)
        h_f, c_f = gate_math(gates_f, c_scr[0])
        h_scr[0] = h_f
        c_scr[0] = c_f
        out_ref[0, pl.ds(t * B, B), :] = h_f.astype(out_ref.dtype)

        # Backward direction consumes time T-1-t (reversal handled in-kernel,
        # result written back at its true time position).
        gates_b = (gx_scr[pl.ds(rev * B, B), 4 * H:8 * H]
                   + jnp.dot(h_scr[1].astype(jnp.bfloat16), w_hh_b,
                             preferred_element_type=jnp.float32)
                   + b_b)
        h_b, c_b = gate_math(gates_b, c_scr[1])
        h_scr[1] = h_b
        c_scr[1] = c_b
        out_ref[1, pl.ds(rev * B, B), :] = h_b.astype(out_ref.dtype)
        return carry

    # Short fixed trip-count: fully unroll for LLO scheduling visibility.
    jax.lax.fori_loop(0, T, step, 0, unroll=True)

    hN_ref[...] = h_scr[...]
    cN_ref[...] = c_scr[...]


def _decoder_kernel(hf_ref, hb_ref, w1_ref, b1_ref, w2_ref, b2_ref, out_ref):
    """decoder1 -> ReLU -> (dropout: identity) -> decoder2 -> log_softmax.

    Takes h_fwd / h_bwd directly (W1 pre-transposed and split by direction),
    so the (B, 2H) concat never materializes.
    """
    H = hf_ref.shape[1]
    hf = hf_ref[...].astype(jnp.bfloat16)
    hb = hb_ref[...].astype(jnp.bfloat16)
    # cat(hf, hb) @ W1^T  ==  hf @ W1T[:H] + hb @ W1T[H:]
    h = (jnp.dot(hf, w1_ref[0:H, :], preferred_element_type=jnp.float32)
         + jnp.dot(hb, w1_ref[H:2 * H, :], preferred_element_type=jnp.float32)
         + b1_ref[...])
    h = jnp.maximum(h, 0.0)
    logits = jnp.dot(h.astype(jnp.bfloat16), w2_ref[...],
                     preferred_element_type=jnp.float32) + b2_ref[...]
    m = jnp.max(logits, axis=1, keepdims=True)
    z = logits - m
    lse = jnp.log(jnp.sum(jnp.exp(z), axis=1, keepdims=True))
    out_ref[...] = (z - lse).astype(out_ref.dtype)


# ----------------------------------------------------------------------------
# pallas_call wrappers
# ----------------------------------------------------------------------------
def run_bilstm_layer(x2d, h0_pair, c0_pair, w_ih_cat, w_hh_stk, b_stk, *, T, B):
    H = h0_pair.shape[-1]
    kernel = functools.partial(_bilstm_layer_kernel, T=T, B=B, H=H)
    out_shape = (
        jax.ShapeDtypeStruct((2, T * B, H), jnp.bfloat16),  # per-dir hiddens
        jax.ShapeDtypeStruct((2, B, H), jnp.float32),        # h_N  [fwd, bwd]
        jax.ShapeDtypeStruct((2, B, H), jnp.float32),        # c_N  [fwd, bwd]
    )
    return pl.pallas_call(
        kernel,
        out_shape=out_shape,
        in_specs=[_VMEM_SPEC] * 6,
        out_specs=(_VMEM_SPEC, _VMEM_SPEC, _VMEM_SPEC),
        scratch_shapes=[
            pltpu.VMEM((T * B, 8 * H), jnp.float32),  # hoisted input-proj gates
            pltpu.VMEM((2, B, H), jnp.float32),       # h carry
            pltpu.VMEM((2, B, H), jnp.float32),       # c carry
        ],
    )(x2d, h0_pair, c0_pair, w_ih_cat, w_hh_stk, b_stk)


def run_decoder(h_fwd, h_bwd, w1T, b1, w2T, b2):
    B = h_fwd.shape[0]
    out_size = w2T.shape[1]
    return pl.pallas_call(
        _decoder_kernel,
        out_shape=jax.ShapeDtypeStruct((B, out_size), jnp.float32),
        in_specs=[_VMEM_SPEC] * 6,
        out_specs=_VMEM_SPEC,
    )(h_fwd, h_bwd, w1T, b1, w2T, b2)


# ----------------------------------------------------------------------------
# Parameter init (PyTorch-shaped) + one-time kernel-layout preparation
# ----------------------------------------------------------------------------
def init_params(key, vocab, embedding_dim, hidden_dim, output_size, n_layers):
    def uniform(key, shape, k):
        return jax.random.uniform(key, shape, jnp.float32, -k, k)

    params = {}
    key, k_emb = jax.random.split(key)
    params["emb"] = uniform(k_emb, (vocab, embedding_dim), 0.1)

    k_lstm = 1.0 / jnp.sqrt(hidden_dim)
    lstm = []
    for layer in range(n_layers):
        in_size = embedding_dim if layer == 0 else 2 * hidden_dim
        dirs = []
        for _d in range(2):  # forward, backward
            key, k1, k2, k3, k4 = jax.random.split(key, 5)
            w_ih = uniform(k1, (4 * hidden_dim, in_size), k_lstm)
            w_hh = uniform(k2, (4 * hidden_dim, hidden_dim), k_lstm)
            b_ih = uniform(k3, (4 * hidden_dim,), k_lstm)
            b_hh = uniform(k4, (4 * hidden_dim,), k_lstm)
            dirs.append((w_ih, w_hh, b_ih, b_hh))
        lstm.append(dirs)
    params["lstm"] = lstm

    key, k1, k2, k3, k4 = jax.random.split(key, 5)
    k_d1 = 1.0 / jnp.sqrt(2 * hidden_dim)
    k_d2 = 1.0 / jnp.sqrt(hidden_dim)
    params["dec1_w"] = uniform(k1, (hidden_dim, 2 * hidden_dim), k_d1)
    params["dec1_b"] = uniform(k2, (hidden_dim,), k_d1)
    params["dec2_w"] = uniform(k3, (output_size, hidden_dim), k_d2)
    params["dec2_b"] = uniform(k4, (output_size,), k_d2)
    return params, key


def prepare_kernel_params(params):
    """Pre-transpose / pre-concat weights once (host side) into kernel layout."""
    kp = {"emb": params["emb"]}
    lstm = []
    for dirs in params["lstm"]:
        w_ih_cat = jnp.concatenate([dirs[0][0].T, dirs[1][0].T],
                                   axis=1).astype(jnp.bfloat16)      # (F, 8H)
        w_hh_stk = jnp.stack([dirs[0][1].T, dirs[1][1].T],
                             axis=0).astype(jnp.bfloat16)            # (2, H, 4H)
        b_stk = jnp.stack([(dirs[0][2] + dirs[0][3])[None, :],
                           (dirs[1][2] + dirs[1][3])[None, :]],
                          axis=0).astype(jnp.float32)                # (2, 1, 4H)
        lstm.append((w_ih_cat, w_hh_stk, b_stk))
    kp["lstm"] = lstm
    kp["dec1_wT"] = params["dec1_w"].T.astype(jnp.bfloat16)          # (2H, H)
    kp["dec1_b"] = params["dec1_b"][None, :].astype(jnp.float32)     # (1, H)
    kp["dec2_wT"] = params["dec2_w"].T.astype(jnp.bfloat16)          # (H, out)
    kp["dec2_b"] = params["dec2_b"][None, :].astype(jnp.float32)     # (1, out)
    return kp


# ----------------------------------------------------------------------------
# Forward pass (glue in plain JAX, hot path in Pallas)
# ----------------------------------------------------------------------------
def sentiment_rnn_wbert_forward(kparams, input_ids, masks, hidden, n_layers):
    h0, c0 = hidden  # each (2 * n_layers, B, H)
    B, T = input_ids.shape

    # TODO(synk): BERT stand-in — deterministic embedding lookup * attention mask.
    embeds = jnp.take(kparams["emb"], input_ids, axis=0)       # (B, T, E)
    embeds = embeds * masks[..., None].astype(jnp.float32)

    # Time-major, flattened to (T*B, E) so the kernel's hoisted input
    # projection is one well-shaped MXU matmul; matmul inputs in bf16.
    x = jnp.transpose(embeds, (1, 0, 2)).reshape(T * B, -1).astype(jnp.bfloat16)

    h_finals, c_finals = [], []
    for layer in range(n_layers):
        w_ih_cat, w_hh_stk, b_stk = kparams["lstm"][layer]
        out2, hN, cN = run_bilstm_layer(
            x, h0[2 * layer:2 * layer + 2], c0[2 * layer:2 * layer + 2],
            w_ih_cat, w_hh_stk, b_stk, T=T, B=B)
        # Next layer input: per-time-step [h_fwd | h_bwd] feature concat.
        x = jnp.concatenate([out2[0], out2[1]], axis=-1)       # (T*B, 2H) bf16
        h_finals.append(hN)                                     # (2, B, H)
        c_finals.append(cN)

    h_n = jnp.concatenate(h_finals, axis=0)                     # (2L, B, H)
    c_n = jnp.concatenate(c_finals, axis=0)                     # PyTorch ordering

    # lstm_out = cat(hidden[0][-2], hidden[0][-1], dim=1) -> decoder head,
    # with the concat folded into the decoder kernel (W1 split by direction).
    log_probs = run_decoder(h_n[-2], h_n[-1],
                            kparams["dec1_wT"], kparams["dec1_b"],
                            kparams["dec2_wT"], kparams["dec2_b"])
    return log_probs, (h_n, c_n)


# ----------------------------------------------------------------------------
if __name__ == "__main__":
    B, T = 2, 8
    EMBEDDING_DIM, HIDDEN_DIM, OUTPUT_SIZE, N_LAYERS = 32, 32, 2, 2
    VOCAB = 50

    key = jax.random.PRNGKey(0)
    params, key = init_params(key, VOCAB, EMBEDDING_DIM, HIDDEN_DIM,
                              OUTPUT_SIZE, N_LAYERS)
    kparams = prepare_kernel_params(params)

    key, k_ids = jax.random.split(key)
    input_ids = jax.random.randint(k_ids, (B, T), 0, VOCAB, dtype=jnp.int32)
    masks = jnp.ones((B, T), jnp.float32)

    # init_hidden(batch_size): zeros of shape (n_layers * 2, B, hidden_dim)
    h0 = jnp.zeros((2 * N_LAYERS, B, HIDDEN_DIM), jnp.float32)
    c0 = jnp.zeros((2 * N_LAYERS, B, HIDDEN_DIM), jnp.float32)

    log_probs, (h_n, c_n) = sentiment_rnn_wbert_forward(
        kparams, input_ids, masks, (h0, c0), N_LAYERS)
    jax.block_until_ready(log_probs)

    assert log_probs.shape == (B, OUTPUT_SIZE)
    assert h_n.shape == (2 * N_LAYERS, B, HIDDEN_DIM)
    assert c_n.shape == (2 * N_LAYERS, B, HIDDEN_DIM)
    # log_softmax rows must exponentiate-sum to 1.
    row_sums = jnp.exp(log_probs).sum(axis=1)
    assert bool(jnp.all(jnp.abs(row_sums - 1.0) < 1e-3))
    assert bool(jnp.all(jnp.isfinite(h_n))) and bool(jnp.all(jnp.isfinite(c_n)))

    print("KERNEL_OK")
</pallas_src>

<mosaic_0001>
module attributes {stable_mosaic.version = 11 : i64} {
  func.func @_bilstm_layer_kernel(%arg0: memref<16x32xbf16, #tpu.memory_space<vmem>>, %arg1: memref<2x2x32xf32, #tpu.memory_space<vmem>>, %arg2: memref<2x2x32xf32, #tpu.memory_space<vmem>>, %arg3: memref<32x256xbf16, #tpu.memory_space<vmem>>, %arg4: memref<2x32x128xbf16, #tpu.memory_space<vmem>>, %arg5: memref<2x1x128xf32, #tpu.memory_space<vmem>>, %arg6: memref<2x16x32xbf16, #tpu.memory_space<vmem>>, %arg7: memref<2x2x32xf32, #tpu.memory_space<vmem>>, %arg8: memref<2x2x32xf32, #tpu.memory_space<vmem>>, %arg9: memref<16x256xf32, #tpu.memory_space<vmem>>, %arg10: memref<2x2x32xf32, #tpu.memory_space<vmem>>, %arg11: memref<2x2x32xf32, #tpu.memory_space<vmem>>) attributes {dimension_semantics = [], scalar_prefetch = 0 : i64, scratch_operands = 3 : i64, tpu.core_type = #tpu.core_type<tc>} {
    %c0 = arith.constant 0 : index
    %c0_0 = arith.constant 0 : index
    %0 = vector.load %arg0[%c0, %c0_0] : memref<16x32xbf16, #tpu.memory_space<vmem>>, vector<16x32xbf16>
    %c0_1 = arith.constant 0 : index
    %c0_2 = arith.constant 0 : index
    %1 = vector.load %arg3[%c0_1, %c0_2] : memref<32x256xbf16, #tpu.memory_space<vmem>>, vector<32x256xbf16>
    %cst = arith.constant dense<0.000000e+00> : vector<16x256xf32>
    %2 = tpu.matmul %0, %1, %cst {dimension_numbers = #tpu.dot_dimension_numbers<[1], [0], [0], [1], [0, 0, 1, 1], [], []>} : vector<16x32xbf16>, vector<32x256xbf16>, vector<16x256xf32> -> vector<16x256xf32>
    %c0_3 = arith.constant 0 : index
    %c0_4 = arith.constant 0 : index
    %3 = vector.load %arg9[%c0_3, %c0_4] : memref<16x256xf32, #tpu.memory_space<vmem>>, vector<16x256xf32>
    tpu.vector_store %arg9[%c0_3, %c0_4], %2 {strides = array<i32>} : memref<16x256xf32, #tpu.memory_space<vmem>>, vector<16x256xf32>,
    %c0_5 = arith.constant 0 : index
    %c0_6 = arith.constant 0 : index
    %c0_7 = arith.constant 0 : index
    %4 = vector.load %arg1[%c0_5, %c0_6, %c0_7] : memref<2x2x32xf32, #tpu.memory_space<vmem>>, vector<2x2x32xf32>
    %c0_8 = arith.constant 0 : index
    %c0_9 = arith.constant 0 : index
    %c0_10 = arith.constant 0 : index
    %5 = vector.load %arg10[%c0_8, %c0_9, %c0_10] : memref<2x2x32xf32, #tpu.memory_space<vmem>>, vector<2x2x32xf32>
    tpu.vector_store %arg10[%c0_8, %c0_9, %c0_10], %4 {strides = array<i32>} : memref<2x2x32xf32, #tpu.memory_space<vmem>>, vector<2x2x32xf32>,
    %c0_11 = arith.constant 0 : index
    %c0_12 = arith.constant 0 : index
    %c0_13 = arith.constant 0 : index
    %6 = vector.load %arg2[%c0_11, %c0_12, %c0_13] : memref<2x2x32xf32, #tpu.memory_space<vmem>>, vector<2x2x32xf32>
    %c0_14 = arith.constant 0 : index
    %c0_15 = arith.constant 0 : index
    %c0_16 = arith.constant 0 : index
    %7 = vector.load %arg11[%c0_14, %c0_15, %c0_16] : memref<2x2x32xf32, #tpu.memory_space<vmem>>, vector<2x2x32xf32>
    tpu.vector_store %arg11[%c0_14, %c0_15, %c0_16], %6 {strides = array<i32>} : memref<2x2x32xf32, #tpu.memory_space<vmem>>, vector<2x2x32xf32>,
    %c0_17 = arith.constant 0 : index
    %c0_18 = arith.constant 0 : index
    %c0_19 = arith.constant 0 : index
    %8 = vector.load %arg4[%c0_17, %c0_18, %c0_19] : memref<2x32x128xbf16, #tpu.memory_space<vmem>>, vector<1x32x128xbf16>
    %9 = vector.shape_cast %8 : vector<1x32x128xbf16> to vector<32x128xbf16>
    %c1 = arith.constant 1 : index
    %c0_20 = arith.constant 0 : index
    %c0_21 = arith.constant 0 : index
    %10 = vector.load %arg4[%c1, %c0_20, %c0_21] : memref<2x32x128xbf16, #tpu.memory_space<vmem>>, vector<1x32x128xbf16>
    %11 = vector.shape_cast %10 : vector<1x32x128xbf16> to vector<32x128xbf16>
    %c0_22 = arith.constant 0 : index
    %c0_23 = arith.constant 0 : index
    %c0_24 = arith.constant 0 : index
    %12 = vector.load %arg5[%c0_22, %c0_23, %c0_24] : memref<2x1x128xf32, #tpu.memory_space<vmem>>, vector<1x1x128xf32>
    %13 = vector.shape_cast %12 : vector<1x1x128xf32> to vector<1x128xf32>
    %c1_25 = arith.constant 1 : index
    %c0_26 = arith.constant 0 : index
    %c0_27 = arith.constant 0 : index
    %14 = vector.load %arg5[%c1_25, %c0_26, %c0_27] : memref<2x1x128xf32, #tpu.memory_space<vmem>>, vector<1x1x128xf32>
    %15 = vector.shape_cast %14 : vector<1x1x128xf32> to vector<1x128xf32>
    %c0_i32 = arith.constant 0 : i32
    %c7_i32 = arith.constant 7 : i32
    %16 = arith.subi %c7_i32, %c0_i32 : i32
    %c2_i32 = arith.constant 2 : i32
    %17 = arith.muli %c0_i32, %c2_i32 : i32
    %18 = arith.index_cast %17 : i32 to index
    %c0_28 = arith.constant 0 : index
    %19 = vector.load %arg9[%18, %c0_28] : memref<16x256xf32, #tpu.memory_space<vmem>>, vector<2x128xf32>
    %c0_29 = arith.constant 0 : index
    %c0_30 = arith.constant 0 : index
    %c0_31 = arith.constant 0 : index
    %20 = vector.load %arg10[%c0_29, %c0_30, %c0_31] : memref<2x2x32xf32, #tpu.memory_space<vmem>>, vector<1x2x32xf32>
    %21 = vector.shape_cast %20 : vector<1x2x32xf32> to vector<2x32xf32>
    %22 = arith.truncf %21 : vector<2x32xf32> to vector<2x32xbf16>
    %cst_32 = arith.constant dense<0.000000e+00> : vector<2x128xf32>
    %23 = tpu.matmul %22, %9, %cst_32 {dimension_numbers = #tpu.dot_dimension_numbers<[1], [0], [0], [1], [0, 0, 1, 1], [], []>} : vector<2x32xbf16>, vector<32x128xbf16>, vector<2x128xf32> -> vector<2x128xf32>
    %24 = arith.addf %19, %23 : vector<2x128xf32>
    %25 = vector.broadcast %13 : vector<1x128xf32> to vector<2x128xf32>
    %26 = arith.addf %24, %25 : vector<2x128xf32>
    %c0_33 = arith.constant 0 : index
    %c0_34 = arith.constant 0 : index
    %c0_35 = arith.constant 0 : index
    %27 = vector.load %arg11[%c0_33, %c0_34, %c0_35] : memref<2x2x32xf32, #tpu.memory_space<vmem>>, vector<1x2x32xf32>
    %28 = vector.shape_cast %27 : vector<1x2x32xf32> to vector<2x32xf32>
    %29 = vector.extract_strided_slice %26 {offsets = [0, 0], sizes = [2, 32], strides = [1, 1]} : vector<2x128xf32> to vector<2x32xf32>
    %30 = arith.negf %29 : vector<2x32xf32>
    %31 = math.exp %30 : vector<2x32xf32>
    %cst_36 = arith.constant 1.000000e+00 : f32
    %32 = vector.broadcast %cst_36 : f32 to vector<2x32xf32>
    %33 = arith.addf %32, %31 : vector<2x32xf32>
    %34 = arith.divf %32, %33 : vector<2x32xf32>
    %35 = vector.extract_strided_slice %26 {offsets = [0, 32], sizes = [2, 32], strides = [1, 1]} : vector<2x128xf32> to vector<2x32xf32>
    %36 = arith.negf %35 : vector<2x32xf32>
    %37 = math.exp %36 : vector<2x32xf32>
    %cst_37 = arith.constant 1.000000e+00 : f32
    %38 = vector.broadcast %cst_37 : f32 to vector<2x32xf32>
    %39 = arith.addf %38, %37 : vector<2x32xf32>
    %40 = arith.divf %38, %39 : vector<2x32xf32>
    %41 = vector.extract_strided_slice %26 {offsets = [0, 64], sizes = [2, 32], strides = [1, 1]} : vector<2x128xf32> to vector<2x32xf32>
    %42 = math.tanh %41 : vector<2x32xf32>
    %43 = vector.extract_strided_slice %26 {offsets = [0, 96], sizes = [2, 32], strides = [1, 1]} : vector<2x128xf32> to vector<2x32xf32>
    %44 = arith.negf %43 : vector<2x32xf32>
    %45 = math.exp %44 : vector<2x32xf32>
    %cst_38 = arith.constant 1.000000e+00 : f32
    %46 = vector.broadcast %cst_38 : f32 to vector<2x32xf32>
    %47 = arith.addf %46, %45 : vector<2x32xf32>
    %48 = arith.divf %46, %47 : vector<2x32xf32>
    %49 = arith.mulf %40, %28 : vector<2x32xf32>
    %50 = arith.mulf %34, %42 : vector<2x32xf32>
    %51 = arith.addf %49, %50 : vector<2x32xf32>
    %52 = math.tanh %51 : vector<2x32xf32>
    %53 = arith.mulf %48, %52 : vector<2x32xf32>
    %c0_39 = arith.constant 0 : index
    %c0_40 = arith.constant 0 : index
    %c0_41 = arith.constant 0 : index
    %54 = vector.load %arg10[%c0_39, %c0_40, %c0_41] : memref<2x2x32xf32, #tpu.memory_space<vmem>>, vector<1x2x32xf32>
    %55 = vector.shape_cast %54 : vector<1x2x32xf32> to vector<2x32xf32>
    %56 = vector.shape_cast %53 : vector<2x32xf32> to vector<1x2x32xf32>
    tpu.vector_store %arg10[%c0_39, %c0_40, %c0_41], %56 {strides = array<i32>} : memref<2x2x32xf32, #tpu.memory_space<vmem>>, vector<1x2x32xf32>,
    %c0_42 = arith.constant 0 : index
    %c0_43 = arith.constant 0 : index
    %c0_44 = arith.constant 0 : index
    %57 = vector.load %arg11[%c0_42, %c0_43, %c0_44] : memref<2x2x32xf32, #tpu.memory_space<vmem>>, vector<1x2x32xf32>
    %58 = vector.shape_cast %57 : vector<1x2x32xf32> to vector<2x32xf32>
    %59 = vector.shape_cast %51 : vector<2x32xf32> to vector<1x2x32xf32>
    tpu.vector_store %arg11[%c0_42, %c0_43, %c0_44], %59 {strides = array<i32>} : memref<2x2x32xf32, #tpu.memory_space<vmem>>, vector<1x2x32xf32>,
    %60 = arith.truncf %53 : vector<2x32xf32> to vector<2x32xbf16>
    %c2_i32_45 = arith.constant 2 : i32
    %61 = arith.muli %c0_i32, %c2_i32_45 : i32
    %c0_46 = arith.constant 0 : index
    %62 = arith.index_cast %61 : i32 to index
    %c0_47 = arith.constant 0 : index
    %63 = vector.load %arg6[%c0_46, %62, %c0_47] : memref<2x16x32xbf16, #tpu.memory_space<vmem>>, vector<1x2x32xbf16>
    %64 = vector.shape_cast %63 : vector<1x2x32xbf16> to vector<2x32xbf16>
    %65 = vector.shape_cast %60 : vector<2x32xbf16> to vector<1x2x32xbf16>
    tpu.vector_store %arg6[%c0_46, %62, %c0_47], %65 {strides = array<i32>} : memref<2x16x32xbf16, #tpu.memory_space<vmem>>, vector<1x2x32xbf16>,
    %c2_i32_48 = arith.constant 2 : i32
    %66 = arith.muli %16, %c2_i32_48 : i32
    %67 = arith.index_cast %66 : i32 to index
    %c128 = arith.constant 128 : index
    %68 = vector.load %arg9[%67, %c128] : memref<16x256xf32, #tpu.memory_space<vmem>>, vector<2x128xf32>
    %c1_49 = arith.constant 1 : index
    %c0_50 = arith.constant 0 : index
    %c0_51 = arith.constant 0 : index
    %69 = vector.load %arg10[%c1_49, %c0_50, %c0_51] : memref<2x2x32xf32, #tpu.memory_space<vmem>>, vector<1x2x32xf32>
    %70 = vector.shape_cast %69 : vector<1x2x32xf32> to vector<2x32xf32>
    %71 = arith.truncf %70 : vector<2x32xf32> to vector<2x32xbf16>
    %cst_52 = arith.constant dense<0.000000e+00> : vector<2x128xf32>
    %72 = tpu.matmul %71, %11, %cst_52 {dimension_numbers = #tpu.dot_dimension_numbers<[1], [0], [0], [1], [0, 0, 1, 1], [], []>} : vector<2x32xbf16>, vector<32x128xbf16>, vector<2x128xf32> -> vector<2x128xf32>
    %73 = arith.addf %68, %72 : vector<2x128xf32>
    %74 = vector.broadcast %15 : vector<1x128xf32> to vector<2x128xf32>
    %75 = arith.addf %73, %74 : vector<2x128xf32>
    %c1_53 = arith.constant 1 : index
    %c0_54 = arith.constant 0 : index
    %c0_55 = arith.constant 0 : index
    %76 = vector.load %arg11[%c1_53, %c0_54, %c0_55] : memref<2x2x32xf32, #tpu.memory_space<vmem>>, vector<1x2x32xf32>
    %77 = vector.shape_cast %76 : vector<1x2x32xf32> to vector<2x32xf32>
    %78 = vector.extract_strided_slice %75 {offsets = [0, 0], sizes = [2, 32], strides = [1, 1]} : vector<2x128xf32> to vector<2x32xf32>
    %79 = arith.negf %78 : vector<2x32xf32>
    %80 = math.exp %79 : vector<2x32xf32>
    %cst_56 = arith.constant 1.000000e+00 : f32
    %81 = vector.broadcast %cst_56 : f32 to vector<2x32xf32>
    %82 = arith.addf %81, %80 : vector<2x32xf32>
    %83 = arith.divf %81, %82 : vector<2x32xf32>
    %84 = vector.extract_strided_slice %75 {offsets = [0, 32], sizes = [2, 32], strides = [1, 1]} : vector<2x128xf32> to vector<2x32xf32>
    %85 = arith.negf %84 : vector<2x32xf32>
    %86 = math.exp %85 : vector<2x32xf32>
    %cst_57 = arith.constant 1.000000e+00 : f32
    %87 = vector.broadcast %cst_57 : f32 to vector<2x32xf32>
    %88 = arith.addf %87, %86 : vector<2x32xf32>
    %89 = arith.divf %87, %88 : vector<2x32xf32>
    %90 = vector.extract_strided_slice %75 {offsets = [0, 64], sizes = [2, 32], strides = [1, 1]} : vector<2x128xf32> to vector<2x32xf32>
    %91 = math.tanh %90 : vector<2x32xf32>
    %92 = vector.extract_strided_slice %75 {offsets = [0, 96], sizes = [2, 32], strides = [1, 1]} : vector<2x128xf32> to vector<2x32xf32>
    %93 = arith.negf %92 : vector<2x32xf32>
    %94 = math.exp %93 : vector<2x32xf32>
    %cst_58 = arith.constant 1.000000e+00 : f32
    %95 = vector.broadcast %cst_58 : f32 to vector<2x32xf32>
    %96 = arith.addf %95, %94 : vector<2x32xf32>
    %97 = arith.divf %95, %96 : vector<2x32xf32>
    %98 = arith.mulf %89, %77 : vector<2x32xf32>
    %99 = arith.mulf %83, %91 : vector<2x32xf32>
    %100 = arith.addf %98, %99 : vector<2x32xf32>
    %101 = math.tanh %100 : vector<2x32xf32>
    %102 = arith.mulf %97, %101 : vector<2x32xf32>
    %c1_59 = arith.constant 1 : index
    %c0_60 = arith.constant 0 : index
    %c0_61 = arith.constant 0 : index
    %103 = vector.load %arg10[%c1_59, %c0_60, %c0_61] : memref<2x2x32xf32, #tpu.memory_space<vmem>>, vector<1x2x32xf32>
    %104 = vector.shape_cast %103 : vector<1x2x32xf32> to vector<2x32xf32>
    %105 = vector.shape_cast %102 : vector<2x32xf32> to vector<1x2x32xf32>
    tpu.vector_store %arg10[%c1_59, %c0_60, %c0_61], %105 {strides = array<i32>} : memref<2x2x32xf32, #tpu.memory_space<vmem>>, vector<1x2x32xf32>,
    %c1_62 = arith.constant 1 : index
    %c0_63 = arith.constant 0 : index
    %c0_64 = arith.constant 0 : index
    %106 = vector.load %arg11[%c1_62, %c0_63, %c0_64] : memref<2x2x32xf32, #tpu.memory_space<vmem>>, vector<1x2x32xf32>
    %107 = vector.shape_cast %106 : vector<1x2x32xf32> to vector<2x32xf32>
    %108 = vector.shape_cast %100 : vector<2x32xf32> to vector<1x2x32xf32>
    tpu.vector_store %arg11[%c1_62, %c0_63, %c0_64], %108 {strides = array<i32>} : memref<2x2x32xf32, #tpu.memory_space<vmem>>, vector<1x2x32xf32>,
    %109 = arith.truncf %102 : vector<2x32xf32> to vector<2x32xbf16>
    %c2_i32_65 = arith.constant 2 : i32
    %110 = arith.muli %16, %c2_i32_65 : i32
    %c1_66 = arith.constant 1 : index
    %111 = arith.index_cast %110 : i32 to index
    %c0_67 = arith.constant 0 : index
    %112 = vector.load %arg6[%c1_66, %111, %c0_67] : memref<2x16x32xbf16, #tpu.memory_space<vmem>>, vector<1x2x32xbf16>
    %113 = vector.shape_cast %112 : vector<1x2x32xbf16> to vector<2x32xbf16>
    %114 = vector.shape_cast %109 : vector<2x32xbf16> to vector<1x2x32xbf16>
    tpu.vector_store %arg6[%c1_66, %111, %c0_67], %114 {strides = array<i32>} : memref<2x16x32xbf16, #tpu.memory_space<vmem>>, vector<1x2x32xbf16>,
    %c1_i32 = arith.constant 1 : i32
    %c7_i32_68 = arith.constant 7 : i32
    %115 = arith.subi %c7_i32_68, %c1_i32 : i32
    %c2_i32_69 = arith.constant 2 : i32
    %116 = arith.muli %c1_i32, %c2_i32_69 : i32
    %117 = arith.index_cast %116 : i32 to index
    %c0_70 = arith.constant 0 : index
    %118 = vector.load %arg9[%117, %c0_70] : memref<16x256xf32, #tpu.memory_space<vmem>>, vector<2x128xf32>
    %c0_71 = arith.constant 0 : index
    %c0_72 = arith.constant 0 : index
    %c0_73 = arith.constant 0 : index
    %119 = vector.load %arg10[%c0_71, %c0_72, %c0_73] : memref<2x2x32xf32, #tpu.memory_space<vmem>>, vector<1x2x32xf32>
    %120 = vector.shape_cast %119 : vector<1x2x32xf32> to vector<2x32xf32>
    %121 = arith.truncf %120 : vector<2x32xf32> to vector<2x32xbf16>
    %cst_74 = arith.constant dense<0.000000e+00> : vector<2x128xf32>
    %122 = tpu.matmul %121, %9, %cst_74 {dimension_numbers = #tpu.dot_dimension_numbers<[1], [0], [0], [1], [0, 0, 1, 1], [], []>} : vector<2x32xbf16>, vector<32x128xbf16>, vector<2x128xf32> -> vector<2x128xf32>
    %123 = arith.addf %118, %122 : vector<2x128xf32>
    %124 = vector.broadcast %13 : vector<1x128xf32> to vector<2x128xf32>
    %125 = arith.addf %123, %124 : vector<2x128xf32>
    %c0_75 = arith.constant 0 : index
    %c0_76 = arith.constant 0 : index
    %c0_77 = arith.constant 0 : index
    %126 = vector.load %arg11[%c0_75, %c0_76, %c0_77] : memref<2x2x32xf32, #tpu.memory_space<vmem>>, vector<1x2x32xf32>
    %127 = vector.shape_cast %126 : vector<1x2x32xf32> to vector<2x32xf32>
    %128 = vector.extract_strided_slice %125 {offsets = [0, 0], sizes = [2, 32], strides = [1, 1]} : vector<2x128xf32> to vector<2x32xf32>
    %129 = arith.negf %128 : vector<2x32xf32>
    %130 = math.exp %129 : vector<2x32xf32>
    %cst_78 = arith.constant 1.000000e+00 : f32
    %131 = vector.broadcast %cst_78 : f32 to vector<2x32xf32>
    %132 = arith.addf %131, %130 : vector<2x32xf32>
    %133 = arith.divf %131, %132 : vector<2x32xf32>
    %134 = vector.extract_strided_slice %125 {offsets = [0, 32], sizes = [2, 32], strides = [1, 1]} : vector<2x128xf32> to vector<2x32xf32>
    %135 = arith.negf %134 : vector<2x32xf32>
    %136 = math.exp %135 : vector<2x32xf32>
    %cst_79 = arith.constant 1.000000e+00 : f32
    %137 = vector.broadcast %cst_79 : f32 to vector<2x32xf32>
    %138 = arith.addf %137, %136 : vector<2x32xf32>
    %139 = arith.divf %137, %138 : vector<2x32xf32>
    %140 = vector.extract_strided_slice %125 {offsets = [0, 64], sizes = [2, 32], strides = [1, 1]} : vector<2x128xf32> to vector<2x32xf32>
    %141 = math.tanh %140 : vector<2x32xf32>
    %142 = vector.extract_strided_slice %125 {offsets = [0, 96], sizes = [2, 32], strides = [1, 1]} : vector<2x128xf32> to vector<2x32xf32>
    %143 = arith.negf %142 : vector<2x32xf32>
    %144 = math.exp %143 : vector<2x32xf32>
    %cst_80 = arith.constant 1.000000e+00 : f32
    %145 = vector.broadcast %cst_80 : f32 to vector<2x32xf32>
    %146 = arith.addf %145, %144 : vector<2x32xf32>
    %147 = arith.divf %145, %146 : vector<2x32xf32>
    %148 = arith.mulf %139, %127 : vector<2x32xf32>
    %149 = arith.mulf %133, %141 : vector<2x32xf32>
    %150 = arith.addf %148, %149 : vector<2x32xf32>
    %151 = math.tanh %150 : vector<2x32xf32>
    %152 = arith.mulf %147, %151 : vector<2x32xf32>
    %c0_81 = arith.constant 0 : index
    %c0_82 = arith.constant 0 : index
    %c0_83 = arith.constant 0 : index
    %153 = vector.load %arg10[%c0_81, %c0_82, %c0_83] : memref<2x2x32xf32, #tpu.memory_space<vmem>>, vector<1x2x32xf32>
    %154 = vector.shape_cast %153 : vector<1x2x32xf32> to vector<2x32xf32>
    %155 = vector.shape_cast %152 : vector<2x32xf32> to vector<1x2x32xf32>
    tpu.vector_store %arg10[%c0_81, %c0_82, %c0_83], %155 {strides = array<i32>} : memref<2x2x32xf32, #tpu.memory_space<vmem>>, vector<1x2x32xf32>,
    %c0_84 = arith.constant 0 : index
    %c0_85 = arith.constant 0 : index
    %c0_86 = arith.constant 0 : index
    %156 = vector.load %arg11[%c0_84, %c0_85, %c0_86] : memref<2x2x32xf32, #tpu.memory_space<vmem>>, vector<1x2x32xf32>
    %157 = vector.shape_cast %156 : vector<1x2x32xf32> to vector<2x32xf32>
    %158 = vector.shape_cast %150 : vector<2x32xf32> to vector<1x2x32xf32>
    tpu.vector_store %arg11[%c0_84, %c0_85, %c0_86], %158 {strides = array<i32>} : memref<2x2x32xf32, #tpu.memory_space<vmem>>, vector<1x2x32xf32>,
    %159 = arith.truncf %152 : vector<2x32xf32> to vector<2x32xbf16>
    %c2_i32_87 = arith.constant 2 : i32
    %160 = arith.muli %c1_i32, %c2_i32_87 : i32
    %c0_88 = arith.constant 0 : index
    %161 = arith.index_cast %160 : i32 to index
    %c0_89 = arith.constant 0 : index
    %162 = vector.load %arg6[%c0_88, %161, %c0_89] : memref<2x16x32xbf16, #tpu.memory_space<vmem>>, vector<1x2x32xbf16>
    %163 = vector.shape_cast %162 : vector<1x2x32xbf16> to vector<2x32xbf16>
    %164 = vector.shape_cast %159 : vector<2x32xbf16> to vector<1x2x32xbf16>
    tpu.vector_store %arg6[%c0_88, %161, %c0_89], %164 {strides = array<i32>} : memref<2x16x32xbf16, #tpu.memory_space<vmem>>, vector<1x2x32xbf16>,
    %c2_i32_90 = arith.constant 2 : i32
    %165 = arith.muli %115, %c2_i32_90 : i32
    %166 = arith.index_cast %165 : i32 to index
    %c128_91 = arith.constant 128 : index
    %167 = vector.load %arg9[%166, %c128_91] : memref<16x256xf32, #tpu.memory_space<vmem>>, vector<2x128xf32>
    %c1_92 = arith.constant 1 : index
    %c0_93 = arith.constant 0 : index
    %c0_94 = arith.constant 0 : index
    %168 = vector.load %arg10[%c1_92, %c0_93, %c0_94] : memref<2x2x32xf32, #tpu.memory_space<vmem>>, vector<1x2x32xf32>
    %169 = vector.shape_cast %168 : vector<1x2x32xf32> to vector<2x32xf32>
    %170 = arith.truncf %169 : vector<2x32xf32> to vector<2x32xbf16>
    %cst_95 = arith.constant dense<0.000000e+00> : vector<2x128xf32>
    %171 = tpu.matmul %170, %11, %cst_95 {dimension_numbers = #tpu.dot_dimension_numbers<[1], [0], [0], [1], [0, 0, 1, 1], [], []>} : vector<2x32xbf16>, vector<32x128xbf16>, vector<2x128xf32> -> vector<2x128xf32>
    %172 = arith.addf %167, %171 : vector<2x128xf32>
    %173 = vector.broadcast %15 : vector<1x128xf32> to vector<2x128xf32>
    %174 = arith.addf %172, %173 : vector<2x128xf32>
    %c1_96 = arith.constant 1 : index
    %c0_97 = arith.constant 0 : index
    %c0_98 = arith.constant 0 : index
    %175 = vector.load %arg11[%c1_96, %c0_97, %c0_98] : memref<2x2x32xf32, #tpu.memory_space<vmem>>, vector<1x2x32xf32>
    %176 = vector.shape_cast %175 : vector<1x2x32xf32> to vector<2x32xf32>
    %177 = vector.extract_strided_slice %174 {offsets = [0, 0], sizes = [2, 32], strides = [1, 1]} : vector<2x128xf32> to vector<2x32xf32>
    %178 = arith.negf %177 : vector<2x32xf32>
    %179 = math.exp %178 : vector<2x32xf32>
    %cst_99 = arith.constant 1.000000e+00 : f32
    %180 = vector.broadcast %cst_99 : f32 to vector<2x32xf32>
    %181 = arith.addf %180, %179 : vector<2x32xf32>
    %182 = arith.divf %180, %181 : vector<2x32xf32>
    %183 = vector.extract_strided_slice %174 {offsets = [0, 32], sizes = [2, 32], strides = [1, 1]} : vector<2x128xf32> to vector<2x32xf32>
    %184 = arith.negf %183 : vector<2x32xf32>
    %185 = math.exp %184 : vector<2x32xf32>
    %cst_100 = arith.constant 1.000000e+00 : f32
    %186 = vector.broadcast %cst_100 : f32 to vector<2x32xf32>
    %187 = arith.addf %186, %185 : vector<2x32xf32>
    %188 = arith.divf %186, %187 : vector<2x32xf32>
    %189 = vector.extract_strided_slice %174 {offsets = [0, 64], sizes = [2, 32], strides = [1, 1]} : vector<2x128xf32> to vector<2x32xf32>
    %190 = math.tanh %189 : vector<2x32xf32>
    %191 = vector.extract_strided_slice %174 {offsets = [0, 96], sizes = [2, 32], strides = [1, 1]} : vector<2x128xf32> to vector<2x32xf32>
    %192 = arith.negf %191 : vector<2x32xf32>
    %193 = math.exp %192 : vector<2x32xf32>
    %cst_101 = arith.constant 1.000000e+00 : f32
    %194 = vector.broadcast %cst_101 : f32 to vector<2x32xf32>
    %195 = arith.addf %194, %193 : vector<2x32xf32>
    %196 = arith.divf %194, %195 : vector<2x32xf32>
    %197 = arith.mulf %188, %176 : vector<2x32xf32>
    %198 = arith.mulf %182, %190 : vector<2x32xf32>
    %199 = arith.addf %197, %198 : vector<2x32xf32>
    %200 = math.tanh %199 : vector<2x32xf32>
    %201 = arith.mulf %196, %200 : vector<2x32xf32>
    %c1_102 = arith.constant 1 : index
    %c0_103 = arith.constant 0 : index
    %c0_104 = arith.constant 0 : index
    %202 = vector.load %arg10[%c1_102, %c0_103, %c0_104] : memref<2x2x32xf32, #tpu.memory_space<vmem>>, vector<1x2x32xf32>
    %203 = vector.shape_cast %202 : vector<1x2x32xf32> to vector<2x32xf32>
    %204 = vector.shape_cast %201 : vector<2x32xf32> to vector<1x2x32xf32>
    tpu.vector_store %arg10[%c1_102, %c0_103, %c0_104], %204 {strides = array<i32>} : memref<2x2x32xf32, #tpu.memory_space<vmem>>, vector<1x2x32xf32>,
    %c1_105 = arith.constant 1 : index
    %c0_106 = arith.constant 0 : index
    %c0_107 = arith.constant 0 : index
    %205 = vector.load %arg11[%c1_105, %c0_106, %c0_107] : memref<2x2x32xf32, #tpu.memory_space<vmem>>, vector<1x2x32xf32>
    %206 = vector.shape_cast %205 : vector<1x2x32xf32> to vector<2x32xf32>
    %207 = vector.shape_cast %199 : vector<2x32xf32> to vector<1x2x32xf32>
    tpu.vector_store %arg11[%c1_105, %c0_106, %c0_107], %207 {strides = array<i32>} : memref<2x2x32xf32, #tpu.memory_space<vmem>>, vector<1x2x32xf32>,
    %208 = arith.truncf %201 : vector<2x32xf32> to vector<2x32xbf16>
    %c2_i32_108 = arith.constant 2 : i32
    %209 = arith.muli %115, %c2_i32_108 : i32
    %c1_109 = arith.constant 1 : index
    %210 = arith.index_cast %209 : i32 to index
    %c0_110 = arith.constant 0 : index
    %211 = vector.load %arg6[%c1_109, %210, %c0_110] : memref<2x16x32xbf16, #tpu.memory_space<vmem>>, vector<1x2x32xbf16>
    %212 = vector.shape_cast %211 : vector<1x2x32xbf16> to vector<2x32xbf16>
    %213 = vector.shape_cast %208 : vector<2x32xbf16> to vector<1x2x32xbf16>
    tpu.vector_store %arg6[%c1_109, %210, %c0_110], %213 {strides = array<i32>} : memref<2x16x32xbf16, #tpu.memory_space<vmem>>, vector<1x2x32xbf16>,
    %c2_i32_111 = arith.constant 2 : i32
    %c7_i32_112 = arith.constant 7 : i32
    %214 = arith.subi %c7_i32_112, %c2_i32_111 : i32
    %c2_i32_113 = arith.constant 2 : i32
    %215 = arith.muli %c2_i32_111, %c2_i32_113 : i32
    %216 = arith.index_cast %215 : i32 to index
    %c0_114 = arith.constant 0 : index
    %217 = vector.load %arg9[%216, %c0_114] : memref<16x256xf32, #tpu.memory_space<vmem>>, vector<2x128xf32>
    %c0_115 = arith.constant 0 : index
    %c0_116 = arith.constant 0 : index
    %c0_117 = arith.constant 0 : index
    %218 = vector.load %arg10[%c0_115, %c0_116, %c0_117] : memref<2x2x32xf32, #tpu.memory_space<vmem>>, vector<1x2x32xf32>
    %219 = vector.shape_cast %218 : vector<1x2x32xf32> to vector<2x32xf32>
    %220 = arith.truncf %219 : vector<2x32xf32> to vector<2x32xbf16>
    %cst_118 = arith.constant dense<0.000000e+00> : vector<2x128xf32>
    %221 = tpu.matmul %220, %9, %cst_118 {dimension_numbers = #tpu.dot_dimension_numbers<[1], [0], [0], [1], [0, 0, 1, 1], [], []>} : vector<2x32xbf16>, vector<32x128xbf16>, vector<2x128xf32> -> vector<2x128xf32>
    %222 = arith.addf %217, %221 : vector<2x128xf32>
    %223 = vector.broadcast %13 : vector<1x128xf32> to vector<2x128xf32>
    %224 = arith.addf %222, %223 : vector<2x128xf32>
    %c0_119 = arith.constant 0 : index
    %c0_120 = arith.constant 0 : index
    %c0_121 = arith.constant 0 : index
    %225 = vector.load %arg11[%c0_119, %c0_120, %c0_121] : memref<2x2x32xf32, #tpu.memory_space<vmem>>, vector<1x2x32xf32>
    %226 = vector.shape_cast %225 : vector<1x2x32xf32> to vector<2x32xf32>
    %227 = vector.extract_strided_slice %224 {offsets = [0, 0], sizes = [2, 32], strides = [1, 1]} : vector<2x128xf32> to vector<2x32xf32>
    %228 = arith.negf %227 : vector<2x32xf32>
    %229 = math.exp %228 : vector<2x32xf32>
    %cst_122 = arith.constant 1.000000e+00 : f32
    %230 = vector.broadcast %cst_122 : f32 to vector<2x32xf32>
    %231 = arith.addf %230, %229 : vector<2x32xf32>
    %232 = arith.divf %230, %231 : vector<2x32xf32>
    %233 = vector.extract_strided_slice %224 {offsets = [0, 32], sizes = [2, 32], strides = [1, 1]} : vector<2x128xf32> to vector<2x32xf32>
    %234 = arith.negf %233 : vector<2x32xf32>
    %235 = math.exp %234 : vector<2x32xf32>
    %cst_123 = arith.constant 1.000000e+00 : f32
    %236 = vector.broadcast %cst_123 : f32 to vector<2x32xf32>
    %237 = arith.addf %236, %235 : vector<2x32xf32>
    %238 = arith.divf %236, %237 : vector<2x32xf32>
    %239 = vector.extract_strided_slice %224 {offsets = [0, 64], sizes = [2, 32], strides = [1, 1]} : vector<2x128xf32> to vector<2x32xf32>
    %240 = math.tanh %239 : vector<2x32xf32>
    %241 = vector.extract_strided_slice %224 {offsets = [0, 96], sizes = [2, 32], strides = [1, 1]} : vector<2x128xf32> to vector<2x32xf32>
    %242 = arith.negf %241 : vector<2x32xf32>
    %243 = math.exp %242 : vector<2x32xf32>
    %cst_124 = arith.constant 1.000000e+00 : f32
    %244 = vector.broadcast %cst_124 : f32 to vector<2x32xf32>
    %245 = arith.addf %244, %243 : vector<2x32xf32>
    %246 = arith.divf %244, %245 : vector<2x32xf32>
    %247 = arith.mulf %238, %226 : vector<2x32xf32>
    %248 = arith.mulf %232, %240 : vector<2x32xf32>
    %249 = arith.addf %247, %248 : vector<2x32xf32>
    %250 = math.tanh %249 : vector<2x32xf32>
    %251 = arith.mulf %246, %250 : vector<2x32xf32>
    %c0_125 = arith.constant 0 : index
    %c0_126 = arith.constant 0 : index
    %c0_127 = arith.constant 0 : index
    %252 = vector.load %arg10[%c0_125, %c0_126, %c0_127] : memref<2x2x32xf32, #tpu.memory_space<vmem>>, vector<1x2x32xf32>
    %253 = vector.shape_cast %252 : vector<1x2x32xf32> to vector<2x32xf32>
    %254 = vector.shape_cast %251 : vector<2x32xf32> to vector<1x2x32xf32>
    tpu.vector_store %arg10[%c0_125, %c0_126, %c0_127], %254 {strides = array<i32>} : memref<2x2x32xf32, #tpu.memory_space<vmem>>, vector<1x2x32xf32>,
    %c0_128 = arith.constant 0 : index
    %c0_129 = arith.constant 0 : index
    %c0_130 = arith.constant 0 : index
    %255 = vector.load %arg11[%c0_128, %c0_129, %c0_130] : memref<2x2x32xf32, #tpu.memory_space<vmem>>, vector<1x2x32xf32>
    %256 = vector.shape_cast %255 : vector<1x2x32xf32> to vector<2x32xf32>
    %257 = vector.shape_cast %249 : vector<2x32xf32> to vector<1x2x32xf32>
    tpu.vector_store %arg11[%c0_128, %c0_129, %c0_130], %257 {strides = array<i32>} : memref<2x2x32xf32, #tpu.memory_space<vmem>>, vector<1x2x32xf32>,
    %258 = arith.truncf %251 : vector<2x32xf32> to vector<2x32xbf16>
    %c2_i32_131 = arith.constant 2 : i32
    %259 = arith.muli %c2_i32_111, %c2_i32_131 : i32
    %c0_132 = arith.constant 0 : index
    %260 = arith.index_cast %259 : i32 to index
    %c0_133 = arith.constant 0 : index
    %261 = vector.load %arg6[%c0_132, %260, %c0_133] : memref<2x16x32xbf16, #tpu.memory_space<vmem>>, vector<1x2x32xbf16>
    %262 = vector.shape_cast %261 : vector<1x2x32xbf16> to vector<2x32xbf16>
    %263 = vector.shape_cast %258 : vector<2x32xbf16> to vector<1x2x32xbf16>
    tpu.vector_store %arg6[%c0_132, %260, %c0_133], %263 {strides = array<i32>} : memref<2x16x32xbf16, #tpu.memory_space<vmem>>, vector<1x2x32xbf16>,
    %c2_i32_134 = arith.constant 2 : i32
    %264 = arith.muli %214, %c2_i32_134 : i32
    %265 = arith.index_cast %264 : i32 to index
    %c128_135 = arith.constant 128 : index
    %266 = vector.load %arg9[%265, %c128_135] : memref<16x256xf32, #tpu.memory_space<vmem>>, vector<2x128xf32>
    %c1_136 = arith.constant 1 : index
    %c0_137 = arith.constant 0 : index
    %c0_138 = arith.constant 0 : index
    %267 = vector.load %arg10[%c1_136, %c0_137, %c0_138] : memref<2x2x32xf32, #tpu.memory_space<vmem>>, vector<1x2x32xf32>
    %268 = vector.shape_cast %267 : vector<1x2x32xf32> to vector<2x32xf32>
    %269 = arith.truncf %268 : vector<2x32xf32> to vector<2x32xbf16>
    %cst_139 = arith.constant dense<0.000000e+00> : vector<2x128xf32>
    %270 = tpu.matmul %269, %11, %cst_139 {dimension_numbers = #tpu.dot_dimension_numbers<[1], [0], [0], [1], [0, 0, 1, 1], [], []>} : vector<2x32xbf16>, vector<32x128xbf16>, vector<2x128xf32> -> vector<2x128xf32>
    %271 = arith.addf %266, %270 : vector<2x128xf32>
    %272 = vector.broadcast %15 : vector<1x128xf32> to vector<2x128xf32>
    %273 = arith.addf %271, %272 : vector<2x128xf32>
    %c1_140 = arith.constant 1 : index
    %c0_141 = arith.constant 0 : index
    %c0_142 = arith.constant 0 : index
    %274 = vector.load %arg11[%c1_140, %c0_141, %c0_142] : memref<2x2x32xf32, #tpu.memory_space<vmem>>, vector<1x2x32xf32>
    %275 = vector.shape_cast %274 : vector<1x2x32xf32> to vector<2x32xf32>
    %276 = vector.extract_strided_slice %273 {offsets = [0, 0], sizes = [2, 32], strides = [1, 1]} : vector<2x128xf32> to vector<2x32xf32>
    %277 = arith.negf %276 : vector<2x32xf32>
    %278 = math.exp %277 : vector<2x32xf32>
    %cst_143 = arith.constant 1.000000e+00 : f32
    %279 = vector.broadcast %cst_143 : f32 to vector<2x32xf32>
    %280 = arith.addf %279, %278 : vector<2x32xf32>
    %281 = arith.divf %279, %280 : vector<2x32xf32>
    %282 = vector.extract_strided_slice %273 {offsets = [0, 32], sizes = [2, 32], strides = [1, 1]} : vector<2x128xf32> to vector<2x32xf32>
    %283 = arith.negf %282 : vector<2x32xf32>
    %284 = math.exp %283 : vector<2x32xf32>
    %cst_144 = arith.constant 1.000000e+00 : f32
    %285 = vector.broadcast %cst_144 : f32 to vector<2x32xf32>
    %286 = arith.addf %285, %284 : vector<2x32xf32>
    %287 = arith.divf %285, %286 : vector<2x32xf32>
    %288 = vector.extract_strided_slice %273 {offsets = [0, 64], sizes = [2, 32], strides = [1, 1]} : vector<2x128xf32> to vector<2x32xf32>
    %289 = math.tanh %288 : vector<2x32xf32>
    %290 = vector.extract_strided_slice %273 {offsets = [0, 96], sizes = [2, 32], strides = [1, 1]} : vector<2x128xf32> to vector<2x32xf32>
    %291 = arith.negf %290 : vector<2x32xf32>
    %292 = math.exp %291 : vector<2x32xf32>
    %cst_145 = arith.constant 1.000000e+00 : f32
    %293 = vector.broadcast %cst_145 : f32 to vector<2x32xf32>
    %294 = arith.addf %293, %292 : vector<2x32xf32>
    %295 = arith.divf %293, %294 : vector<2x32xf32>
    %296 = arith.mulf %287, %275 : vector<2x32xf32>
    %297 = arith.mulf %281, %289 : vector<2x32xf32>
    %298 = arith.addf %296, %297 : vector<2x32xf32>
    %299 = math.tanh %298 : vector<2x32xf32>
    %300 = arith.mulf %295, %299 : vector<2x32xf32>
    %c1_146 = arith.constant 1 : index
    %c0_147 = arith.constant 0 : index
    %c0_148 = arith.constant 0 : index
    %301 = vector.load %arg10[%c1_146, %c0_147, %c0_148] : memref<2x2x32xf32, #tpu.memory_space<vmem>>, vector<1x2x32xf32>
    %302 = vector.shape_cast %301 : vector<1x2x32xf32> to vector<2x32xf32>
    %303 = vector.shape_cast %300 : vector<2x32xf32> to vector<1x2x32xf32>
    tpu.vector_store %arg10[%c1_146, %c0_147, %c0_148], %303 {strides = array<i32>} : memref<2x2x32xf32, #tpu.memory_space<vmem>>, vector<1x2x32xf32>,
    %c1_149 = arith.constant 1 : index
    %c0_150 = arith.constant 0 : index
    %c0_151 = arith.constant 0 : index
    %304 = vector.load %arg11[%c1_149, %c0_150, %c0_151] : memref<2x2x32xf32, #tpu.memory_space<vmem>>, vector<1x2x32xf32>
    %305 = vector.shape_cast %304 : vector<1x2x32xf32> to vector<2x32xf32>
    %306 = vector.shape_cast %298 : vector<2x32xf32> to vector<1x2x32xf32>
    tpu.vector_store %arg11[%c1_149, %c0_150, %c0_151], %306 {strides = array<i32>} : memref<2x2x32xf32, #tpu.memory_space<vmem>>, vector<1x2x32xf32>,
    %307 = arith.truncf %300 : vector<2x32xf32> to vector<2x32xbf16>
    %c2_i32_152 = arith.constant 2 : i32
    %308 = arith.muli %214, %c2_i32_152 : i32
    %c1_153 = arith.constant 1 : index
    %309 = arith.index_cast %308 : i32 to index
    %c0_154 = arith.constant 0 : index
    %310 = vector.load %arg6[%c1_153, %309, %c0_154] : memref<2x16x32xbf16, #tpu.memory_space<vmem>>, vector<1x2x32xbf16>
    %311 = vector.shape_cast %310 : vector<1x2x32xbf16> to vector<2x32xbf16>
    %312 = vector.shape_cast %307 : vector<2x32xbf16> to vector<1x2x32xbf16>
    tpu.vector_store %arg6[%c1_153, %309, %c0_154], %312 {strides = array<i32>} : memref<2x16x32xbf16, #tpu.memory_space<vmem>>, vector<1x2x32xbf16>,
    %c3_i32 = arith.constant 3 : i32
    %c7_i32_155 = arith.constant 7 : i32
    %313 = arith.subi %c7_i32_155, %c3_i32 : i32
    %c2_i32_156 = arith.constant 2 : i32
    %314 = arith.muli %c3_i32, %c2_i32_156 : i32
    %315 = arith.index_cast %314 : i32 to index
    %c0_157 = arith.constant 0 : index
    %316 = vector.load %arg9[%315, %c0_157] : memref<16x256xf32, #tpu.memory_space<vmem>>, vector<2x128xf32>
    %c0_158 = arith.constant 0 : index
    %c0_159 = arith.constant 0 : index
    %c0_160 = arith.constant 0 : index
    %317 = vector.load %arg10[%c0_158, %c0_159, %c0_160] : memref<2x2x32xf32, #tpu.memory_space<vmem>>, vector<1x2x32xf32>
    %318 = vector.shape_cast %317 : vector<1x2x32xf32> to vector<2x32xf32>
    %319 = arith.truncf %318 : vector<2x32xf32> to vector<2x32xbf16>
    %cst_161 = arith.constant dense<0.000000e+00> : vector<2x128xf32>
    %320 = tpu.matmul %319, %9, %cst_161 {dimension_numbers = #tpu.dot_dimension_numbers<[1], [0], [0], [1], [0, 0, 1, 1], [], []>} : vector<2x32xbf16>, vector<32x128xbf16>, vector<2x128xf32> -> vector<2x128xf32>
    %321 = arith.addf %316, %320 : vector<2x128xf32>
    %322 = vector.broadcast %13 : vector<1x128xf32> to vector<2x128xf32>
    %323 = arith.addf %321, %322 : vector<2x128xf32>
    %c0_162 = arith.constant 0 : index
    %c0_163 = arith.constant 0 : index
    %c0_164 = arith.constant 0 : index
    %324 = vector.load %arg11[%c0_162, %c0_163, %c0_164] : memref<2x2x32xf32, #tpu.memory_space<vmem>>, vector<1x2x32xf32>
    %325 = vector.shape_cast %324 : vector<1x2x32xf32> to vector<2x32xf32>
    %326 = vector.extract_strided_slice %323 {offsets = [0, 0], sizes = [2, 32], strides = [1, 1]} : vector<2x128xf32> to vector<2x32xf32>
    %327 = arith.negf %326 : vector<2x32xf32>
    %328 = math.exp %327 : vector<2x32xf32>
    %cst_165 = arith.constant 1.000000e+00 : f32
    %329 = vector.broadcast %cst_165 : f32 to vector<2x32xf32>
    %330 = arith.addf %329, %328 : vector<2x32xf32>
    %331 = arith.divf %329, %330 : vector<2x32xf32>
    %332 = vector.extract_strided_slice %323 {offsets = [0, 32], sizes = [2, 32], strides = [1, 1]} : vector<2x128xf32> to vector<2x32xf32>
    %333 = arith.negf %332 : vector<2x32xf32>
    %334 = math.exp %333 : vector<2x32xf32>
    %cst_166 = arith.constant 1.000000e+00 : f32
    %335 = vector.broadcast %cst_166 : f32 to vector<2x32xf32>
    %336 = arith.addf %335, %334 : vector<2x32xf32>
    %337 = arith.divf %335, %336 : vector<2x32xf32>
    %338 = vector.extract_strided_slice %323 {offsets = [0, 64], sizes = [2, 32], strides = [1, 1]} : vector<2x128xf32> to vector<2x32xf32>
    %339 = math.tanh %338 : vector<2x32xf32>
    %340 = vector.extract_strided_slice %323 {offsets = [0, 96], sizes = [2, 32], strides = [1, 1]} : vector<2x128xf32> to vector<2x32xf32>
    %341 = arith.negf %340 : vector<2x32xf32>
    %342 = math.exp %341 : vector<2x32xf32>
    %cst_167 = arith.constant 1.000000e+00 : f32
    %343 = vector.broadcast %cst_167 : f32 to vector<2x32xf32>
    %344 = arith.addf %343, %342 : vector<2x32xf32>
    %345 = arith.divf %343, %344 : vector<2x32xf32>
    %346 = arith.mulf %337, %325 : vector<2x32xf32>
    %347 = arith.mulf %331, %339 : vector<2x32xf32>
    %348 = arith.addf %346, %347 : vector<2x32xf32>
    %349 = math.tanh %348 : vector<2x32xf32>
    %350 = arith.mulf %345, %349 : vector<2x32xf32>
    %c0_168 = arith.constant 0 : index
    %c0_169 = arith.constant 0 : index
    %c0_170 = arith.constant 0 : index
    %351 = vector.load %arg10[%c0_168, %c0_169, %c0_170] : memref<2x2x32xf32, #tpu.memory_space<vmem>>, vector<1x2x32xf32>
    %352 = vector.shape_cast %351 : vector<1x2x32xf32> to vector<2x32xf32>
    %353 = vector.shape_cast %350 : vector<2x32xf32> to vector<1x2x32xf32>
    tpu.vector_store %arg10[%c0_168, %c0_169, %c0_170], %353 {strides = array<i32>} : memref<2x2x32xf32, #tpu.memory_space<vmem>>, vector<1x2x32xf32>,
    %c0_171 = arith.constant 0 : index
    %c0_172 = arith.constant 0 : index
    %c0_173 = arith.constant 0 : index
    %354 = vector.load %arg11[%c0_171, %c0_172, %c0_173] : memref<2x2x32xf32, #tpu.memory_space<vmem>>, vector<1x2x32xf32>
    %355 = vector.shape_cast %354 : vector<1x2x32xf32> to vector<2x32xf32>
    %356 = vector.shape_cast %348 : vector<2x32xf32> to vector<1x2x32xf32>
    tpu.vector_store %arg11[%c0_171, %c0_172, %c0_173], %356 {strides = array<i32>} : memref<2x2x32xf32, #tpu.memory_space<vmem>>, vector<1x2x32xf32>,
    %357 = arith.truncf %350 : vector<2x32xf32> to vector<2x32xbf16>
    %c2_i32_174 = arith.constant 2 : i32
    %358 = arith.muli %c3_i32, %c2_i32_174 : i32
    %c0_175 = arith.constant 0 : index
    %359 = arith.index_cast %358 : i32 to index
    %c0_176 = arith.constant 0 : index
    %360 = vector.load %arg6[%c0_175, %359, %c0_176] : memref<2x16x32xbf16, #tpu.memory_space<vmem>>, vector<1x2x32xbf16>
    %361 = vector.shape_cast %360 : vector<1x2x32xbf16> to vector<2x32xbf16>
    %362 = vector.shape_cast %357 : vector<2x32xbf16> to vector<1x2x32xbf16>
    tpu.vector_store %arg6[%c0_175, %359, %c0_176], %362 {strides = array<i32>} : memref<2x16x32xbf16, #tpu.memory_space<vmem>>, vector<1x2x32xbf16>,
    %c2_i32_177 = arith.constant 2 : i32
    %363 = arith.muli %313, %c2_i32_177 : i32
    %364 = arith.index_cast %363 : i32 to index
    %c128_178 = arith.constant 128 : index
    %365 = vector.load %arg9[%364, %c128_178] : memref<16x256xf32, #tpu.memory_space<vmem>>, vector<2x128xf32>
    %c1_179 = arith.constant 1 : index
    %c0_180 = arith.constant 0 : index
    %c0_181 = arith.constant 0 : index
    %366 = vector.load %arg10[%c1_179, %c0_180, %c0_181] : memref<2x2x32xf32, #tpu.memory_space<vmem>>, vector<1x2x32xf32>
    %367 = vector.shape_cast %366 : vector<1x2x32xf32> to vector<2x32xf32>
    %368 = arith.truncf %367 : vector<2x32xf32> to vector<2x32xbf16>
    %cst_182 = arith.constant dense<0.000000e+00> : vector<2x128xf32>
    %369 = tpu.matmul %368, %11, %cst_182 {dimension_numbers = #tpu.dot_dimension_numbers<[1], [0], [0], [1], [0, 0, 1, 1], [], []>} : vector<2x32xbf16>, vector<32x128xbf16>, vector<2x128xf32> -> vector<2x128xf32>
    %370 = arith.addf %365, %369 : vector<2x128xf32>
    %371 = vector.broadcast %15 : vector<1x128xf32> to vector<2x128xf32>
    %372 = arith.addf %370, %371 : vector<2x128xf32>
    %c1_183 = arith.constant 1 : index
    %c0_184 = arith.constant 0 : index
    %c0_185 = arith.constant 0 : index
    %373 = vector.load %arg11[%c1_183, %c0_184, %c0_185] : memref<2x2x32xf32, #tpu.memory_space<vmem>>, vector<1x2x32xf32>
    %374 = vector.shape_cast %373 : vector<1x2x32xf32> to vector<2x32xf32>
    %375 = vector.extract_strided_slice %372 {offsets = [0, 0], sizes = [2, 32], strides = [1, 1]} : vector<2x128xf32> to vector<2x32xf32>
    %376 = arith.negf %375 : vector<2x32xf32>
    %377 = math.exp %376 : vector<2x32xf32>
    %cst_186 = arith.constant 1.000000e+00 : f32
    %378 = vector.broadcast %cst_186 : f32 to vector<2x32xf32>
    %379 = arith.addf %378, %377 : vector<2x32xf32>
    %380 = arith.divf %378, %379 : vector<2x32xf32>
    %381 = vector.extract_strided_slice %372 {offsets = [0, 32], sizes = [2, 32], strides = [1, 1]} : vector<2x128xf32> to vector<2x32xf32>
    %382 = arith.negf %381 : vector<2x32xf32>
    %383 = math.exp %382 : vector<2x32xf32>
    %cst_187 = arith.constant 1.000000e+00 : f32
    %384 = vector.broadcast %cst_187 : f32 to vector<2x32xf32>
    %385 = arith.addf %384, %383 : vector<2x32xf32>
    %386 = arith.divf %384, %385 : vector<2x32xf32>
    %387 = vector.extract_strided_slice %372 {offsets = [0, 64], sizes = [2, 32], strides = [1, 1]} : vector<2x128xf32> to vector<2x32xf32>
    %388 = math.tanh %387 : vector<2x32xf32>
    %389 = vector.extract_strided_slice %372 {offsets = [0, 96], sizes = [2, 32], strides = [1, 1]} : vector<2x128xf32> to vector<2x32xf32>
    %390 = arith.negf %389 : vector<2x32xf32>
    %391 = math.exp %390 : vector<2x32xf32>
    %cst_188 = arith.constant 1.000000e+00 : f32
    %392 = vector.broadcast %cst_188 : f32 to vector<2x32xf32>
    %393 = arith.addf %392, %391 : vector<2x32xf32>
    %394 = arith.divf %392, %393 : vector<2x32xf32>
    %395 = arith.mulf %386, %374 : vector<2x32xf32>
    %396 = arith.mulf %380, %388 : vector<2x32xf32>
    %397 = arith.addf %395, %396 : vector<2x32xf32>
    %398 = math.tanh %397 : vector<2x32xf32>
    %399 = arith.mulf %394, %398 : vector<2x32xf32>
    %c1_189 = arith.constant 1 : index
    %c0_190 = arith.constant 0 : index
    %c0_191 = arith.constant 0 : index
    %400 = vector.load %arg10[%c1_189, %c0_190, %c0_191] : memref<2x2x32xf32, #tpu.memory_space<vmem>>, vector<1x2x32xf32>
    %401 = vector.shape_cast %400 : vector<1x2x32xf32> to vector<2x32xf32>
    %402 = vector.shape_cast %399 : vector<2x32xf32> to vector<1x2x32xf32>
    tpu.vector_store %arg10[%c1_189, %c0_190, %c0_191], %402 {strides = array<i32>} : memref<2x2x32xf32, #tpu.memory_space<vmem>>, vector<1x2x32xf32>,
    %c1_192 = arith.constant 1 : index
    %c0_193 = arith.constant 0 : index
    %c0_194 = arith.constant 0 : index
    %403 = vector.load %arg11[%c1_192, %c0_193, %c0_194] : memref<2x2x32xf32, #tpu.memory_space<vmem>>, vector<1x2x32xf32>
    %404 = vector.shape_cast %403 : vector<1x2x32xf32> to vector<2x32xf32>
    %405 = vector.shape_cast %397 : vector<2x32xf32> to vector<1x2x32xf32>
    tpu.vector_store %arg11[%c1_192, %c0_193, %c0_194], %405 {strides = array<i32>} : memref<2x2x32xf32, #tpu.memory_space<vmem>>, vector<1x2x32xf32>,
    %406 = arith.truncf %399 : vector<2x32xf32> to vector<2x32xbf16>
    %c2_i32_195 = arith.constant 2 : i32
    %407 = arith.muli %313, %c2_i32_195 : i32
    %c1_196 = arith.constant 1 : index
    %408 = arith.index_cast %407 : i32 to index
    %c0_197 = arith.constant 0 : index
    %409 = vector.load %arg6[%c1_196, %408, %c0_197] : memref<2x16x32xbf16, #tpu.memory_space<vmem>>, vector<1x2x32xbf16>
    %410 = vector.shape_cast %409 : vector<1x2x32xbf16> to vector<2x32xbf16>
    %411 = vector.shape_cast %406 : vector<2x32xbf16> to vector<1x2x32xbf16>
    tpu.vector_store %arg6[%c1_196, %408, %c0_197], %411 {strides = array<i32>} : memref<2x16x32xbf16, #tpu.memory_space<vmem>>, vector<1x2x32xbf16>,
    %c4_i32 = arith.constant 4 : i32
    %c7_i32_198 = arith.constant 7 : i32
    %412 = arith.subi %c7_i32_198, %c4_i32 : i32
    %c2_i32_199 = arith.constant 2 : i32
    %413 = arith.muli %c4_i32, %c2_i32_199 : i32
    %414 = arith.index_cast %413 : i32 to index
    %c0_200 = arith.constant 0 : index
    %415 = vector.load %arg9[%414, %c0_200] : memref<16x256xf32, #tpu.memory_space<vmem>>, vector<2x128xf32>
    %c0_201 = arith.constant 0 : index
    %c0_202 = arith.constant 0 : index
    %c0_203 = arith.constant 0 : index
    %416 = vector.load %arg10[%c0_201, %c0_202, %c0_203] : memref<2x2x32xf32, #tpu.memory_space<vmem>>, vector<1x2x32xf32>
    %417 = vector.shape_cast %416 : vector<1x2x32xf32> to vector<2x32xf32>
    %418 = arith.truncf %417 : vector<2x32xf32> to vector<2x32xbf16>
    %cst_204 = arith.constant dense<0.000000e+00> : vector<2x128xf32>
    %419 = tpu.matmul %418, %9, %cst_204 {dimension_numbers = #tpu.dot_dimension_numbers<[1], [0], [0], [1], [0, 0, 1, 1], [], []>} : vector<2x32xbf16>, vector<32x128xbf16>, vector<2x128xf32> -> vector<2x128xf32>
    %420 = arith.addf %415, %419 : vector<2x128xf32>
    %421 = vector.broadcast %13 : vector<1x128xf32> to vector<2x128xf32>
    %422 = arith.addf %420, %421 : vector<2x128xf32>
    %c0_205 = arith.constant 0 : index
    %c0_206 = arith.constant 0 : index
    %c0_207 = arith.constant 0 : index
    %423 = vector.load %arg11[%c0_205, %c0_206, %c0_207] : memref<2x2x32xf32, #tpu.memory_space<vmem>>, vector<1x2x32xf32>
    %424 = vector.shape_cast %423 : vector<1x2x32xf32> to vector<2x32xf32>
    %425 = vector.extract_strided_slice %422 {offsets = [0, 0], sizes = [2, 32], strides = [1, 1]} : vector<2x128xf32> to vector<2x32xf32>
    %426 = arith.negf %425 : vector<2x32xf32>
    %427 = math.exp %426 : vector<2x32xf32>
    %cst_208 = arith.constant 1.000000e+00 : f32
    %428 = vector.broadcast %cst_208 : f32 to vector<2x32xf32>
    %429 = arith.addf %428, %427 : vector<2x32xf32>
    %430 = arith.divf %428, %429 : vector<2x32xf32>
    %431 = vector.extract_strided_slice %422 {offsets = [0, 32], sizes = [2, 32], strides = [1, 1]} : vector<2x128xf32> to vector<2x32xf32>
    %432 = arith.negf %431 : vector<2x32xf32>
    %433 = math.exp %432 : vector<2x32xf32>
    %cst_209 = arith.constant 1.000000e+00 : f32
    %434 = vector.broadcast %cst_209 : f32 to vector<2x32xf32>
    %435 = arith.addf %434, %433 : vector<2x32xf32>
    %436 = arith.divf %434, %435 : vector<2x32xf32>
    %437 = vector.extract_strided_slice %422 {offsets = [0, 64], sizes = [2, 32], strides = [1, 1]} : vector<2x128xf32> to vector<2x32xf32>
    %438 = math.tanh %437 : vector<2x32xf32>
    %439 = vector.extract_strided_slice %422 {offsets = [0, 96], sizes = [2, 32], strides = [1, 1]} : vector<2x128xf32> to vector<2x32xf32>
    %440 = arith.negf %439 : vector<2x32xf32>
    %441 = math.exp %440 : vector<2x32xf32>
    %cst_210 = arith.constant 1.000000e+00 : f32
    %442 = vector.broadcast %cst_210 : f32 to vector<2x32xf32>
    %443 = arith.addf %442, %441 : vector<2x32xf32>
    %444 = arith.divf %442, %443 : vector<2x32xf32>
    %445 = arith.mulf %436, %424 : vector<2x32xf32>
    %446 = arith.mulf %430, %438 : vector<2x32xf32>
    %447 = arith.addf %445, %446 : vector<2x32xf32>
    %448 = math.tanh %447 : vector<2x32xf32>
    %449 = arith.mulf %444, %448 : vector<2x32xf32>
    %c0_211 = arith.constant 0 : index
    %c0_212 = arith.constant 0 : index
    %c0_213 = arith.constant 0 : index
    %450 = vector.load %arg10[%c0_211, %c0_212, %c0_213] : memref<2x2x32xf32, #tpu.memory_space<vmem>>, vector<1x2x32xf32>
    %451 = vector.shape_cast %450 : vector<1x2x32xf32> to vector<2x32xf32>
    %452 = vector.shape_cast %449 : vector<2x32xf32> to vector<1x2x32xf32>
    tpu.vector_store %arg10[%c0_211, %c0_212, %c0_213], %452 {strides = array<i32>} : memref<2x2x32xf32, #tpu.memory_space<vmem>>, vector<1x2x32xf32>,
    %c0_214 = arith.constant 0 : index
    %c0_215 = arith.constant 0 : index
    %c0_216 = arith.constant 0 : index
    %453 = vector.load %arg11[%c0_214, %c0_215, %c0_216] : memref<2x2x32xf32, #tpu.memory_space<vmem>>, vector<1x2x32xf32>
    %454 = vector.shape_cast %453 : vector<1x2x32xf32> to vector<2x32xf32>
    %455 = vector.shape_cast %447 : vector<2x32xf32> to vector<1x2x32xf32>
    tpu.vector_store %arg11[%c0_214, %c0_215, %c0_216], %455 {strides = array<i32>} : memref<2x2x32xf32, #tpu.memory_space<vmem>>, vector<1x2x32xf32>,
    %456 = arith.truncf %449 : vector<2x32xf32> to vector<2x32xbf16>
    %c2_i32_217 = arith.constant 2 : i32
    %457 = arith.muli %c4_i32, %c2_i32_217 : i32
    %c0_218 = arith.constant 0 : index
    %458 = arith.index_cast %457 : i32 to index
    %c0_219 = arith.constant 0 : index
    %459 = vector.load %arg6[%c0_218, %458, %c0_219] : memref<2x16x32xbf16, #tpu.memory_space<vmem>>, vector<1x2x32xbf16>
    %460 = vector.shape_cast %459 : vector<1x2x32xbf16> to vector<2x32xbf16>
    %461 = vector.shape_cast %456 : vector<2x32xbf16> to vector<1x2x32xbf16>
    tpu.vector_store %arg6[%c0_218, %458, %c0_219], %461 {strides = array<i32>} : memref<2x16x32xbf16, #tpu.memory_space<vmem>>, vector<1x2x32xbf16>,
    %c2_i32_220 = arith.constant 2 : i32
    %462 = arith.muli %412, %c2_i32_220 : i32
    %463 = arith.index_cast %462 : i32 to index
    %c128_221 = arith.constant 128 : index
    %464 = vector.load %arg9[%463, %c128_221] : memref<16x256xf32, #tpu.memory_space<vmem>>, vector<2x128xf32>
    %c1_222 = arith.constant 1 : index
    %c0_223 = arith.constant 0 : index
    %c0_224 = arith.constant 0 : index
    %465 = vector.load %arg10[%c1_222, %c0_223, %c0_224] : memref<2x2x32xf32, #tpu.memory_space<vmem>>, vector<1x2x32xf32>
    %466 = vector.shape_cast %465 : vector<1x2x32xf32> to vector<2x32xf32>
    %467 = arith.truncf %466 : vector<2x32xf32> to vector<2x32xbf16>
    %cst_225 = arith.constant dense<0.000000e+00> : vector<2x128xf32>
    %468 = tpu.matmul %467, %11, %cst_225 {dimension_numbers = #tpu.dot_dimension_numbers<[1], [0], [0], [1], [0, 0, 1, 1], [], []>} : vector<2x32xbf16>, vector<32x128xbf16>, vector<2x128xf32> -> vector<2x128xf32>
    %469 = arith.addf %464, %468 : vector<2x128xf32>
    %470 = vector.broadcast %15 : vector<1x128xf32> to vector<2x128xf32>
    %471 = arith.addf %469, %470 : vector<2x128xf32>
    %c1_226 = arith.constant 1 : index
    %c0_227 = arith.constant 0 : index
    %c0_228 = arith.constant 0 : index
    %472 = vector.load %arg11[%c1_226, %c0_227, %c0_228] : memref<2x2x32xf32, #tpu.memory_space<vmem>>, vector<1x2x32xf32>
    %473 = vector.shape_cast %472 : vector<1x2x32xf32> to vector<2x32xf32>
    %474 = vector.extract_strided_slice %471 {offsets = [0, 0], sizes = [2, 32], strides = [1, 1]} : vector<2x128xf32> to vector<2x32xf32>
    %475 = arith.negf %474 : vector<2x32xf32>
    %476 = math.exp %475 : vector<2x32xf32>
    %cst_229 = arith.constant 1.000000e+00 : f32
    %477 = vector.broadcast %cst_229 : f32 to vector<2x32xf32>
    %478 = arith.addf %477, %476 : vector<2x32xf32>
    %479 = arith.divf %477, %478 : vector<2x32xf32>
    %480 = vector.extract_strided_slice %471 {offsets = [0, 32], sizes = [2, 32], strides = [1, 1]} : vector<2x128xf32> to vector<2x32xf32>
    %481 = arith.negf %480 : vector<2x32xf32>
    %482 = math.exp %481 : vector<2x32xf32>
    %cst_230 = arith.constant 1.000000e+00 : f32
    %483 = vector.broadcast %cst_230 : f32 to vector<2x32xf32>
    %484 = arith.addf %483, %482 : vector<2x32xf32>
    %485 = arith.divf %483, %484 : vector<2x32xf32>
    %486 = vector.extract_strided_slice %471 {offsets = [0, 64], sizes = [2, 32], strides = [1, 1]} : vector<2x128xf32> to vector<2x32xf32>
    %487 = math.tanh %486 : vector<2x32xf32>
    %488 = vector.extract_strided_slice %471 {offsets = [0, 96], sizes = [2, 32], strides = [1, 1]} : vector<2x128xf32> to vector<2x32xf32>
    %489 = arith.negf %488 : vector<2x32xf32>
    %490 = math.exp %489 : vector<2x32xf32>
    %cst_231 = arith.constant 1.000000e+00 : f32
    %491 = vector.broadcast %cst_231 : f32 to vector<2x32xf32>
    %492 = arith.addf %491, %490 : vector<2x32xf32>
    %493 = arith.divf %491, %492 : vector<2x32xf32>
    %494 = arith.mulf %485, %473 : vector<2x32xf32>
    %495 = arith.mulf %479, %487 : vector<2x32xf32>
    %496 = arith.addf %494, %495 : vector<2x32xf32>
    %497 = math.tanh %496 : vector<2x32xf32>
    %498 = arith.mulf %493, %497 : vector<2x32xf32>
    %c1_232 = arith.constant 1 : index
    %c0_233 = arith.constant 0 : index
    %c0_234 = arith.constant 0 : index
    %499 = vector.load %arg10[%c1_232, %c0_233, %c0_234] : memref<2x2x32xf32, #tpu.memory_space<vmem>>, vector<1x2x32xf32>
    %500 = vector.shape_cast %499 : vector<1x2x32xf32> to vector<2x32xf32>
    %501 = vector.shape_cast %498 : vector<2x32xf32> to vector<1x2x32xf32>
    tpu.vector_store %arg10[%c1_232, %c0_233, %c0_234], %501 {strides = array<i32>} : memref<2x2x32xf32, #tpu.memory_space<vmem>>, vector<1x2x32xf32>,
    %c1_235 = arith.constant 1 : index
    %c0_236 = arith.constant 0 : index
    %c0_237 = arith.constant 0 : index
    %502 = vector.load %arg11[%c1_235, %c0_236, %c0_237] : memref<2x2x32xf32, #tpu.memory_space<vmem>>, vector<1x2x32xf32>
    %503 = vector.shape_cast %502 : vector<1x2x32xf32> to vector<2x32xf32>
    %504 = vector.shape_cast %496 : vector<2x32xf32> to vector<1x2x32xf32>
    tpu.vector_store %arg11[%c1_235, %c0_236, %c0_237], %504 {strides = array<i32>} : memref<2x2x32xf32, #tpu.memory_space<vmem>>, vector<1x2x32xf32>,
    %505 = arith.truncf %498 : vector<2x32xf32> to vector<2x32xbf16>
    %c2_i32_238 = arith.constant 2 : i32
    %506 = arith.muli %412, %c2_i32_238 : i32
    %c1_239 = arith.constant 1 : index
    %507 = arith.index_cast %506 : i32 to index
    %c0_240 = arith.constant 0 : index
    %508 = vector.load %arg6[%c1_239, %507, %c0_240] : memref<2x16x32xbf16, #tpu.memory_space<vmem>>, vector<1x2x32xbf16>
    %509 = vector.shape_cast %508 : vector<1x2x32xbf16> to vector<2x32xbf16>
    %510 = vector.shape_cast %505 : vector<2x32xbf16> to vector<1x2x32xbf16>
    tpu.vector_store %arg6[%c1_239, %507, %c0_240], %510 {strides = array<i32>} : memref<2x16x32xbf16, #tpu.memory_space<vmem>>, vector<1x2x32xbf16>,
    %c5_i32 = arith.constant 5 : i32
    %c7_i32_241 = arith.constant 7 : i32
    %511 = arith.subi %c7_i32_241, %c5_i32 : i32
    %c2_i32_242 = arith.constant 2 : i32
    %512 = arith.muli %c5_i32, %c2_i32_242 : i32
    %513 = arith.index_cast %512 : i32 to index
    %c0_243 = arith.constant 0 : index
    %514 = vector.load %arg9[%513, %c0_243] : memref<16x256xf32, #tpu.memory_space<vmem>>, vector<2x128xf32>
    %c0_244 = arith.constant 0 : index
    %c0_245 = arith.constant 0 : index
    %c0_246 = arith.constant 0 : index
    %515 = vector.load %arg10[%c0_244, %c0_245, %c0_246] : memref<2x2x32xf32, #tpu.memory_space<vmem>>, vector<1x2x32xf32>
    %516 = vector.shape_cast %515 : vector<1x2x32xf32> to vector<2x32xf32>
    %517 = arith.truncf %516 : vector<2x32xf32> to vector<2x32xbf16>
    %cst_247 = arith.constant dense<0.000000e+00> : vector<2x128xf32>
    %518 = tpu.matmul %517, %9, %cst_247 {dimension_numbers = #tpu.dot_dimension_numbers<[1], [0], [0], [1], [0, 0, 1, 1], [], []>} : vector<2x32xbf16>, vector<32x128xbf16>, vector<2x128xf32> -> vector<2x128xf32>
    %519 = arith.addf %514, %518 : vector<2x128xf32>
    %520 = vector.broadcast %13 : vector<1x128xf32> to vector<2x128xf32>
    %521 = arith.addf %519, %520 : vector<2x128xf32>
    %c0_248 = arith.constant 0 : index
    %c0_249 = arith.constant 0 : index
    %c0_250 = arith.constant 0 : index
    %522 = vector.load %arg11[%c0_248, %c0_249, %c0_250] : memref<2x2x32xf32, #tpu.memory_space<vmem>>, vector<1x2x32xf32>
    %523 = vector.shape_cast %522 : vector<1x2x32xf32> to vector<2x32xf32>
    %524 = vector.extract_strided_slice %521 {offsets = [0, 0], sizes = [2, 32], strides = [1, 1]} : vector<2x128xf32> to vector<2x32xf32>
    %525 = arith.negf %524 : vector<2x32xf32>
    %526 = math.exp %525 : vector<2x32xf32>
    %cst_251 = arith.constant 1.000000e+00 : f32
    %527 = vector.broadcast %cst_251 : f32 to vector<2x32xf32>
    %528 = arith.addf %527, %526 : vector<2x32xf32>
    %529 = arith.divf %527, %528 : vector<2x32xf32>
    %530 = vector.extract_strided_slice %521 {offsets = [0, 32], sizes = [2, 32], strides = [1, 1]} : vector<2x128xf32> to vector<2x32xf32>
    %531 = arith.negf %530 : vector<2x32xf32>
    %532 = math.exp %531 : vector<2x32xf32>
    %cst_252 = arith.constant 1.000000e+00 : f32
    %533 = vector.broadcast %cst_252 : f32 to vector<2x32xf32>
    %534 = arith.addf %533, %532 : vector<2x32xf32>
    %535 = arith.divf %533, %534 : vector<2x32xf32>
    %536 = vector.extract_strided_slice %521 {offsets = [0, 64], sizes = [2, 32], strides = [1, 1]} : vector<2x128xf32> to vector<2x32xf32>
    %537 = math.tanh %536 : vector<2x32xf32>
    %538 = vector.extract_strided_slice %521 {offsets = [0, 96], sizes = [2, 32], strides = [1, 1]} : vector<2x128xf32> to vector<2x32xf32>
    %539 = arith.negf %538 : vector<2x32xf32>
    %540 = math.exp %539 : vector<2x32xf32>
    %cst_253 = arith.constant 1.000000e+00 : f32
    %541 = vector.broadcast %cst_253 : f32 to vector<2x32xf32>
    %542 = arith.addf %541, %540 : vector<2x32xf32>
    %543 = arith.divf %541, %542 : vector<2x32xf32>
    %544 = arith.mulf %535, %523 : vector<2x32xf32>
    %545 = arith.mulf %529, %537 : vector<2x32xf32>
    %546 = arith.addf %544, %545 : vector<2x32xf32>
    %547 = math.tanh %546 : vector<2x32xf32>
    %548 = arith.mulf %543, %547 : vector<2x32xf32>
    %c0_254 = arith.constant 0 : index
    %c0_255 = arith.constant 0 : index
    %c0_256 = arith.constant 0 : index
    %549 = vector.load %arg10[%c0_254, %c0_255, %c0_256] : memref<2x2x32xf32, #tpu.memory_space<vmem>>, vector<1x2x32xf32>
    %550 = vector.shape_cast %549 : vector<1x2x32xf32> to vector<2x32xf32>
    %551 = vector.shape_cast %548 : vector<2x32xf32> to vector<1x2x32xf32>
    tpu.vector_store %arg10[%c0_254, %c0_255, %c0_256], %551 {strides = array<i32>} : memref<2x2x32xf32, #tpu.memory_space<vmem>>, vector<1x2x32xf32>,
    %c0_257 = arith.constant 0 : index
    %c0_258 = arith.constant 0 : index
    %c0_259 = arith.constant 0 : index
    %552 = vector.load %arg11[%c0_257, %c0_258, %c0_259] : memref<2x2x32xf32, #tpu.memory_space<vmem>>, vector<1x2x32xf32>
    %553 = vector.shape_cast %552 : vector<1x2x32xf32> to vector<2x32xf32>
    %554 = vector.shape_cast %546 : vector<2x32xf32> to vector<1x2x32xf32>
    tpu.vector_store %arg11[%c0_257, %c0_258, %c0_259], %554 {strides = array<i32>} : memref<2x2x32xf32, #tpu.memory_space<vmem>>, vector<1x2x32xf32>,
    %555 = arith.truncf %548 : vector<2x32xf32> to vector<2x32xbf16>
    %c2_i32_260 = arith.constant 2 : i32
    %556 = arith.muli %c5_i32, %c2_i32_260 : i32
    %c0_261 = arith.constant 0 : index
    %557 = arith.index_cast %556 : i32 to index
    %c0_262 = arith.constant 0 : index
    %558 = vector.load %arg6[%c0_261, %557, %c0_262] : memref<2x16x32xbf16, #tpu.memory_space<vmem>>, vector<1x2x32xbf16>
    %559 = vector.shape_cast %558 : vector<1x2x32xbf16> to vector<2x32xbf16>
    %560 = vector.shape_cast %555 : vector<2x32xbf16> to vector<1x2x32xbf16>
    tpu.vector_store %arg6[%c0_261, %557, %c0_262], %560 {strides = array<i32>} : memref<2x16x32xbf16, #tpu.memory_space<vmem>>, vector<1x2x32xbf16>,
    %c2_i32_263 = arith.constant 2 : i32
    %561 = arith.muli %511, %c2_i32_263 : i32
    %562 = arith.index_cast %561 : i32 to index
    %c128_264 = arith.constant 128 : index
    %563 = vector.load %arg9[%562, %c128_264] : memref<16x256xf32, #tpu.memory_space<vmem>>, vector<2x128xf32>
    %c1_265 = arith.constant 1 : index
    %c0_266 = arith.constant 0 : index
    %c0_267 = arith.constant 0 : index
    %564 = vector.load %arg10[%c1_265, %c0_266, %c0_267] : memref<2x2x32xf32, #tpu.memory_space<vmem>>, vector<1x2x32xf32>
    %565 = vector.shape_cast %564 : vector<1x2x32xf32> to vector<2x32xf32>
    %566 = arith.truncf %565 : vector<2x32xf32> to vector<2x32xbf16>
    %cst_268 = arith.constant dense<0.000000e+00> : vector<2x128xf32>
    %567 = tpu.matmul %566, %11, %cst_268 {dimension_numbers = #tpu.dot_dimension_numbers<[1], [0], [0], [1], [0, 0, 1, 1], [], []>} : vector<2x32xbf16>, vector<32x128xbf16>, vector<2x128xf32> -> vector<2x128xf32>
    %568 = arith.addf %563, %567 : vector<2x128xf32>
    %569 = vector.broadcast %15 : vector<1x128xf32> to vector<2x128xf32>
    %570 = arith.addf %568, %569 : vector<2x128xf32>
    %c1_269 = arith.constant 1 : index
    %c0_270 = arith.constant 0 : index
    %c0_271 = arith.constant 0 : index
    %571 = vector.load %arg11[%c1_269, %c0_270, %c0_271] : memref<2x2x32xf32, #tpu.memory_space<vmem>>, vector<1x2x32xf32>
    %572 = vector.shape_cast %571 : vector<1x2x32xf32> to vector<2x32xf32>
    %573 = vector.extract_strided_slice %570 {offsets = [0, 0], sizes = [2, 32], strides = [1, 1]} : vector<2x128xf32> to vector<2x32xf32>
    %574 = arith.negf %573 : vector<2x32xf32>
    %575 = math.exp %574 : vector<2x32xf32>
    %cst_272 = arith.constant 1.000000e+00 : f32
    %576 = vector.broadcast %cst_272 : f32 to vector<2x32xf32>
    %577 = arith.addf %576, %575 : vector<2x32xf32>
    %578 = arith.divf %576, %577 : vector<2x32xf32>
    %579 = vector.extract_strided_slice %570 {offsets = [0, 32], sizes = [2, 32], strides = [1, 1]} : vector<2x128xf32> to vector<2x32xf32>
    %580 = arith.negf %579 : vector<2x32xf32>
    %581 = math.exp %580 : vector<2x32xf32>
    %cst_273 = arith.constant 1.000000e+00 : f32
    %582 = vector.broadcast %cst_273 : f32 to vector<2x32xf32>
    %583 = arith.addf %582, %581 : vector<2x32xf32>
    %584 = arith.divf %582, %583 : vector<2x32xf32>
    %585 = vector.extract_strided_slice %570 {offsets = [0, 64], sizes = [2, 32], strides = [1, 1]} : vector<2x128xf32> to vector<2x32xf32>
    %586 = math.tanh %585 : vector<2x32xf32>
    %587 = vector.extract_strided_slice %570 {offsets = [0, 96], sizes = [2, 32], strides = [1, 1]} : vector<2x128xf32> to vector<2x32xf32>
    %588 = arith.negf %587 : vector<2x32xf32>
    %589 = math.exp %588 : vector<2x32xf32>
    %cst_274 = arith.constant 1.000000e+00 : f32
    %590 = vector.broadcast %cst_274 : f32 to vector<2x32xf32>
    %591 = arith.addf %590, %589 : vector<2x32xf32>
    %592 = arith.divf %590, %591 : vector<2x32xf32>
    %593 = arith.mulf %584, %572 : vector<2x32xf32>
    %594 = arith.mulf %578, %586 : vector<2x32xf32>
    %595 = arith.addf %593, %594 : vector<2x32xf32>
    %596 = math.tanh %595 : vector<2x32xf32>
    %597 = arith.mulf %592, %596 : vector<2x32xf32>
    %c1_275 = arith.constant 1 : index
    %c0_276 = arith.constant 0 : index
    %c0_277 = arith.constant 0 : index
    %598 = vector.load %arg10[%c1_275, %c0_276, %c0_277] : memref<2x2x32xf32, #tpu.memory_space<vmem>>, vector<1x2x32xf32>
    %599 = vector.shape_cast %598 : vector<1x2x32xf32> to vector<2x32xf32>
    %600 = vector.shape_cast %597 : vector<2x32xf32> to vector<1x2x32xf32>
    tpu.vector_store %arg10[%c1_275, %c0_276, %c0_277], %600 {strides = array<i32>} : memref<2x2x32xf32, #tpu.memory_space<vmem>>, vector<1x2x32xf32>,
    %c1_278 = arith.constant 1 : index
    %c0_279 = arith.constant 0 : index
    %c0_280 = arith.constant 0 : index
    %601 = vector.load %arg11[%c1_278, %c0_279, %c0_280] : memref<2x2x32xf32, #tpu.memory_space<vmem>>, vector<1x2x32xf32>
    %602 = vector.shape_cast %601 : vector<1x2x32xf32> to vector<2x32xf32>
    %603 = vector.shape_cast %595 : vector<2x32xf32> to vector<1x2x32xf32>
    tpu.vector_store %arg11[%c1_278, %c0_279, %c0_280], %603 {strides = array<i32>} : memref<2x2x32xf32, #tpu.memory_space<vmem>>, vector<1x2x32xf32>,
    %604 = arith.truncf %597 : vector<2x32xf32> to vector<2x32xbf16>
    %c2_i32_281 = arith.constant 2 : i32
    %605 = arith.muli %511, %c2_i32_281 : i32
    %c1_282 = arith.constant 1 : index
    %606 = arith.index_cast %605 : i32 to index
    %c0_283 = arith.constant 0 : index
    %607 = vector.load %arg6[%c1_282, %606, %c0_283] : memref<2x16x32xbf16, #tpu.memory_space<vmem>>, vector<1x2x32xbf16>
    %608 = vector.shape_cast %607 : vector<1x2x32xbf16> to vector<2x32xbf16>
    %609 = vector.shape_cast %604 : vector<2x32xbf16> to vector<1x2x32xbf16>
    tpu.vector_store %arg6[%c1_282, %606, %c0_283], %609 {strides = array<i32>} : memref<2x16x32xbf16, #tpu.memory_space<vmem>>, vector<1x2x32xbf16>,
    %c6_i32 = arith.constant 6 : i32
    %c7_i32_284 = arith.constant 7 : i32
    %610 = arith.subi %c7_i32_284, %c6_i32 : i32
    %c2_i32_285 = arith.constant 2 : i32
    %611 = arith.muli %c6_i32, %c2_i32_285 : i32
    %612 = arith.index_cast %611 : i32 to index
    %c0_286 = arith.constant 0 : index
    %613 = vector.load %arg9[%612, %c0_286] : memref<16x256xf32, #tpu.memory_space<vmem>>, vector<2x128xf32>
    %c0_287 = arith.constant 0 : index
    %c0_288 = arith.constant 0 : index
    %c0_289 = arith.constant 0 : index
    %614 = vector.load %arg10[%c0_287, %c0_288, %c0_289] : memref<2x2x32xf32, #tpu.memory_space<vmem>>, vector<1x2x32xf32>
    %615 = vector.shape_cast %614 : vector<1x2x32xf32> to vector<2x32xf32>
    %616 = arith.truncf %615 : vector<2x32xf32> to vector<2x32xbf16>
    %cst_290 = arith.constant dense<0.000000e+00> : vector<2x128xf32>
    %617 = tpu.matmul %616, %9, %cst_290 {dimension_numbers = #tpu.dot_dimension_numbers<[1], [0], [0], [1], [0, 0, 1, 1], [], []>} : vector<2x32xbf16>, vector<32x128xbf16>, vector<2x128xf32> -> vector<2x128xf32>
    %618 = arith.addf %613, %617 : vector<2x128xf32>
    %619 = vector.broadcast %13 : vector<1x128xf32> to vector<2x128xf32>
    %620 = arith.addf %618, %619 : vector<2x128xf32>
    %c0_291 = arith.constant 0 : index
    %c0_292 = arith.constant 0 : index
    %c0_293 = arith.constant 0 : index
    %621 = vector.load %arg11[%c0_291, %c0_292, %c0_293] : memref<2x2x32xf32, #tpu.memory_space<vmem>>, vector<1x2x32xf32>
    %622 = vector.shape_cast %621 : vector<1x2x32xf32> to vector<2x32xf32>
    %623 = vector.extract_strided_slice %620 {offsets = [0, 0], sizes = [2, 32], strides = [1, 1]} : vector<2x128xf32> to vector<2x32xf32>
    %624 = arith.negf %623 : vector<2x32xf32>
    %625 = math.exp %624 : vector<2x32xf32>
    %cst_294 = arith.constant 1.000000e+00 : f32
    %626 = vector.broadcast %cst_294 : f32 to vector<2x32xf32>
    %627 = arith.addf %626, %625 : vector<2x32xf32>
    %628 = arith.divf %626, %627 : vector<2x32xf32>
    %629 = vector.extract_strided_slice %620 {offsets = [0, 32], sizes = [2, 32], strides = [1, 1]} : vector<2x128xf32> to vector<2x32xf32>
    %630 = arith.negf %629 : vector<2x32xf32>
    %631 = math.exp %630 : vector<2x32xf32>
    %cst_295 = arith.constant 1.000000e+00 : f32
    %632 = vector.broadcast %cst_295 : f32 to vector<2x32xf32>
    %633 = arith.addf %632, %631 : vector<2x32xf32>
    %634 = arith.divf %632, %633 : vector<2x32xf32>
    %635 = vector.extract_strided_slice %620 {offsets = [0, 64], sizes = [2, 32], strides = [1, 1]} : vector<2x128xf32> to vector<2x32xf32>
    %636 = math.tanh %635 : vector<2x32xf32>
    %637 = vector.extract_strided_slice %620 {offsets = [0, 96], sizes = [2, 32], strides = [1, 1]} : vector<2x128xf32> to vector<2x32xf32>
    %638 = arith.negf %637 : vector<2x32xf32>
    %639 = math.exp %638 : vector<2x32xf32>
    %cst_296 = arith.constant 1.000000e+00 : f32
    %640 = vector.broadcast %cst_296 : f32 to vector<2x32xf32>
    %641 = arith.addf %640, %639 : vector<2x32xf32>
    %642 = arith.divf %640, %641 : vector<2x32xf32>
    %643 = arith.mulf %634, %622 : vector<2x32xf32>
    %644 = arith.mulf %628, %636 : vector<2x32xf32>
    %645 = arith.addf %643, %644 : vector<2x32xf32>
    %646 = math.tanh %645 : vector<2x32xf32>
    %647 = arith.mulf %642, %646 : vector<2x32xf32>
    %c0_297 = arith.constant 0 : index
    %c0_298 = arith.constant 0 : index
    %c0_299 = arith.constant 0 : index
    %648 = vector.load %arg10[%c0_297, %c0_298, %c0_299] : memref<2x2x32xf32, #tpu.memory_space<vmem>>, vector<1x2x32xf32>
    %649 = vector.shape_cast %648 : vector<1x2x32xf32> to vector<2x32xf32>
    %650 = vector.shape_cast %647 : vector<2x32xf32> to vector<1x2x32xf32>
    tpu.vector_store %arg10[%c0_297, %c0_298, %c0_299], %650 {strides = array<i32>} : memref<2x2x32xf32, #tpu.memory_space<vmem>>, vector<1x2x32xf32>,
    %c0_300 = arith.constant 0 : index
    %c0_301 = arith.constant 0 : index
    %c0_302 = arith.constant 0 : index
    %651 = vector.load %arg11[%c0_300, %c0_301, %c0_302] : memref<2x2x32xf32, #tpu.memory_space<vmem>>, vector<1x2x32xf32>
    %652 = vector.shape_cast %651 : vector<1x2x32xf32> to vector<2x32xf32>
    %653 = vector.shape_cast %645 : vector<2x32xf32> to vector<1x2x32xf32>
    tpu.vector_store %arg11[%c0_300, %c0_301, %c0_302], %653 {strides = array<i32>} : memref<2x2x32xf32, #tpu.memory_space<vmem>>, vector<1x2x32xf32>,
    %654 = arith.truncf %647 : vector<2x32xf32> to vector<2x32xbf16>
    %c2_i32_303 = arith.constant 2 : i32
    %655 = arith.muli %c6_i32, %c2_i32_303 : i32
    %c0_304 = arith.constant 0 : index
    %656 = arith.index_cast %655 : i32 to index
    %c0_305 = arith.constant 0 : index
    %657 = vector.load %arg6[%c0_304, %656, %c0_305] : memref<2x16x32xbf16, #tpu.memory_space<vmem>>, vector<1x2x32xbf16>
    %658 = vector.shape_cast %657 : vector<1x2x32xbf16> to vector<2x32xbf16>
    %659 = vector.shape_cast %654 : vector<2x32xbf16> to vector<1x2x32xbf16>
    tpu.vector_store %arg6[%c0_304, %656, %c0_305], %659 {strides = array<i32>} : memref<2x16x32xbf16, #tpu.memory_space<vmem>>, vector<1x2x32xbf16>,
    %c2_i32_306 = arith.constant 2 : i32
    %660 = arith.muli %610, %c2_i32_306 : i32
    %661 = arith.index_cast %660 : i32 to index
    %c128_307 = arith.constant 128 : index
    %662 = vector.load %arg9[%661, %c128_307] : memref<16x256xf32, #tpu.memory_space<vmem>>, vector<2x128xf32>
    %c1_308 = arith.constant 1 : index
    %c0_309 = arith.constant 0 : index
    %c0_310 = arith.constant 0 : index
    %663 = vector.load %arg10[%c1_308, %c0_309, %c0_310] : memref<2x2x32xf32, #tpu.memory_space<vmem>>, vector<1x2x32xf32>
    %664 = vector.shape_cast %663 : vector<1x2x32xf32> to vector<2x32xf32>
    %665 = arith.truncf %664 : vector<2x32xf32> to vector<2x32xbf16>
    %cst_311 = arith.constant dense<0.000000e+00> : vector<2x128xf32>
    %666 = tpu.matmul %665, %11, %cst_311 {dimension_numbers = #tpu.dot_dimension_numbers<[1], [0], [0], [1], [0, 0, 1, 1], [], []>} : vector<2x32xbf16>, vector<32x128xbf16>, vector<2x128xf32> -> vector<2x128xf32>
    %667 = arith.addf %662, %666 : vector<2x128xf32>
    %668 = vector.broadcast %15 : vector<1x128xf32> to vector<2x128xf32>
    %669 = arith.addf %667, %668 : vector<2x128xf32>
    %c1_312 = arith.constant 1 : index
    %c0_313 = arith.constant 0 : index
    %c0_314 = arith.constant 0 : index
    %670 = vector.load %arg11[%c1_312, %c0_313, %c0_314] : memref<2x2x32xf32, #tpu.memory_space<vmem>>, vector<1x2x32xf32>
    %671 = vector.shape_cast %670 : vector<1x2x32xf32> to vector<2x32xf32>
    %672 = vector.extract_strided_slice %669 {offsets = [0, 0], sizes = [2, 32], strides = [1, 1]} : vector<2x128xf32> to vector<2x32xf32>
    %673 = arith.negf %672 : vector<2x32xf32>
    %674 = math.exp %673 : vector<2x32xf32>
    %cst_315 = arith.constant 1.000000e+00 : f32
    %675 = vector.broadcast %cst_315 : f32 to vector<2x32xf32>
    %676 = arith.addf %675, %674 : vector<2x32xf32>
    %677 = arith.divf %675, %676 : vector<2x32xf32>
    %678 = vector.extract_strided_slice %669 {offsets = [0, 32], sizes = [2, 32], strides = [1, 1]} : vector<2x128xf32> to vector<2x32xf32>
    %679 = arith.negf %678 : vector<2x32xf32>
    %680 = math.exp %679 : vector<2x32xf32>
    %cst_316 = arith.constant 1.000000e+00 : f32
    %681 = vector.broadcast %cst_316 : f32 to vector<2x32xf32>
    %682 = arith.addf %681, %680 : vector<2x32xf32>
    %683 = arith.divf %681, %682 : vector<2x32xf32>
    %684 = vector.extract_strided_slice %669 {offsets = [0, 64], sizes = [2, 32], strides = [1, 1]} : vector<2x128xf32> to vector<2x32xf32>
    %685 = math.tanh %684 : vector<2x32xf32>
    %686 = vector.extract_strided_slice %669 {offsets = [0, 96], sizes = [2, 32], strides = [1, 1]} : vector<2x128xf32> to vector<2x32xf32>
    %687 = arith.negf %686 : vector<2x32xf32>
    %688 = math.exp %687 : vector<2x32xf32>
    %cst_317 = arith.constant 1.000000e+00 : f32
    %689 = vector.broadcast %cst_317 : f32 to vector<2x32xf32>
    %690 = arith.addf %689, %688 : vector<2x32xf32>
    %691 = arith.divf %689, %690 : vector<2x32xf32>
    %692 = arith.mulf %683, %671 : vector<2x32xf32>
    %693 = arith.mulf %677, %685 : vector<2x32xf32>
    %694 = arith.addf %692, %693 : vector<2x32xf32>
    %695 = math.tanh %694 : vector<2x32xf32>
    %696 = arith.mulf %691, %695 : vector<2x32xf32>
    %c1_318 = arith.constant 1 : index
    %c0_319 = arith.constant 0 : index
    %c0_320 = arith.constant 0 : index
    %697 = vector.load %arg10[%c1_318, %c0_319, %c0_320] : memref<2x2x32xf32, #tpu.memory_space<vmem>>, vector<1x2x32xf32>
    %698 = vector.shape_cast %697 : vector<1x2x32xf32> to vector<2x32xf32>
    %699 = vector.shape_cast %696 : vector<2x32xf32> to vector<1x2x32xf32>
    tpu.vector_store %arg10[%c1_318, %c0_319, %c0_320], %699 {strides = array<i32>} : memref<2x2x32xf32, #tpu.memory_space<vmem>>, vector<1x2x32xf32>,
    %c1_321 = arith.constant 1 : index
    %c0_322 = arith.constant 0 : index
    %c0_323 = arith.constant 0 : index
    %700 = vector.load %arg11[%c1_321, %c0_322, %c0_323] : memref<2x2x32xf32, #tpu.memory_space<vmem>>, vector<1x2x32xf32>
    %701 = vector.shape_cast %700 : vector<1x2x32xf32> to vector<2x32xf32>
    %702 = vector.shape_cast %694 : vector<2x32xf32> to vector<1x2x32xf32>
    tpu.vector_store %arg11[%c1_321, %c0_322, %c0_323], %702 {strides = array<i32>} : memref<2x2x32xf32, #tpu.memory_space<vmem>>, vector<1x2x32xf32>,
    %703 = arith.truncf %696 : vector<2x32xf32> to vector<2x32xbf16>
    %c2_i32_324 = arith.constant 2 : i32
    %704 = arith.muli %610, %c2_i32_324 : i32
    %c1_325 = arith.constant 1 : index
    %705 = arith.index_cast %704 : i32 to index
    %c0_326 = arith.constant 0 : index
    %706 = vector.load %arg6[%c1_325, %705, %c0_326] : memref<2x16x32xbf16, #tpu.memory_space<vmem>>, vector<1x2x32xbf16>
    %707 = vector.shape_cast %706 : vector<1x2x32xbf16> to vector<2x32xbf16>
    %708 = vector.shape_cast %703 : vector<2x32xbf16> to vector<1x2x32xbf16>
    tpu.vector_store %arg6[%c1_325, %705, %c0_326], %708 {strides = array<i32>} : memref<2x16x32xbf16, #tpu.memory_space<vmem>>, vector<1x2x32xbf16>,
    %c7_i32_327 = arith.constant 7 : i32
    %c7_i32_328 = arith.constant 7 : i32
    %709 = arith.subi %c7_i32_328, %c7_i32_327 : i32
    %c2_i32_329 = arith.constant 2 : i32
    %710 = arith.muli %c7_i32_327, %c2_i32_329 : i32
    %711 = arith.index_cast %710 : i32 to index
    %c0_330 = arith.constant 0 : index
    %712 = vector.load %arg9[%711, %c0_330] : memref<16x256xf32, #tpu.memory_space<vmem>>, vector<2x128xf32>
    %c0_331 = arith.constant 0 : index
    %c0_332 = arith.constant 0 : index
    %c0_333 = arith.constant 0 : index
    %713 = vector.load %arg10[%c0_331, %c0_332, %c0_333] : memref<2x2x32xf32, #tpu.memory_space<vmem>>, vector<1x2x32xf32>
    %714 = vector.shape_cast %713 : vector<1x2x32xf32> to vector<2x32xf32>
    %715 = arith.truncf %714 : vector<2x32xf32> to vector<2x32xbf16>
    %cst_334 = arith.constant dense<0.000000e+00> : vector<2x128xf32>
    %716 = tpu.matmul %715, %9, %cst_334 {dimension_numbers = #tpu.dot_dimension_numbers<[1], [0], [0], [1], [0, 0, 1, 1], [], []>} : vector<2x32xbf16>, vector<32x128xbf16>, vector<2x128xf32> -> vector<2x128xf32>
    %717 = arith.addf %712, %716 : vector<2x128xf32>
    %718 = vector.broadcast %13 : vector<1x128xf32> to vector<2x128xf32>
    %719 = arith.addf %717, %718 : vector<2x128xf32>
    %c0_335 = arith.constant 0 : index
    %c0_336 = arith.constant 0 : index
    %c0_337 = arith.constant 0 : index
    %720 = vector.load %arg11[%c0_335, %c0_336, %c0_337] : memref<2x2x32xf32, #tpu.memory_space<vmem>>, vector<1x2x32xf32>
    %721 = vector.shape_cast %720 : vector<1x2x32xf32> to vector<2x32xf32>
    %722 = vector.extract_strided_slice %719 {offsets = [0, 0], sizes = [2, 32], strides = [1, 1]} : vector<2x128xf32> to vector<2x32xf32>
    %723 = arith.negf %722 : vector<2x32xf32>
    %724 = math.exp %723 : vector<2x32xf32>
    %cst_338 = arith.constant 1.000000e+00 : f32
    %725 = vector.broadcast %cst_338 : f32 to vector<2x32xf32>
    %726 = arith.addf %725, %724 : vector<2x32xf32>
    %727 = arith.divf %725, %726 : vector<2x32xf32>
    %728 = vector.extract_strided_slice %719 {offsets = [0, 32], sizes = [2, 32], strides = [1, 1]} : vector<2x128xf32> to vector<2x32xf32>
    %729 = arith.negf %728 : vector<2x32xf32>
    %730 = math.exp %729 : vector<2x32xf32>
    %cst_339 = arith.constant 1.000000e+00 : f32
    %731 = vector.broadcast %cst_339 : f32 to vector<2x32xf32>
    %732 = arith.addf %731, %730 : vector<2x32xf32>
    %733 = arith.divf %731, %732 : vector<2x32xf32>
    %734 = vector.extract_strided_slice %719 {offsets = [0, 64], sizes = [2, 32], strides = [1, 1]} : vector<2x128xf32> to vector<2x32xf32>
    %735 = math.tanh %734 : vector<2x32xf32>
    %736 = vector.extract_strided_slice %719 {offsets = [0, 96], sizes = [2, 32], strides = [1, 1]} : vector<2x128xf32> to vector<2x32xf32>
    %737 = arith.negf %736 : vector<2x32xf32>
    %738 = math.exp %737 : vector<2x32xf32>
    %cst_340 = arith.constant 1.000000e+00 : f32
    %739 = vector.broadcast %cst_340 : f32 to vector<2x32xf32>
    %740 = arith.addf %739, %738 : vector<2x32xf32>
    %741 = arith.divf %739, %740 : vector<2x32xf32>
    %742 = arith.mulf %733, %721 : vector<2x32xf32>
    %743 = arith.mulf %727, %735 : vector<2x32xf32>
    %744 = arith.addf %742, %743 : vector<2x32xf32>
    %745 = math.tanh %744 : vector<2x32xf32>
    %746 = arith.mulf %741, %745 : vector<2x32xf32>
    %c0_341 = arith.constant 0 : index
    %c0_342 = arith.constant 0 : index
    %c0_343 = arith.constant 0 : index
    %747 = vector.load %arg10[%c0_341, %c0_342, %c0_343] : memref<2x2x32xf32, #tpu.memory_space<vmem>>, vector<1x2x32xf32>
    %748 = vector.shape_cast %747 : vector<1x2x32xf32> to vector<2x32xf32>
    %749 = vector.shape_cast %746 : vector<2x32xf32> to vector<1x2x32xf32>
    tpu.vector_store %arg10[%c0_341, %c0_342, %c0_343], %749 {strides = array<i32>} : memref<2x2x32xf32, #tpu.memory_space<vmem>>, vector<1x2x32xf32>,
    %c0_344 = arith.constant 0 : index
    %c0_345 = arith.constant 0 : index
    %c0_346 = arith.constant 0 : index
    %750 = vector.load %arg11[%c0_344, %c0_345, %c0_346] : memref<2x2x32xf32, #tpu.memory_space<vmem>>, vector<1x2x32xf32>
    %751 = vector.shape_cast %750 : vector<1x2x32xf32> to vector<2x32xf32>
    %752 = vector.shape_cast %744 : vector<2x32xf32> to vector<1x2x32xf32>
    tpu.vector_store %arg11[%c0_344, %c0_345, %c0_346], %752 {strides = array<i32>} : memref<2x2x32xf32, #tpu.memory_space<vmem>>, vector<1x2x32xf32>,
    %753 = arith.truncf %746 : vector<2x32xf32> to vector<2x32xbf16>
    %c2_i32_347 = arith.constant 2 : i32
    %754 = arith.muli %c7_i32_327, %c2_i32_347 : i32
    %c0_348 = arith.constant 0 : index
    %755 = arith.index_cast %754 : i32 to index
    %c0_349 = arith.constant 0 : index
    %756 = vector.load %arg6[%c0_348, %755, %c0_349] : memref<2x16x32xbf16, #tpu.memory_space<vmem>>, vector<1x2x32xbf16>
    %757 = vector.shape_cast %756 : vector<1x2x32xbf16> to vector<2x32xbf16>
    %758 = vector.shape_cast %753 : vector<2x32xbf16> to vector<1x2x32xbf16>
    tpu.vector_store %arg6[%c0_348, %755, %c0_349], %758 {strides = array<i32>} : memref<2x16x32xbf16, #tpu.memory_space<vmem>>, vector<1x2x32xbf16>,
    %c2_i32_350 = arith.constant 2 : i32
    %759 = arith.muli %709, %c2_i32_350 : i32
    %760 = arith.index_cast %759 : i32 to index
    %c128_351 = arith.constant 128 : index
    %761 = vector.load %arg9[%760, %c128_351] : memref<16x256xf32, #tpu.memory_space<vmem>>, vector<2x128xf32>
    %c1_352 = arith.constant 1 : index
    %c0_353 = arith.constant 0 : index
    %c0_354 = arith.constant 0 : index
    %762 = vector.load %arg10[%c1_352, %c0_353, %c0_354] : memref<2x2x32xf32, #tpu.memory_space<vmem>>, vector<1x2x32xf32>
    %763 = vector.shape_cast %762 : vector<1x2x32xf32> to vector<2x32xf32>
    %764 = arith.truncf %763 : vector<2x32xf32> to vector<2x32xbf16>
    %cst_355 = arith.constant dense<0.000000e+00> : vector<2x128xf32>
    %765 = tpu.matmul %764, %11, %cst_355 {dimension_numbers = #tpu.dot_dimension_numbers<[1], [0], [0], [1], [0, 0, 1, 1], [], []>} : vector<2x32xbf16>, vector<32x128xbf16>, vector<2x128xf32> -> vector<2x128xf32>
    %766 = arith.addf %761, %765 : vector<2x128xf32>
    %767 = vector.broadcast %15 : vector<1x128xf32> to vector<2x128xf32>
    %768 = arith.addf %766, %767 : vector<2x128xf32>
    %c1_356 = arith.constant 1 : index
    %c0_357 = arith.constant 0 : index
    %c0_358 = arith.constant 0 : index
    %769 = vector.load %arg11[%c1_356, %c0_357, %c0_358] : memref<2x2x32xf32, #tpu.memory_space<vmem>>, vector<1x2x32xf32>
    %770 = vector.shape_cast %769 : vector<1x2x32xf32> to vector<2x32xf32>
    %771 = vector.extract_strided_slice %768 {offsets = [0, 0], sizes = [2, 32], strides = [1, 1]} : vector<2x128xf32> to vector<2x32xf32>
    %772 = arith.negf %771 : vector<2x32xf32>
    %773 = math.exp %772 : vector<2x32xf32>
    %cst_359 = arith.constant 1.000000e+00 : f32
    %774 = vector.broadcast %cst_359 : f32 to vector<2x32xf32>
    %775 = arith.addf %774, %773 : vector<2x32xf32>
    %776 = arith.divf %774, %775 : vector<2x32xf32>
    %777 = vector.extract_strided_slice %768 {offsets = [0, 32], sizes = [2, 32], strides = [1, 1]} : vector<2x128xf32> to vector<2x32xf32>
    %778 = arith.negf %777 : vector<2x32xf32>
    %779 = math.exp %778 : vector<2x32xf32>
    %cst_360 = arith.constant 1.000000e+00 : f32
    %780 = vector.broadcast %cst_360 : f32 to vector<2x32xf32>
    %781 = arith.addf %780, %779 : vector<2x32xf32>
    %782 = arith.divf %780, %781 : vector<2x32xf32>
    %783 = vector.extract_strided_slice %768 {offsets = [0, 64], sizes = [2, 32], strides = [1, 1]} : vector<2x128xf32> to vector<2x32xf32>
    %784 = math.tanh %783 : vector<2x32xf32>
    %785 = vector.extract_strided_slice %768 {offsets = [0, 96], sizes = [2, 32], strides = [1, 1]} : vector<2x128xf32> to vector<2x32xf32>
    %786 = arith.negf %785 : vector<2x32xf32>
    %787 = math.exp %786 : vector<2x32xf32>
    %cst_361 = arith.constant 1.000000e+00 : f32
    %788 = vector.broadcast %cst_361 : f32 to vector<2x32xf32>
    %789 = arith.addf %788, %787 : vector<2x32xf32>
    %790 = arith.divf %788, %789 : vector<2x32xf32>
    %791 = arith.mulf %782, %770 : vector<2x32xf32>
    %792 = arith.mulf %776, %784 : vector<2x32xf32>
    %793 = arith.addf %791, %792 : vector<2x32xf32>
    %794 = math.tanh %793 : vector<2x32xf32>
    %795 = arith.mulf %790, %794 : vector<2x32xf32>
    %c1_362 = arith.constant 1 : index
    %c0_363 = arith.constant 0 : index
    %c0_364 = arith.constant 0 : index
    %796 = vector.load %arg10[%c1_362, %c0_363, %c0_364] : memref<2x2x32xf32, #tpu.memory_space<vmem>>, vector<1x2x32xf32>
    %797 = vector.shape_cast %796 : vector<1x2x32xf32> to vector<2x32xf32>
    %798 = vector.shape_cast %795 : vector<2x32xf32> to vector<1x2x32xf32>
    tpu.vector_store %arg10[%c1_362, %c0_363, %c0_364], %798 {strides = array<i32>} : memref<2x2x32xf32, #tpu.memory_space<vmem>>, vector<1x2x32xf32>,
    %c1_365 = arith.constant 1 : index
    %c0_366 = arith.constant 0 : index
    %c0_367 = arith.constant 0 : index
    %799 = vector.load %arg11[%c1_365, %c0_366, %c0_367] : memref<2x2x32xf32, #tpu.memory_space<vmem>>, vector<1x2x32xf32>
    %800 = vector.shape_cast %799 : vector<1x2x32xf32> to vector<2x32xf32>
    %801 = vector.shape_cast %793 : vector<2x32xf32> to vector<1x2x32xf32>
    tpu.vector_store %arg11[%c1_365, %c0_366, %c0_367], %801 {strides = array<i32>} : memref<2x2x32xf32, #tpu.memory_space<vmem>>, vector<1x2x32xf32>,
    %802 = arith.truncf %795 : vector<2x32xf32> to vector<2x32xbf16>
    %c2_i32_368 = arith.constant 2 : i32
    %803 = arith.muli %709, %c2_i32_368 : i32
    %c1_369 = arith.constant 1 : index
    %804 = arith.index_cast %803 : i32 to index
    %c0_370 = arith.constant 0 : index
    %805 = vector.load %arg6[%c1_369, %804, %c0_370] : memref<2x16x32xbf16, #tpu.memory_space<vmem>>, vector<1x2x32xbf16>
    %806 = vector.shape_cast %805 : vector<1x2x32xbf16> to vector<2x32xbf16>
    %807 = vector.shape_cast %802 : vector<2x32xbf16> to vector<1x2x32xbf16>
    tpu.vector_store %arg6[%c1_369, %804, %c0_370], %807 {strides = array<i32>} : memref<2x16x32xbf16, #tpu.memory_space<vmem>>, vector<1x2x32xbf16>,
    %c8_i32 = arith.constant 8 : i32
    %c0_371 = arith.constant 0 : index
    %c0_372 = arith.constant 0 : index
    %c0_373 = arith.constant 0 : index
    %808 = vector.load %arg10[%c0_371, %c0_372, %c0_373] : memref<2x2x32xf32, #tpu.memory_space<vmem>>, vector<2x2x32xf32>
    %c0_374 = arith.constant 0 : index
    %c0_375 = arith.constant 0 : index
    %c0_376 = arith.constant 0 : index
    %809 = vector.load %arg7[%c0_374, %c0_375, %c0_376] : memref<2x2x32xf32, #tpu.memory_space<vmem>>, vector<2x2x32xf32>
    tpu.vector_store %arg7[%c0_374, %c0_375, %c0_376], %808 {strides = array<i32>} : memref<2x2x32xf32, #tpu.memory_space<vmem>>, vector<2x2x32xf32>,
    %c0_377 = arith.constant 0 : index
    %c0_378 = arith.constant 0 : index
    %c0_379 = arith.constant 0 : index
    %810 = vector.load %arg11[%c0_377, %c0_378, %c0_379] : memref<2x2x32xf32, #tpu.memory_space<vmem>>, vector<2x2x32xf32>
    %c0_380 = arith.constant 0 : index
    %c0_381 = arith.constant 0 : index
    %c0_382 = arith.constant 0 : index
    %811 = vector.load %arg8[%c0_380, %c0_381, %c0_382] : memref<2x2x32xf32, #tpu.memory_space<vmem>>, vector<2x2x32xf32>
    tpu.vector_store %arg8[%c0_380, %c0_381, %c0_382], %810 {strides = array<i32>} : memref<2x2x32xf32, #tpu.memory_space<vmem>>, vector<2x2x32xf32>,
    return
  }
}

</mosaic_0001>

<llo_original>
// kernel: tpu_custom_call.1
$region0: #{tpu_custom_call.1}
  #allocation0 [shape = 'u32[]', space=smem, size = 0x4, offset = 0x4, fixed_abs, tag = 'smem constant byte address 0x4 - core index']
  #allocation1 [shape = 'u32[72,128]{1,0:T(1,128)}', space=vmem, size = 0x9000, scoped, tag = 'internal scratch']
  #allocation2 [shape = 'f32[16,256]{1,0:T(8,128)}', space=vmem, size = 0x4000, scoped, tag = 'scratch operand']
  #allocation3 [shape = 'f32[2,2,32]{2,1,0:T(2,128)}', space=vmem, size = 0x800, scoped, tag = 'scratch operand']
  #allocation4 [shape = 'f32[2,2,32]{2,1,0:T(2,128)}', space=vmem, size = 0x800, scoped, tag = 'scratch operand']
  %s0 = inlined_call_operand.hbm [shape: bf16[16,32], index: 0, kind: input, shape index: {}]
  %s1 = inlined_call_operand.hbm [shape: f32[2,2,32], index: 1, kind: input, shape index: {}]
  %s2 = inlined_call_operand.hbm [shape: f32[2,2,32], index: 2, kind: input, shape index: {}]
  %s3 = inlined_call_operand.hbm [shape: bf16[32,256], index: 3, kind: input, shape index: {}]
  %s4 = inlined_call_operand.hbm [shape: bf16[2,32,128], index: 4, kind: input, shape index: {}]
  %s5 = inlined_call_operand.vmem [shape: f32[2,1,128], index: 5, kind: input, shape index: {}]
  %s6 = inlined_call_operand.hbm [shape: bf16[2,16,32], index: 6, kind: output, shape index: {0}]
  %s7 = inlined_call_operand.hbm [shape: f32[2,2,32], index: 7, kind: output, shape index: {1}]
  %s8 = inlined_call_operand.hbm [shape: f32[2,2,32], index: 8, kind: output, shape index: {2}]
  %9 = xla_tuple %s6, %s7, %s8
  %s10 = sld [smem:[#allocation0]]
  $region70: #{tpu_custom_call.1} parent=0
    _
  %s12 = ssub.s32 1, %s10
  %s13 = scalar_select 0, %s12, %s10
  $region1: #{tpu_custom_call.1} parent=0
    #allocation5 [shape = 'u8[4096]{0}', space=vmem, size = 0x1000, scoped, tag = 'input window, operand 0, single buffered']
    #allocation6 [shape = 's32[1]{0}', space=sflag, size = 0x4, scoped, tag = 'scoped memory for tpu_custom_call.1']
    #allocation7 [shape = 's32[1]{0}', space=sflag, size = 0x4, scoped, tag = 'scoped memory for tpu_custom_call.1']
    #allocation8 [shape = 'u8[2048]{0}', space=vmem, size = 0x800, scoped, tag = 'input window, operand 1, single buffered']
    #allocation9 [shape = 's32[1]{0}', space=sflag, size = 0x4, scoped, tag = 'scoped memory for tpu_custom_call.1']
    #allocation10 [shape = 'u8[2048]{0}', space=vmem, size = 0x800, scoped, tag = 'input window, operand 2, single buffered']
    #allocation11 [shape = 'u8[16384]{0}', space=vmem, size = 0x4000, scoped, tag = 'input window, operand 3, single buffered']
    #allocation12 [shape = 's32[1]{0}', space=sflag, size = 0x4, scoped, tag = 'scoped memory for tpu_custom_call.1']
    #allocation13 [shape = 'u8[16384]{0}', space=vmem, size = 0x4000, scoped, tag = 'input window, operand 4, single buffered']
    #allocation14 [shape = 'u8[8192]{0}', space=vmem, size = 0x2000, scoped, tag = 'output window, operand 0, single buffered']
    #allocation15 [shape = 'u8[2048]{0}', space=vmem, size = 0x800, scoped, tag = 'output window, operand 1, single buffered']
    #allocation16 [shape = 's32[1]{0}', space=sflag, size = 0x4, scoped, tag = 'scoped memory for tpu_custom_call.1']
    #allocation17 [shape = 'u8[2048]{0}', space=vmem, size = 0x800, scoped, tag = 'output window, operand 2, single buffered']
    %14 = vsyncpa [#allocation6], 0
    %15 = vsyncpa [#allocation9], 0
    %16 = vsyncpa [#allocation12], 0
    %17 = vsyncpa [#allocation7], 0
    %18 = vsyncpa [#allocation16], 0
    // Predicated region
    $region2: #{tpu_custom_call.1} parent=1 // pred_check
      _
    $region3: #{tpu_custom_call.1} parent=1 // pred_check_branch
      %20 = sbr.rel (0) target = $region5
    $region4: #{tpu_custom_call.1} parent=1 // pred_region
      %22 = vsyncadd [#allocation6], 0
      %s23 = sshll.u32 %s0, 4
      %s24 = int_to_ptr.hbm [resolvable:$true] %s23
      %s25 = sshll.u32 [#allocation5], 4
      %s26 = int_to_ptr.vmem [resolvable:$true] %s25
      %31 = dma.hbm_to_vmem [thread:$0]  %s24, 128, %s26, [#allocation6], 64, 64, 4
    $region5: #{tpu_custom_call.1} parent=1 // pred_fallthru
      _
    // Predicated region
    $region6: #{tpu_custom_call.1} parent=1 // pred_check
      _
    $region7: #{tpu_custom_call.1} parent=1 // pred_check_branch
      %33 = sbr.rel (0) target = $region9
    $region8: #{tpu_custom_call.1} parent=1 // pred_region
      %35 = vsyncadd [#allocation9], 0
      %s36 = sshll.u32 %s1, 4
      %s37 = int_to_ptr.hbm [resolvable:$true] %s36
      %s38 = sshll.u32 [#allocation8], 4
      %s39 = int_to_ptr.vmem [resolvable:$true] %s38
      %44 = dma.hbm_to_vmem [thread:$0]  %s37, 64, %s39, [#allocation9], 32, 32, 2
    $region9: #{tpu_custom_call.1} parent=1 // pred_fallthru
      _
    // Predicated region
    $region10: #{tpu_custom_call.1} parent=1 // pred_check
      _
    $region11: #{tpu_custom_call.1} parent=1 // pred_check_branch
      %46 = sbr.rel (0) target = $region13
    $region12: #{tpu_custom_call.1} parent=1 // pred_region
      %48 = vsyncadd [#allocation9], 0
      %s49 = sshll.u32 %s2, 4
      %s50 = int_to_ptr.hbm [resolvable:$true] %s49
      %s51 = sshll.u32 [#allocation10], 4
      %s52 = int_to_ptr.vmem [resolvable:$true] %s51
      %57 = dma.hbm_to_vmem [thread:$0]  %s50, 64, %s52, [#allocation9], 32, 32, 2
    $region13: #{tpu_custom_call.1} parent=1 // pred_fallthru
      _
    // Predicated region
    $region14: #{tpu_custom_call.1} parent=1 // pred_check
      _
    $region15: #{tpu_custom_call.1} parent=1 // pred_check_branch
      %59 = sbr.rel (0) target = $region17
    $region16: #{tpu_custom_call.1} parent=1 // pred_region
      %61 = vsyncadd [#allocation12], 0
      %s62 = sshll.u32 %s3, 4
      %s63 = int_to_ptr.hbm [resolvable:$true] %s62
      %s64 = sshll.u32 [#allocation11], 4
      %s65 = int_to_ptr.vmem [resolvable:$true] %s64
      %70 = dma.hbm_to_vmem [thread:$0]  %s63, 512, %s65, [#allocation12], 128, 128, 8
    $region17: #{tpu_custom_call.1} parent=1 // pred_fallthru
      _
    // Predicated region
    $region18: #{tpu_custom_call.1} parent=1 // pred_check
      _
    $region19: #{tpu_custom_call.1} parent=1 // pred_check_branch
      %72 = sbr.rel (0) target = $region21
    $region20: #{tpu_custom_call.1} parent=1 // pred_region
      %74 = vsyncadd [#allocation12], 0
      %s75 = sshll.u32 %s4, 4
      %s76 = int_to_ptr.hbm [resolvable:$true] %s75
      %s77 = sshll.u32 [#allocation13], 4
      %s78 = int_to_ptr.vmem [resolvable:$true] %s77
      %83 = dma.hbm_to_vmem [thread:$0]  %s76, 512, %s78, [#allocation12], 64, 64, 4
    $region21: #{tpu_custom_call.1} parent=1 // pred_fallthru
      _
    // Predicated region
    $region22: #{tpu_custom_call.1} parent=1 // pred_check
      _
    $region23: #{tpu_custom_call.1} parent=1 // pred_check_branch
      %85 = sbr.rel (0) target = $region25
    $region24: #{tpu_custom_call.1} parent=1 // pred_region
      _
    $region25: #{tpu_custom_call.1} parent=1 // pred_fallthru
      _
    // Predicated region
    $region26: #{tpu_custom_call.1} parent=1 // pred_check
      _
    $region27: #{tpu_custom_call.1} parent=1 // pred_check_branch
      %87 = sbr.rel (0) target = $region29
    $region28: #{tpu_custom_call.1} parent=1 // pred_region
      %89 = dma.done [#allocation6], 128
    $region29: #{tpu_custom_call.1} parent=1 // pred_fallthru
      _
    // Predicated region
    $region30: #{tpu_custom_call.1} parent=1 // pred_check
      _
    $region31: #{tpu_custom_call.1} parent=1 // pred_check_branch
      %91 = sbr.rel (0) target = $region33
    $region32: #{tpu_custom_call.1} parent=1 // pred_region
      %93 = dma.done [#allocation9], 64
    $region33: #{tpu_custom_call.1} parent=1 // pred_fallthru
      _
    // Predicated region
    $region34: #{tpu_custom_call.1} parent=1 // pred_check
      _
    $region35: #{tpu_custom_call.1} parent=1 // pred_check_branch
      %95 = sbr.rel (0) target = $region37
    $region36: #{tpu_custom_call.1} parent=1 // pred_region
      %97 = dma.done [#allocation9], 64
    $region37: #{tpu_custom_call.1} parent=1 // pred_fallthru
      _
    // Predicated region
    $region38: #{tpu_custom_call.1} parent=1 // pred_check
      _
    $region39: #{tpu_custom_call.1} parent=1 // pred_check_branch
      %99 = sbr.rel (0) target = $region41
    $region40: #{tpu_custom_call.1} parent=1 // pred_region
      %101 = dma.done [#allocation12], 512
    $region41: #{tpu_custom_call.1} parent=1 // pred_fallthru
      _
    // Predicated region
    $region42: #{tpu_custom_call.1} parent=1 // pred_check
      _
    $region43: #{tpu_custom_call.1} parent=1 // pred_check_branch
      %103 = sbr.rel (0) target = $region45
    $region44: #{tpu_custom_call.1} parent=1 // pred_region
      %105 = dma.done [#allocation12], 512
    $region45: #{tpu_custom_call.1} parent=1 // pred_fallthru
      _
    %v107 = vld [vmem:[#allocation5] sm:$0xf]
    %v108 = vld [vmem:[#allocation5 + $0x4] sm:$0xf]
    %v109 = vld [vmem:[#allocation11] sm:$0xff]
    %v110 = vld [vmem:[#allocation11 + $0x8] sm:$0xff]
    %v111 = vld [vmem:[#allocation11 + $0x10] sm:$0xff]
    %v112 = vld [vmem:[#allocation11 + $0x18] sm:$0xff]
    %v115 = vunpack.c.l.b16 %v107
    %v116 = vunpack.c.l.b16 %v108
    %v117 = vpack.c.b16 %v116, %v115
    %v122 = vunpack.c.l.b16 %v109
    %v123 = vunpack.c.h.b16 %v109
    %v124 = vunpack.c.l.b16 %v110
    %v125 = vunpack.c.h.b16 %v110
    %v126 = vunpack.c.l.b16 %v111
    %v127 = vunpack.c.h.b16 %v111
    %v128 = vunpack.c.l.b16 %v112
    %v129 = vunpack.c.h.b16 %v112
    %v130 = vpack.c.b16 %v124, %v122
    %v131 = vpack.c.b16 %v125, %v123
    %v132 = vpack.c.b16 %v128, %v126
    %v133 = vpack.c.b16 %v129, %v127
    %vm138 = vcmask 261120
    %v140 = vsel %vm138, %v117, 0
    %142 = vmatpush.bf16.msra.mxu0 0
    %143 = vmatpush.bf16.msra.mxu0 0
    %144 = vmatpush.bf16.msra.mxu0 0
    %145 = vmatpush.bf16.msra.mxu0 0
    %146 = vmatpush.bf16.msra.mxu0 0
    %147 = vmatpush.bf16.msra.mxu0 0
    %148 = vmatpush.bf16.msra.mxu0 %v132
    %149 = vmatpush.bf16.msra.mxu0 %v130
    %150 = vmatmul.bf16.gmra.mxu0 %v140
    %v151 = vpop.f32.mrf.mxu0
    %v152 = vadd.f32 0.0, %v151
    %v153 = vpop.f32.mrf.mxu0
    %v154 = vadd.f32 0.0, %v153
    %155 = vdwg.mxu0
    %156 = vmatpush.bf16.msra.mxu0 0
    %157 = vmatpush.bf16.msra.mxu0 0
    %158 = vmatpush.bf16.msra.mxu0 0
    %159 = vmatpush.bf16.msra.mxu0 0
    %160 = vmatpush.bf16.msra.mxu0 0
    %161 = vmatpush.bf16.msra.mxu0 0
    %162 = vmatpush.bf16.msra.mxu0 %v133
    %163 = vmatpush.bf16.msra.mxu0 %v131
    %164 = vmatmul.bf16.gmra.mxu0 %v140
    %v165 = vpop.f32.mrf.mxu0
    %v166 = vadd.f32 0.0, %v165
    %v167 = vpop.f32.mrf.mxu0
    %v168 = vadd.f32 0.0, %v167
    %169 = vdwg.mxu0
    %170 = vst [vmem:[#allocation2] sm:$0xff] %v152
    %171 = vst [vmem:[#allocation2 + $0x8] sm:$0xff] %v166
    %172 = vst [vmem:[#allocation2 + $0x10] sm:$0xff] %v154
    %173 = vst [vmem:[#allocation2 + $0x18] sm:$0xff] %v168
    %v174 = vld [vmem:[#allocation8] sm:$0x3]
    %v175 = vld [vmem:[#allocation8 + $0x2] sm:$0x3]
    %vm176 = vcmask 254976
    %177 = vst.msk [vmem:[#allocation3] sm:$0x3] %vm176, %v174
    %178 = vst.msk [vmem:[#allocation3 + $0x2] sm:$0x3] %vm176, %v175
    %v179 = vld [vmem:[#allocation10] sm:$0x3]
    %v180 = vld [vmem:[#allocation10 + $0x2] sm:$0x3]
    %181 = vst.msk [vmem:[#allocation4] sm:$0x3] %vm176, %v179
    %182 = vst.msk [vmem:[#allocation4 + $0x2] sm:$0x3] %vm176, %v180
    %v183 = vld [vmem:[#allocation13] sm:$0xf]
    %v184 = vld [vmem:[#allocation13 + $0x4] sm:$0xf]
    %v185 = vld [vmem:[#allocation13 + $0x8] sm:$0xf]
    %v186 = vld [vmem:[#allocation13 + $0xc] sm:$0xf]
    %s187 = scalar_lea.vmem [#allocation13], 16
    %v188 = vld [vmem:[%s187] sm:$0xf]
    %v189 = vld [vmem:[%s187 + $0x4] sm:$0xf]
    %v190 = vld [vmem:[%s187 + $0x8] sm:$0xf]
    %v191 = vld [vmem:[%s187 + $0xc] sm:$0xf]
    %v192 = vld [vmem:[%s5] sm:$0x1]
    %s193 = scalar_lea.vmem %s5, 1
    %v194 = vld [vmem:[%s193] sm:$0x1]
    %v195 = vld [vmem:[#allocation2] sm:$0x3]
    %v196 = vld [vmem:[#allocation3] sm:$0x3]
    %v197 = vpack.c.bf16 %v196, %v196
    %v202 = vunpack.c.l.b16 %v183
    %v203 = vunpack.c.l.b16 %v184
    %v204 = vunpack.c.l.b16 %v185
    %v205 = vunpack.c.l.b16 %v186
    %v206 = vpack.c.b16 %v203, %v202
    %v207 = vpack.c.b16 %v205, %v204
    %v211 = vsel %vm138, %v197, 0
    %213 = vmatpush.bf16.msra.mxu0 0
    %214 = vmatpush.bf16.msra.mxu0 0
    %215 = vmatpush.bf16.msra.mxu0 0
    %216 = vmatpush.bf16.msra.mxu0 0
    %217 = vmatpush.bf16.msra.mxu0 0
    %218 = vmatpush.bf16.msra.mxu0 0
    %219 = vmatpush.bf16.msra.mxu0 %v207
    %220 = vmatpush.bf16.msra.mxu0 %v206
    %221 = vmatmul.bf16.gmra.mxu0 %v211
    %v222 = vpop.f32.mrf.mxu0
    %v223 = vadd.f32 0.0, %v222
    %v224 = vpop.f32.mrf.mxu0
    %225 = vdwg.mxu0
    %v226 = vadd.f32 %v195, %v223
    %v228 = vperm.slane %v192, 0
    %v230 = vadd.f32 %v226, %v228
    %v231 = vld [vmem:[#allocation4] sm:$0x3]
    %v232 = vxor.u32 %v230, 2147483648
    %v233 = vmul.f32 %v232, 1.442695
    %v234 = vpow.pop %v233
    %v235 = vadd.f32 %v234, 1.0
    %v236 = vrcp.pop %v235
    %v237 = vmul.f32 %v235, %v236
    %v238 = vsub.f32 1.0, %v237
    %v239 = vmul.f32 %v236, %v238
    %v240 = vadd.f32 %v236, %v239
    %vm241 = vweird.f32 %v235
    %vm242 = vweird.f32 %v236
    %vm243 = vmor %vm241, %vm242
    %v244 = vsel %vm243, %v236, %v240
    %v245 = vand.u32 2147483647, %v235
    %vm246 = vcmp.eq.f32.partialorder %v245, 8.507059e+37
    %v247 = vand.u32 %v235, 2147483648
    %v248 = vor.u32 1.1754944e-38, %v247
    %v249 = vsel %vm246, %v248, %v244
    %v250 = vmul.f32 1.0, %v249
    %v251 = vtanh.pop %v230
    %253 = vrot.lane.b32.xlu0 %v231, 32
    %v254 = vpop.permute.xlu0 %253
    %v256 = vmul.f32 %v250, %v254
    %258 = vrot.lane.b32.xlu0 %v251, 64
    %v259 = vpop.permute.xlu0 %258
    %v261 = vmul.f32 %v250, %v259
    %263 = vrot.lane.b32.xlu0 %v261, 32
    %v264 = vpop.permute.xlu0 %263
    %v266 = vadd.f32 %v256, %v264
    %v267 = vtanh.pop %v266
    %269 = vrot.lane.b32.xlu0 %v267, 64
    %v270 = vpop.permute.xlu0 %269
    %v272 = vmul.f32 %v250, %v270
    %274 = vrot.lane.b32.xlu0 %v272, 32
    %v275 = vpop.permute.xlu0 %274
    %277 = vst.msk [vmem:[#allocation3] sm:$0x3] %vm176, %v275
    %279 = vrot.lane.b32.xlu0 %v266, 96
    %v280 = vpop.permute.xlu0 %279
    %282 = vst.msk [vmem:[#allocation4] sm:$0x3] %vm176, %v280
    %v283 = vpack.c.bf16 %v272, %v272
    %285 = vrot.lane.b32.xlu0 %v283, 32
    %v286 = vpop.permute.xlu0 %285
    %vm288 = vcmask 253952
    %289 = vst.msk [vmem:[#allocation14] sm:$0x1] %vm288, %v286
    %v290 = vld [vmem:[#allocation2 + $0x18] sm:$0xc0]
    %s291 = scalar_lea.vmem [#allocation3], 2
    %v292 = vld [vmem:[%s291] sm:$0x3]
    %v293 = vpack.c.bf16 %v292, %v292
    %v298 = vunpack.c.l.b16 %v188
    %v299 = vunpack.c.l.b16 %v189
    %v300 = vunpack.c.l.b16 %v190
    %v301 = vunpack.c.l.b16 %v191
    %v302 = vpack.c.b16 %v299, %v298
    %v303 = vpack.c.b16 %v301, %v300
    %v307 = vsel %vm138, %v293, 0
    %309 = vmatpush.bf16.msra.mxu0 0
    %310 = vmatpush.bf16.msra.mxu0 0
    %311 = vmatpush.bf16.msra.mxu0 0
    %312 = vmatpush.bf16.msra.mxu0 0
    %313 = vmatpush.bf16.msra.mxu0 0
    %314 = vmatpush.bf16.msra.mxu0 0
    %315 = vmatpush.bf16.msra.mxu0 %v303
    %316 = vmatpush.bf16.msra.mxu0 %v302
    %317 = vmatmul.bf16.gmra.mxu0 %v307
    %v318 = vpop.f32.mrf.mxu0
    %v319 = vadd.f32 0.0, %v318
    %v320 = vpop.f32.mrf.mxu0
    %321 = vdwg.mxu0
    %v323 = vrot.slane %v319, 2
    %v325 = vadd.f32 %v290, %v323
    %v327 = vperm.slane %v194, 0
    %v329 = vadd.f32 %v325, %v327
    %s330 = scalar_lea.vmem [#allocation4], 2
    %v331 = vld [vmem:[%s330] sm:$0x3]
    %v332 = vxor.u32 %v329, 2147483648
    %v333 = vmul.f32 %v332, 1.442695
    %v334 = vpow.pop %v333
    %v335 = vadd.f32 %v334, 1.0
    %v336 = vrcp.pop %v335
    %v337 = vmul.f32 %v335, %v336
    %v338 = vsub.f32 1.0, %v337
    %v339 = vmul.f32 %v336, %v338
    %v340 = vadd.f32 %v336, %v339
    %vm341 = vweird.f32 %v335
    %vm342 = vweird.f32 %v336
    %vm343 = vmor %vm341, %vm342
    %v344 = vsel %vm343, %v336, %v340
    %v345 = vand.u32 2147483647, %v335
    %vm346 = vcmp.eq.f32.partialorder %v345, 8.507059e+37
    %v347 = vand.u32 %v335, 2147483648
    %v348 = vor.u32 1.1754944e-38, %v347
    %v349 = vsel %vm346, %v348, %v344
    %v350 = vmul.f32 1.0, %v349
    %v351 = vtanh.pop %v329
    %v353 = vrot.slane %v331, 2
    %354 = vrot.lane.b32.xlu0 %v353, 32
    %v355 = vpop.permute.xlu0 %354
    %v357 = vmul.f32 %v350, %v355
    %359 = vrot.lane.b32.xlu0 %v351, 64
    %v360 = vpop.permute.xlu0 %359
    %v362 = vmul.f32 %v350, %v360
    %364 = vrot.lane.b32.xlu0 %v362, 32
    %v365 = vpop.permute.xlu0 %364
    %v367 = vadd.f32 %v357, %v365
    %v368 = vtanh.pop %v367
    %370 = vrot.lane.b32.xlu0 %v368, 64
    %v371 = vpop.permute.xlu0 %370
    %v373 = vmul.f32 %v350, %v371
    %375 = vrot.lane.b32.xlu0 %v373, 32
    %v376 = vpop.permute.xlu0 %375
    %vm378 = vcmask 261126
    %379 = vst.msk [vmem:[%s291 - $0x6] sm:$0xc0] %vm378, %v376
    %381 = vrot.lane.b32.xlu0 %v367, 96
    %v382 = vpop.permute.xlu0 %381
    %384 = vst.msk [vmem:[%s330 - $0x6] sm:$0xc0] %vm378, %v382
    %v385 = vpack.c.bf16 %v373, %v373
    %387 = vrot.lane.b32.xlu0 %v385, 32
    %v388 = vpop.permute.xlu0 %387
    %s390 = scalar_lea.vmem [#allocation14], 8
    %vm391 = vcmask 257027
    %392 = vst.msk [vmem:[%s390 + $0x4] sm:$0x8] %vm391, %v388
    %v393 = vld [vmem:[#allocation2] sm:$0xc]
    %v394 = vld [vmem:[#allocation3] sm:$0x3]
    %v395 = vpack.c.bf16 %v394, %v394
    %v397 = vsel %vm138, %v395, 0
    %399 = vmatpush.bf16.msra.mxu0 0
    %400 = vmatpush.bf16.msra.mxu0 0
    %401 = vmatpush.bf16.msra.mxu0 0
    %402 = vmatpush.bf16.msra.mxu0 0
    %403 = vmatpush.bf16.msra.mxu0 0
    %404 = vmatpush.bf16.msra.mxu0 0
    %405 = vmatpush.bf16.msra.mxu0 %v207
    %406 = vmatpush.bf16.msra.mxu0 %v206
    %407 = vmatmul.bf16.gmra.mxu0 %v397
    %v408 = vpop.f32.mrf.mxu0
    %v409 = vadd.f32 0.0, %v408
    %v410 = vpop.f32.mrf.mxu0
    %411 = vdwg.mxu0
    %v413 = vrot.slane %v409, 6
    %v415 = vadd.f32 %v393, %v413
    %v416 = vadd.f32 %v415, %v228
    %v417 = vld [vmem:[#allocation4] sm:$0x3]
    %v418 = vxor.u32 %v416, 2147483648
    %v419 = vmul.f32 %v418, 1.442695
    %v420 = vpow.pop %v419
    %v421 = vadd.f32 %v420, 1.0
    %v422 = vrcp.pop %v421
    %v423 = vmul.f32 %v421, %v422
    %v424 = vsub.f32 1.0, %v423
    %v425 = vmul.f32 %v422, %v424
    %v426 = vadd.f32 %v422, %v425
    %vm427 = vweird.f32 %v421
    %vm428 = vweird.f32 %v422
    %vm429 = vmor %vm427, %vm428
    %v430 = vsel %vm429, %v422, %v426
    %v431 = vand.u32 2147483647, %v421
    %vm432 = vcmp.eq.f32.partialorder %v431, 8.507059e+37
    %v433 = vand.u32 %v421, 2147483648
    %v434 = vor.u32 1.1754944e-38, %v433
    %v435 = vsel %vm432, %v434, %v430
    %v436 = vmul.f32 1.0, %v435
    %v437 = vtanh.pop %v416
    %v439 = vrot.slane %v417, 6
    %440 = vrot.lane.b32.xlu0 %v439, 32
    %v441 = vpop.permute.xlu0 %440
    %v443 = vmul.f32 %v436, %v441
    %445 = vrot.lane.b32.xlu0 %v437, 64
    %v446 = vpop.permute.xlu0 %445
    %v448 = vmul.f32 %v436, %v446
    %450 = vrot.lane.b32.xlu0 %v448, 32
    %v451 = vpop.permute.xlu0 %450
    %v453 = vadd.f32 %v443, %v451
    %v454 = vtanh.pop %v453
    %456 = vrot.lane.b32.xlu0 %v454, 64
    %v457 = vpop.permute.xlu0 %456
    %v459 = vmul.f32 %v436, %v457
    %461 = vrot.lane.b32.xlu0 %v459, 32
    %v462 = vpop.permute.xlu0 %461
    %vm464 = vcmask 257026
    %465 = vst.msk [vmem:[#allocation3 - $0x2] sm:$0xc] %vm464, %v462
    %467 = vrot.lane.b32.xlu0 %v453, 96
    %v468 = vpop.permute.xlu0 %467
    %470 = vst.msk [vmem:[#allocation4 - $0x2] sm:$0xc] %vm464, %v468
    %v471 = vpack.c.bf16 %v459, %v459
    %473 = vrot.lane.b32.xlu0 %v471, 32
    %v474 = vpop.permute.xlu0 %473
    %vm476 = vcmask 254977
    %477 = vst.msk [vmem:[#allocation14] sm:$0x2] %vm476, %v474
    %v478 = vld [vmem:[#allocation2 + $0x18] sm:$0x30]
    %v479 = vld [vmem:[%s291] sm:$0x3]
    %v480 = vpack.c.bf16 %v479, %v479
    %v482 = vsel %vm138, %v480, 0
    %484 = vmatpush.bf16.msra.mxu0 0
    %485 = vmatpush.bf16.msra.mxu0 0
    %486 = vmatpush.bf16.msra.mxu0 0
    %487 = vmatpush.bf16.msra.mxu0 0
    %488 = vmatpush.bf16.msra.mxu0 0
    %489 = vmatpush.bf16.msra.mxu0 0
    %490 = vmatpush.bf16.msra.mxu0 %v303
    %491 = vmatpush.bf16.msra.mxu0 %v302
    %492 = vmatmul.bf16.gmra.mxu0 %v482
    %v493 = vpop.f32.mrf.mxu0
    %v494 = vadd.f32 0.0, %v493
    %v495 = vpop.f32.mrf.mxu0
    %496 = vdwg.mxu0
    %v498 = vrot.slane %v494, 4
    %v500 = vadd.f32 %v478, %v498
    %v501 = vadd.f32 %v500, %v327
    %v502 = vld [vmem:[%s330] sm:$0x3]
    %v503 = vxor.u32 %v501, 2147483648
    %v504 = vmul.f32 %v503, 1.442695
    %v505 = vpow.pop %v504
    %v506 = vadd.f32 %v505, 1.0
    %v507 = vrcp.pop %v506
    %v508 = vmul.f32 %v506, %v507
    %v509 = vsub.f32 1.0, %v508
    %v510 = vmul.f32 %v507, %v509
    %v511 = vadd.f32 %v507, %v510
    %vm512 = vweird.f32 %v506
    %vm513 = vweird.f32 %v507
    %vm514 = vmor %vm512, %vm513
    %v515 = vsel %vm514, %v507, %v511
    %v516 = vand.u32 2147483647, %v506
    %vm517 = vcmp.eq.f32.partialorder %v516, 8.507059e+37
    %v518 = vand.u32 %v506, 2147483648
    %v519 = vor.u32 1.1754944e-38, %v518
    %v520 = vsel %vm517, %v519, %v515
    %v521 = vmul.f32 1.0, %v520
    %v522 = vtanh.pop %v501
    %v524 = vrot.slane %v502, 4
    %525 = vrot.lane.b32.xlu0 %v524, 32
    %v526 = vpop.permute.xlu0 %525
    %v528 = vmul.f32 %v521, %v526
    %530 = vrot.lane.b32.xlu0 %v522, 64
    %v531 = vpop.permute.xlu0 %530
    %v533 = vmul.f32 %v521, %v531
    %535 = vrot.lane.b32.xlu0 %v533, 32
    %v536 = vpop.permute.xlu0 %535
    %v538 = vadd.f32 %v528, %v536
    %v539 = vtanh.pop %v538
    %541 = vrot.lane.b32.xlu0 %v539, 64
    %v542 = vpop.permute.xlu0 %541
    %v544 = vmul.f32 %v521, %v542
    %546 = vrot.lane.b32.xlu0 %v544, 32
    %v547 = vpop.permute.xlu0 %546
    %vm549 = vcmask 259076
    %550 = vst.msk [vmem:[%s291 - $0x4] sm:$0x30] %vm549, %v547
    %552 = vrot.lane.b32.xlu0 %v538, 96
    %v553 = vpop.permute.xlu0 %552
    %555 = vst.msk [vmem:[%s330 - $0x4] sm:$0x30] %vm549, %v553
    %v556 = vpack.c.bf16 %v544, %v544
    %558 = vrot.lane.b32.xlu0 %v556, 32
    %v559 = vpop.permute.xlu0 %558
    %vm561 = vcmask 256002
    %562 = vst.msk [vmem:[%s390 + $0x4] sm:$0x4] %vm561, %v559
    %v563 = vld [vmem:[#allocation2] sm:$0x30]
    %v564 = vld [vmem:[#allocation3] sm:$0x3]
    %v565 = vpack.c.bf16 %v564, %v564
    %v567 = vsel %vm138, %v565, 0
    %569 = vmatpush.bf16.msra.mxu0 0
    %570 = vmatpush.bf16.msra.mxu0 0
    %571 = vmatpush.bf16.msra.mxu0 0
    %572 = vmatpush.bf16.msra.mxu0 0
    %573 = vmatpush.bf16.msra.mxu0 0
    %574 = vmatpush.bf16.msra.mxu0 0
    %575 = vmatpush.bf16.msra.mxu0 %v207
    %576 = vmatpush.bf16.msra.mxu0 %v206
    %577 = vmatmul.bf16.gmra.mxu0 %v567
    %v578 = vpop.f32.mrf.mxu0
    %v579 = vadd.f32 0.0, %v578
    %v580 = vpop.f32.mrf.mxu0
    %581 = vdwg.mxu0
    %v583 = vrot.slane %v579, 4
    %v585 = vadd.f32 %v563, %v583
    %v586 = vadd.f32 %v585, %v228
    %v587 = vld [vmem:[#allocation4] sm:$0x3]
    %v588 = vxor.u32 %v586, 2147483648
    %v589 = vmul.f32 %v588, 1.442695
    %v590 = vpow.pop %v589
    %v591 = vadd.f32 %v590, 1.0
    %v592 = vrcp.pop %v591
    %v593 = vmul.f32 %v591, %v592
    %v594 = vsub.f32 1.0, %v593
    %v595 = vmul.f32 %v592, %v594
    %v596 = vadd.f32 %v592, %v595
    %vm597 = vweird.f32 %v591
    %vm598 = vweird.f32 %v592
    %vm599 = vmor %vm597, %vm598
    %v600 = vsel %vm599, %v592, %v596
    %v601 = vand.u32 2147483647, %v591
    %vm602 = vcmp.eq.f32.partialorder %v601, 8.507059e+37
    %v603 = vand.u32 %v591, 2147483648
    %v604 = vor.u32 1.1754944e-38, %v603
    %v605 = vsel %vm602, %v604, %v600
    %v606 = vmul.f32 1.0, %v605
    %v607 = vtanh.pop %v586
    %v609 = vrot.slane %v587, 4
    %610 = vrot.lane.b32.xlu0 %v609, 32
    %v611 = vpop.permute.xlu0 %610
    %v613 = vmul.f32 %v606, %v611
    %615 = vrot.lane.b32.xlu0 %v607, 64
    %v616 = vpop.permute.xlu0 %615
    %v618 = vmul.f32 %v606, %v616
    %620 = vrot.lane.b32.xlu0 %v618, 32
    %v621 = vpop.permute.xlu0 %620
    %v623 = vadd.f32 %v613, %v621
    %v624 = vtanh.pop %v623
    %626 = vrot.lane.b32.xlu0 %v624, 64
    %v627 = vpop.permute.xlu0 %626
    %v629 = vmul.f32 %v606, %v627
    %631 = vrot.lane.b32.xlu0 %v629, 32
    %v632 = vpop.permute.xlu0 %631
    %634 = vst.msk [vmem:[#allocation3 - $0x4] sm:$0x30] %vm549, %v632
    %636 = vrot.lane.b32.xlu0 %v623, 96
    %v637 = vpop.permute.xlu0 %636
    %639 = vst.msk [vmem:[#allocation4 - $0x4] sm:$0x30] %vm549, %v637
    %v640 = vpack.c.bf16 %v629, %v629
    %642 = vrot.lane.b32.xlu0 %v640, 32
    %v643 = vpop.permute.xlu0 %642
    %645 = vst.msk [vmem:[#allocation14] sm:$0x4] %vm561, %v643
    %v646 = vld [vmem:[#allocation2 + $0x18] sm:$0xc]
    %v647 = vld [vmem:[%s291] sm:$0x3]
    %v648 = vpack.c.bf16 %v647, %v647
    %v650 = vsel %vm138, %v648, 0
    %652 = vmatpush.bf16.msra.mxu0 0
    %653 = vmatpush.bf16.msra.mxu0 0
    %654 = vmatpush.bf16.msra.mxu0 0
    %655 = vmatpush.bf16.msra.mxu0 0
    %656 = vmatpush.bf16.msra.mxu0 0
    %657 = vmatpush.bf16.msra.mxu0 0
    %658 = vmatpush.bf16.msra.mxu0 %v303
    %659 = vmatpush.bf16.msra.mxu0 %v302
    %660 = vmatmul.bf16.gmra.mxu0 %v650
    %v661 = vpop.f32.mrf.mxu0
    %v662 = vadd.f32 0.0, %v661
    %v663 = vpop.f32.mrf.mxu0
    %664 = vdwg.mxu0
    %v666 = vrot.slane %v662, 6
    %v668 = vadd.f32 %v646, %v666
    %v669 = vadd.f32 %v668, %v327
    %v670 = vld [vmem:[%s330] sm:$0x3]
    %v671 = vxor.u32 %v669, 2147483648
    %v672 = vmul.f32 %v671, 1.442695
    %v673 = vpow.pop %v672
    %v674 = vadd.f32 %v673, 1.0
    %v675 = vrcp.pop %v674
    %v676 = vmul.f32 %v674, %v675
    %v677 = vsub.f32 1.0, %v676
    %v678 = vmul.f32 %v675, %v677
    %v679 = vadd.f32 %v675, %v678
    %vm680 = vweird.f32 %v674
    %vm681 = vweird.f32 %v675
    %vm682 = vmor %vm680, %vm681
    %v683 = vsel %vm682, %v675, %v679
    %v684 = vand.u32 2147483647, %v674
    %vm685 = vcmp.eq.f32.partialorder %v684, 8.507059e+37
    %v686 = vand.u32 %v674, 2147483648
    %v687 = vor.u32 1.1754944e-38, %v686
    %v688 = vsel %vm685, %v687, %v683
    %v689 = vmul.f32 1.0, %v688
    %v690 = vtanh.pop %v669
    %v692 = vrot.slane %v670, 6
    %693 = vrot.lane.b32.xlu0 %v692, 32
    %v694 = vpop.permute.xlu0 %693
    %v696 = vmul.f32 %v689, %v694
    %698 = vrot.lane.b32.xlu0 %v690, 64
    %v699 = vpop.permute.xlu0 %698
    %v701 = vmul.f32 %v689, %v699
    %703 = vrot.lane.b32.xlu0 %v701, 32
    %v704 = vpop.permute.xlu0 %703
    %v706 = vadd.f32 %v696, %v704
    %v707 = vtanh.pop %v706
    %709 = vrot.lane.b32.xlu0 %v707, 64
    %v710 = vpop.permute.xlu0 %709
    %v712 = vmul.f32 %v689, %v710
    %714 = vrot.lane.b32.xlu0 %v712, 32
    %v715 = vpop.permute.xlu0 %714
    %717 = vst.msk [vmem:[%s291 - $0x2] sm:$0xc] %vm464, %v715
    %719 = vrot.lane.b32.xlu0 %v706, 96
    %v720 = vpop.permute.xlu0 %719
    %722 = vst.msk [vmem:[%s330 - $0x2] sm:$0xc] %vm464, %v720
    %v723 = vpack.c.bf16 %v712, %v712
    %725 = vrot.lane.b32.xlu0 %v723, 32
    %v726 = vpop.permute.xlu0 %725
    %728 = vst.msk [vmem:[%s390 + $0x4] sm:$0x2] %vm476, %v726
    %v729 = vld [vmem:[#allocation2] sm:$0xc0]
    %v730 = vld [vmem:[#allocation3] sm:$0x3]
    %v731 = vpack.c.bf16 %v730, %v730
    %v733 = vsel %vm138, %v731, 0
    %735 = vmatpush.bf16.msra.mxu0 0
    %736 = vmatpush.bf16.msra.mxu0 0
    %737 = vmatpush.bf16.msra.mxu0 0
    %738 = vmatpush.bf16.msra.mxu0 0
    %739 = vmatpush.bf16.msra.mxu0 0
    %740 = vmatpush.bf16.msra.mxu0 0
    %741 = vmatpush.bf16.msra.mxu0 %v207
    %742 = vmatpush.bf16.msra.mxu0 %v206
    %743 = vmatmul.bf16.gmra.mxu0 %v733
    %v744 = vpop.f32.mrf.mxu0
    %v745 = vadd.f32 0.0, %v744
    %v746 = vpop.f32.mrf.mxu0
    %747 = vdwg.mxu0
    %v749 = vrot.slane %v745, 2
    %v751 = vadd.f32 %v729, %v749
    %v752 = vadd.f32 %v751, %v228
    %v753 = vld [vmem:[#allocation4] sm:$0x3]
    %v754 = vxor.u32 %v752, 2147483648
    %v755 = vmul.f32 %v754, 1.442695
    %v756 = vpow.pop %v755
    %v757 = vadd.f32 %v756, 1.0
    %v758 = vrcp.pop %v757
    %v759 = vmul.f32 %v757, %v758
    %v760 = vsub.f32 1.0, %v759
    %v761 = vmul.f32 %v758, %v760
    %v762 = vadd.f32 %v758, %v761
    %vm763 = vweird.f32 %v757
    %vm764 = vweird.f32 %v758
    %vm765 = vmor %vm763, %vm764
    %v766 = vsel %vm765, %v758, %v762
    %v767 = vand.u32 2147483647, %v757
    %vm768 = vcmp.eq.f32.partialorder %v767, 8.507059e+37
    %v769 = vand.u32 %v757, 2147483648
    %v770 = vor.u32 1.1754944e-38, %v769
    %v771 = vsel %vm768, %v770, %v766
    %v772 = vmul.f32 1.0, %v771
    %v773 = vtanh.pop %v752
    %v775 = vrot.slane %v753, 2
    %776 = vrot.lane.b32.xlu0 %v775, 32
    %v777 = vpop.permute.xlu0 %776
    %v779 = vmul.f32 %v772, %v777
    %781 = vrot.lane.b32.xlu0 %v773, 64
    %v782 = vpop.permute.xlu0 %781
    %v784 = vmul.f32 %v772, %v782
    %786 = vrot.lane.b32.xlu0 %v784, 32
    %v787 = vpop.permute.xlu0 %786
    %v789 = vadd.f32 %v779, %v787
    %v790 = vtanh.pop %v789
    %792 = vrot.lane.b32.xlu0 %v790, 64
    %v793 = vpop.permute.xlu0 %792
    %v795 = vmul.f32 %v772, %v793
    %797 = vrot.lane.b32.xlu0 %v795, 32
    %v798 = vpop.permute.xlu0 %797
    %800 = vst.msk [vmem:[#allocation3 - $0x6] sm:$0xc0] %vm378, %v798
    %802 = vrot.lane.b32.xlu0 %v789, 96
    %v803 = vpop.permute.xlu0 %802
    %805 = vst.msk [vmem:[#allocation4 - $0x6] sm:$0xc0] %vm378, %v803
    %v806 = vpack.c.bf16 %v795, %v795
    %808 = vrot.lane.b32.xlu0 %v806, 32
    %v809 = vpop.permute.xlu0 %808
    %811 = vst.msk [vmem:[#allocation14] sm:$0x8] %vm391, %v809
    %v812 = vld [vmem:[#allocation2 + $0x18] sm:$0x3]
    %v813 = vld [vmem:[%s291] sm:$0x3]
    %v814 = vpack.c.bf16 %v813, %v813
    %v816 = vsel %vm138, %v814, 0
    %818 = vmatpush.bf16.msra.mxu0 0
    %819 = vmatpush.bf16.msra.mxu0 0
    %820 = vmatpush.bf16.msra.mxu0 0
    %821 = vmatpush.bf16.msra.mxu0 0
    %822 = vmatpush.bf16.msra.mxu0 0
    %823 = vmatpush.bf16.msra.mxu0 0
    %824 = vmatpush.bf16.msra.mxu0 %v303
    %825 = vmatpush.bf16.msra.mxu0 %v302
    %826 = vmatmul.bf16.gmra.mxu0 %v816
    %v827 = vpop.f32.mrf.mxu0
    %v828 = vadd.f32 0.0, %v827
    %v829 = vpop.f32.mrf.mxu0
    %830 = vdwg.mxu0
    %v831 = vadd.f32 %v812, %v828
    %v832 = vadd.f32 %v831, %v327
    %v833 = vld [vmem:[%s330] sm:$0x3]
    %v834 = vxor.u32 %v832, 2147483648
    %v835 = vmul.f32 %v834, 1.442695
    %v836 = vpow.pop %v835
    %v837 = vadd.f32 %v836, 1.0
    %v838 = vrcp.pop %v837
    %v839 = vmul.f32 %v837, %v838
    %v840 = vsub.f32 1.0, %v839
    %v841 = vmul.f32 %v838, %v840
    %v842 = vadd.f32 %v838, %v841
    %vm843 = vweird.f32 %v837
    %vm844 = vweird.f32 %v838
    %vm845 = vmor %vm843, %vm844
    %v846 = vsel %vm845, %v838, %v842
    %v847 = vand.u32 2147483647, %v837
    %vm848 = vcmp.eq.f32.partialorder %v847, 8.507059e+37
    %v849 = vand.u32 %v837, 2147483648
    %v850 = vor.u32 1.1754944e-38, %v849
    %v851 = vsel %vm848, %v850, %v846
    %v852 = vmul.f32 1.0, %v851
    %v853 = vtanh.pop %v832
    %855 = vrot.lane.b32.xlu0 %v833, 32
    %v856 = vpop.permute.xlu0 %855
    %v858 = vmul.f32 %v852, %v856
    %860 = vrot.lane.b32.xlu0 %v853, 64
    %v861 = vpop.permute.xlu0 %860
    %v863 = vmul.f32 %v852, %v861
    %865 = vrot.lane.b32.xlu0 %v863, 32
    %v866 = vpop.permute.xlu0 %865
    %v868 = vadd.f32 %v858, %v866
    %v869 = vtanh.pop %v868
    %871 = vrot.lane.b32.xlu0 %v869, 64
    %v872 = vpop.permute.xlu0 %871
    %v874 = vmul.f32 %v852, %v872
    %876 = vrot.lane.b32.xlu0 %v874, 32
    %v877 = vpop.permute.xlu0 %876
    %879 = vst.msk [vmem:[%s291] sm:$0x3] %vm176, %v877
    %881 = vrot.lane.b32.xlu0 %v868, 96
    %v882 = vpop.permute.xlu0 %881
    %884 = vst.msk [vmem:[%s330] sm:$0x3] %vm176, %v882
    %v885 = vpack.c.bf16 %v874, %v874
    %887 = vrot.lane.b32.xlu0 %v885, 32
    %v888 = vpop.permute.xlu0 %887
    %890 = vst.msk [vmem:[%s390 + $0x4] sm:$0x1] %vm288, %v888
    %v891 = vld [vmem:[#allocation2 + $0x10] sm:$0x3]
    %v892 = vld [vmem:[#allocation3] sm:$0x3]
    %v893 = vpack.c.bf16 %v892, %v892
    %v895 = vsel %vm138, %v893, 0
    %897 = vmatpush.bf16.msra.mxu0 0
    %898 = vmatpush.bf16.msra.mxu0 0
    %899 = vmatpush.bf16.msra.mxu0 0
    %900 = vmatpush.bf16.msra.mxu0 0
    %901 = vmatpush.bf16.msra.mxu0 0
    %902 = vmatpush.bf16.msra.mxu0 0
    %903 = vmatpush.bf16.msra.mxu0 %v207
    %904 = vmatpush.bf16.msra.mxu0 %v206
    %905 = vmatmul.bf16.gmra.mxu0 %v895
    %v906 = vpop.f32.mrf.mxu0
    %v907 = vadd.f32 0.0, %v906
    %v908 = vpop.f32.mrf.mxu0
    %909 = vdwg.mxu0
    %v910 = vadd.f32 %v891, %v907
    %v911 = vadd.f32 %v910, %v228
    %v912 = vld [vmem:[#allocation4] sm:$0x3]
    %v913 = vxor.u32 %v911, 2147483648
    %v914 = vmul.f32 %v913, 1.442695
    %v915 = vpow.pop %v914
    %v916 = vadd.f32 %v915, 1.0
    %v917 = vrcp.pop %v916
    %v918 = vmul.f32 %v916, %v917
    %v919 = vsub.f32 1.0, %v918
    %v920 = vmul.f32 %v917, %v919
    %v921 = vadd.f32 %v917, %v920
    %vm922 = vweird.f32 %v916
    %vm923 = vweird.f32 %v917
    %vm924 = vmor %vm922, %vm923
    %v925 = vsel %vm924, %v917, %v921
    %v926 = vand.u32 2147483647, %v916
    %vm927 = vcmp.eq.f32.partialorder %v926, 8.507059e+37
    %v928 = vand.u32 %v916, 2147483648
    %v929 = vor.u32 1.1754944e-38, %v928
    %v930 = vsel %vm927, %v929, %v925
    %v931 = vmul.f32 1.0, %v930
    %v932 = vtanh.pop %v911
    %934 = vrot.lane.b32.xlu0 %v912, 32
    %v935 = vpop.permute.xlu0 %934
    %v937 = vmul.f32 %v931, %v935
    %939 = vrot.lane.b32.xlu0 %v932, 64
    %v940 = vpop.permute.xlu0 %939
    %v942 = vmul.f32 %v931, %v940
    %944 = vrot.lane.b32.xlu0 %v942, 32
    %v945 = vpop.permute.xlu0 %944
    %v947 = vadd.f32 %v937, %v945
    %v948 = vtanh.pop %v947
    %950 = vrot.lane.b32.xlu0 %v948, 64
    %v951 = vpop.permute.xlu0 %950
    %v953 = vmul.f32 %v931, %v951
    %955 = vrot.lane.b32.xlu0 %v953, 32
    %v956 = vpop.permute.xlu0 %955
    %958 = vst.msk [vmem:[#allocation3] sm:$0x3] %vm176, %v956
    %960 = vrot.lane.b32.xlu0 %v947, 96
    %v961 = vpop.permute.xlu0 %960
    %963 = vst.msk [vmem:[#allocation4] sm:$0x3] %vm176, %v961
    %v964 = vpack.c.bf16 %v953, %v953
    %966 = vrot.lane.b32.xlu0 %v964, 32
    %v967 = vpop.permute.xlu0 %966
    %969 = vst.msk [vmem:[#allocation14 + $0x4] sm:$0x1] %vm288, %v967
    %v970 = vld [vmem:[#allocation2 + $0x8] sm:$0xc0]
    %v971 = vld [vmem:[%s291] sm:$0x3]
    %v972 = vpack.c.bf16 %v971, %v971
    %v974 = vsel %vm138, %v972, 0
    %976 = vmatpush.bf16.msra.mxu0 0
    %977 = vmatpush.bf16.msra.mxu0 0
    %978 = vmatpush.bf16.msra.mxu0 0
    %979 = vmatpush.bf16.msra.mxu0 0
    %980 = vmatpush.bf16.msra.mxu0 0
    %981 = vmatpush.bf16.msra.mxu0 0
    %982 = vmatpush.bf16.msra.mxu0 %v303
    %983 = vmatpush.bf16.msra.mxu0 %v302
    %984 = vmatmul.bf16.gmra.mxu0 %v974
    %v985 = vpop.f32.mrf.mxu0
    %v986 = vadd.f32 0.0, %v985
    %v987 = vpop.f32.mrf.mxu0
    %988 = vdwg.mxu0
    %v990 = vrot.slane %v986, 2
    %v992 = vadd.f32 %v970, %v990
    %v993 = vadd.f32 %v992, %v327
    %v994 = vld [vmem:[%s330] sm:$0x3]
    %v995 = vxor.u32 %v993, 2147483648
    %v996 = vmul.f32 %v995, 1.442695
    %v997 = vpow.pop %v996
    %v998 = vadd.f32 %v997, 1.0
    %v999 = vrcp.pop %v998
    %v1000 = vmul.f32 %v998, %v999
    %v1001 = vsub.f32 1.0, %v1000
    %v1002 = vmul.f32 %v999, %v1001
    %v1003 = vadd.f32 %v999, %v1002
    %vm1004 = vweird.f32 %v998
    %vm1005 = vweird.f32 %v999
    %vm1006 = vmor %vm1004, %vm1005
    %v1007 = vsel %vm1006, %v999, %v1003
    %v1008 = vand.u32 2147483647, %v998
    %vm1009 = vcmp.eq.f32.partialorder %v1008, 8.507059e+37
    %v1010 = vand.u32 %v998, 2147483648
    %v1011 = vor.u32 1.1754944e-38, %v1010
    %v1012 = vsel %vm1009, %v1011, %v1007
    %v1013 = vmul.f32 1.0, %v1012
    %v1014 = vtanh.pop %v993
    %v1016 = vrot.slane %v994, 2
    %1017 = vrot.lane.b32.xlu0 %v1016, 32
    %v1018 = vpop.permute.xlu0 %1017
    %v1020 = vmul.f32 %v1013, %v1018
    %1022 = vrot.lane.b32.xlu0 %v1014, 64
    %v1023 = vpop.permute.xlu0 %1022
    %v1025 = vmul.f32 %v1013, %v1023
    %1027 = vrot.lane.b32.xlu0 %v1025, 32
    %v1028 = vpop.permute.xlu0 %1027
    %v1030 = vadd.f32 %v1020, %v1028
    %v1031 = vtanh.pop %v1030
    %1033 = vrot.lane.b32.xlu0 %v1031, 64
    %v1034 = vpop.permute.xlu0 %1033
    %v1036 = vmul.f32 %v1013, %v1034
    %1038 = vrot.lane.b32.xlu0 %v1036, 32
    %v1039 = vpop.permute.xlu0 %1038
    %1041 = vst.msk [vmem:[%s291 - $0x6] sm:$0xc0] %vm378, %v1039
    %1043 = vrot.lane.b32.xlu0 %v1030, 96
    %v1044 = vpop.permute.xlu0 %1043
    %1046 = vst.msk [vmem:[%s330 - $0x6] sm:$0xc0] %vm378, %v1044
    %v1047 = vpack.c.bf16 %v1036, %v1036
    %1049 = vrot.lane.b32.xlu0 %v1047, 32
    %v1050 = vpop.permute.xlu0 %1049
    %1052 = vst.msk [vmem:[%s390] sm:$0x8] %vm391, %v1050
    %v1053 = vld [vmem:[#allocation2 + $0x10] sm:$0xc]
    %v1054 = vld [vmem:[#allocation3] sm:$0x3]
    %v1055 = vpack.c.bf16 %v1054, %v1054
    %v1057 = vsel %vm138, %v1055, 0
    %1059 = vmatpush.bf16.msra.mxu0 0
    %1060 = vmatpush.bf16.msra.mxu0 0
    %1061 = vmatpush.bf16.msra.mxu0 0
    %1062 = vmatpush.bf16.msra.mxu0 0
    %1063 = vmatpush.bf16.msra.mxu0 0
    %1064 = vmatpush.bf16.msra.mxu0 0
    %1065 = vmatpush.bf16.msra.mxu0 %v207
    %1066 = vmatpush.bf16.msra.mxu0 %v206
    %1067 = vmatmul.bf16.gmra.mxu0 %v1057
    %v1068 = vpop.f32.mrf.mxu0
    %v1069 = vadd.f32 0.0, %v1068
    %v1070 = vpop.f32.mrf.mxu0
    %1071 = vdwg.mxu0
    %v1073 = vrot.slane %v1069, 6
    %v1075 = vadd.f32 %v1053, %v1073
    %v1076 = vadd.f32 %v1075, %v228
    %v1077 = vld [vmem:[#allocation4] sm:$0x3]
    %v1078 = vxor.u32 %v1076, 2147483648
    %v1079 = vmul.f32 %v1078, 1.442695
    %v1080 = vpow.pop %v1079
    %v1081 = vadd.f32 %v1080, 1.0
    %v1082 = vrcp.pop %v1081
    %v1083 = vmul.f32 %v1081, %v1082
    %v1084 = vsub.f32 1.0, %v1083
    %v1085 = vmul.f32 %v1082, %v1084
    %v1086 = vadd.f32 %v1082, %v1085
    %vm1087 = vweird.f32 %v1081
    %vm1088 = vweird.f32 %v1082
    %vm1089 = vmor %vm1087, %vm1088
    %v1090 = vsel %vm1089, %v1082, %v1086
    %v1091 = vand.u32 2147483647, %v1081
    %vm1092 = vcmp.eq.f32.partialorder %v1091, 8.507059e+37
    %v1093 = vand.u32 %v1081, 2147483648
    %v1094 = vor.u32 1.1754944e-38, %v1093
    %v1095 = vsel %vm1092, %v1094, %v1090
    %v1096 = vmul.f32 1.0, %v1095
    %v1097 = vtanh.pop %v1076
    %v1099 = vrot.slane %v1077, 6
    %1100 = vrot.lane.b32.xlu0 %v1099, 32
    %v1101 = vpop.permute.xlu0 %1100
    %v1103 = vmul.f32 %v1096, %v1101
    %1105 = vrot.lane.b32.xlu0 %v1097, 64
    %v1106 = vpop.permute.xlu0 %1105
    %v1108 = vmul.f32 %v1096, %v1106
    %1110 = vrot.lane.b32.xlu0 %v1108, 32
    %v1111 = vpop.permute.xlu0 %1110
    %v1113 = vadd.f32 %v1103, %v1111
    %v1114 = vtanh.pop %v1113
    %1116 = vrot.lane.b32.xlu0 %v1114, 64
    %v1117 = vpop.permute.xlu0 %1116
    %v1119 = vmul.f32 %v1096, %v1117
    %1121 = vrot.lane.b32.xlu0 %v1119, 32
    %v1122 = vpop.permute.xlu0 %1121
    %1124 = vst.msk [vmem:[#allocation3 - $0x2] sm:$0xc] %vm464, %v1122
    %1126 = vrot.lane.b32.xlu0 %v1113, 96
    %v1127 = vpop.permute.xlu0 %1126
    %1129 = vst.msk [vmem:[#allocation4 - $0x2] sm:$0xc] %vm464, %v1127
    %v1130 = vpack.c.bf16 %v1119, %v1119
    %1132 = vrot.lane.b32.xlu0 %v1130, 32
    %v1133 = vpop.permute.xlu0 %1132
    %1135 = vst.msk [vmem:[#allocation14 + $0x4] sm:$0x2] %vm476, %v1133
    %v1136 = vld [vmem:[#allocation2 + $0x8] sm:$0x30]
    %v1137 = vld [vmem:[%s291] sm:$0x3]
    %v1138 = vpack.c.bf16 %v1137, %v1137
    %v1140 = vsel %vm138, %v1138, 0
    %1142 = vmatpush.bf16.msra.mxu0 0
    %1143 = vmatpush.bf16.msra.mxu0 0
    %1144 = vmatpush.bf16.msra.mxu0 0
    %1145 = vmatpush.bf16.msra.mxu0 0
    %1146 = vmatpush.bf16.msra.mxu0 0
    %1147 = vmatpush.bf16.msra.mxu0 0
    %1148 = vmatpush.bf16.msra.mxu0 %v303
    %1149 = vmatpush.bf16.msra.mxu0 %v302
    %1150 = vmatmul.bf16.gmra.mxu0 %v1140
    %v1151 = vpop.f32.mrf.mxu0
    %v1152 = vadd.f32 0.0, %v1151
    %v1153 = vpop.f32.mrf.mxu0
    %1154 = vdwg.mxu0
    %v1156 = vrot.slane %v1152, 4
    %v1158 = vadd.f32 %v1136, %v1156
    %v1159 = vadd.f32 %v1158, %v327
    %v1160 = vld [vmem:[%s330] sm:$0x3]
    %v1161 = vxor.u32 %v1159, 2147483648
    %v1162 = vmul.f32 %v1161, 1.442695
    %v1163 = vpow.pop %v1162
    %v1164 = vadd.f32 %v1163, 1.0
    %v1165 = vrcp.pop %v1164
    %v1166 = vmul.f32 %v1164, %v1165
    %v1167 = vsub.f32 1.0, %v1166
    %v1168 = vmul.f32 %v1165, %v1167
    %v1169 = vadd.f32 %v1165, %v1168
    %vm1170 = vweird.f32 %v1164
    %vm1171 = vweird.f32 %v1165
    %vm1172 = vmor %vm1170, %vm1171
    %v1173 = vsel %vm1172, %v1165, %v1169
    %v1174 = vand.u32 2147483647, %v1164
    %vm1175 = vcmp.eq.f32.partialorder %v1174, 8.507059e+37
    %v1176 = vand.u32 %v1164, 2147483648
    %v1177 = vor.u32 1.1754944e-38, %v1176
    %v1178 = vsel %vm1175, %v1177, %v1173
    %v1179 = vmul.f32 1.0, %v1178
    %v1180 = vtanh.pop %v1159
    %v1182 = vrot.slane %v1160, 4
    %1183 = vrot.lane.b32.xlu0 %v1182, 32
    %v1184 = vpop.permute.xlu0 %1183
    %v1186 = vmul.f32 %v1179, %v1184
    %1188 = vrot.lane.b32.xlu0 %v1180, 64
    %v1189 = vpop.permute.xlu0 %1188
    %v1191 = vmul.f32 %v1179, %v1189
    %1193 = vrot.lane.b32.xlu0 %v1191, 32
    %v1194 = vpop.permute.xlu0 %1193
    %v1196 = vadd.f32 %v1186, %v1194
    %v1197 = vtanh.pop %v1196
    %1199 = vrot.lane.b32.xlu0 %v1197, 64
    %v1200 = vpop.permute.xlu0 %1199
    %v1202 = vmul.f32 %v1179, %v1200
    %1204 = vrot.lane.b32.xlu0 %v1202, 32
    %v1205 = vpop.permute.xlu0 %1204
    %1207 = vst.msk [vmem:[%s291 - $0x4] sm:$0x30] %vm549, %v1205
    %1209 = vrot.lane.b32.xlu0 %v1196, 96
    %v1210 = vpop.permute.xlu0 %1209
    %1212 = vst.msk [vmem:[%s330 - $0x4] sm:$0x30] %vm549, %v1210
    %v1213 = vpack.c.bf16 %v1202, %v1202
    %1215 = vrot.lane.b32.xlu0 %v1213, 32
    %v1216 = vpop.permute.xlu0 %1215
    %1218 = vst.msk [vmem:[%s390] sm:$0x4] %vm561, %v1216
    %v1219 = vld [vmem:[#allocation2 + $0x10] sm:$0x30]
    %v1220 = vld [vmem:[#allocation3] sm:$0x3]
    %v1221 = vpack.c.bf16 %v1220, %v1220
    %v1223 = vsel %vm138, %v1221, 0
    %1225 = vmatpush.bf16.msra.mxu0 0
    %1226 = vmatpush.bf16.msra.mxu0 0
    %1227 = vmatpush.bf16.msra.mxu0 0
    %1228 = vmatpush.bf16.msra.mxu0 0
    %1229 = vmatpush.bf16.msra.mxu0 0
    %1230 = vmatpush.bf16.msra.mxu0 0
    %1231 = vmatpush.bf16.msra.mxu0 %v207
    %1232 = vmatpush.bf16.msra.mxu0 %v206
    %1233 = vmatmul.bf16.gmra.mxu0 %v1223
    %v1234 = vpop.f32.mrf.mxu0
    %v1235 = vadd.f32 0.0, %v1234
    %v1236 = vpop.f32.mrf.mxu0
    %1237 = vdwg.mxu0
    %v1239 = vrot.slane %v1235, 4
    %v1241 = vadd.f32 %v1219, %v1239
    %v1242 = vadd.f32 %v1241, %v228
    %v1243 = vld [vmem:[#allocation4] sm:$0x3]
    %v1244 = vxor.u32 %v1242, 2147483648
    %v1245 = vmul.f32 %v1244, 1.442695
    %v1246 = vpow.pop %v1245
    %v1247 = vadd.f32 %v1246, 1.0
    %v1248 = vrcp.pop %v1247
    %v1249 = vmul.f32 %v1247, %v1248
    %v1250 = vsub.f32 1.0, %v1249
    %v1251 = vmul.f32 %v1248, %v1250
    %v1252 = vadd.f32 %v1248, %v1251
    %vm1253 = vweird.f32 %v1247
    %vm1254 = vweird.f32 %v1248
    %vm1255 = vmor %vm1253, %vm1254
    %v1256 = vsel %vm1255, %v1248, %v1252
    %v1257 = vand.u32 2147483647, %v1247
    %vm1258 = vcmp.eq.f32.partialorder %v1257, 8.507059e+37
    %v1259 = vand.u32 %v1247, 2147483648
    %v1260 = vor.u32 1.1754944e-38, %v1259
    %v1261 = vsel %vm1258, %v1260, %v1256
    %v1262 = vmul.f32 1.0, %v1261
    %v1263 = vtanh.pop %v1242
    %v1265 = vrot.slane %v1243, 4
    %1266 = vrot.lane.b32.xlu0 %v1265, 32
    %v1267 = vpop.permute.xlu0 %1266
    %v1269 = vmul.f32 %v1262, %v1267
    %1271 = vrot.lane.b32.xlu0 %v1263, 64
    %v1272 = vpop.permute.xlu0 %1271
    %v1274 = vmul.f32 %v1262, %v1272
    %1276 = vrot.lane.b32.xlu0 %v1274, 32
    %v1277 = vpop.permute.xlu0 %1276
    %v1279 = vadd.f32 %v1269, %v1277
    %v1280 = vtanh.pop %v1279
    %1282 = vrot.lane.b32.xlu0 %v1280, 64
    %v1283 = vpop.permute.xlu0 %1282
    %v1285 = vmul.f32 %v1262, %v1283
    %1287 = vrot.lane.b32.xlu0 %v1285, 32
    %v1288 = vpop.permute.xlu0 %1287
    %1290 = vst.msk [vmem:[#allocation3 - $0x4] sm:$0x30] %vm549, %v1288
    %1292 = vrot.lane.b32.xlu0 %v1279, 96
    %v1293 = vpop.permute.xlu0 %1292
    %1295 = vst.msk [vmem:[#allocation4 - $0x4] sm:$0x30] %vm549, %v1293
    %v1296 = vpack.c.bf16 %v1285, %v1285
    %1298 = vrot.lane.b32.xlu0 %v1296, 32
    %v1299 = vpop.permute.xlu0 %1298
    %1301 = vst.msk [vmem:[#allocation14 + $0x4] sm:$0x4] %vm561, %v1299
    %v1302 = vld [vmem:[#allocation2 + $0x8] sm:$0xc]
    %v1303 = vld [vmem:[%s291] sm:$0x3]
    %v1304 = vpack.c.bf16 %v1303, %v1303
    %v1306 = vsel %vm138, %v1304, 0
    %1308 = vmatpush.bf16.msra.mxu0 0
    %1309 = vmatpush.bf16.msra.mxu0 0
    %1310 = vmatpush.bf16.msra.mxu0 0
    %1311 = vmatpush.bf16.msra.mxu0 0
    %1312 = vmatpush.bf16.msra.mxu0 0
    %1313 = vmatpush.bf16.msra.mxu0 0
    %1314 = vmatpush.bf16.msra.mxu0 %v303
    %1315 = vmatpush.bf16.msra.mxu0 %v302
    %1316 = vmatmul.bf16.gmra.mxu0 %v1306
    %v1317 = vpop.f32.mrf.mxu0
    %v1318 = vadd.f32 0.0, %v1317
    %v1319 = vpop.f32.mrf.mxu0
    %1320 = vdwg.mxu0
    %v1322 = vrot.slane %v1318, 6
    %v1324 = vadd.f32 %v1302, %v1322
    %v1325 = vadd.f32 %v1324, %v327
    %v1326 = vld [vmem:[%s330] sm:$0x3]
    %v1327 = vxor.u32 %v1325, 2147483648
    %v1328 = vmul.f32 %v1327, 1.442695
    %v1329 = vpow.pop %v1328
    %v1330 = vadd.f32 %v1329, 1.0
    %v1331 = vrcp.pop %v1330
    %v1332 = vmul.f32 %v1330, %v1331
    %v1333 = vsub.f32 1.0, %v1332
    %v1334 = vmul.f32 %v1331, %v1333
    %v1335 = vadd.f32 %v1331, %v1334
    %vm1336 = vweird.f32 %v1330
    %vm1337 = vweird.f32 %v1331
    %vm1338 = vmor %vm1336, %vm1337
    %v1339 = vsel %vm1338, %v1331, %v1335
    %v1340 = vand.u32 2147483647, %v1330
    %vm1341 = vcmp.eq.f32.partialorder %v1340, 8.507059e+37
    %v1342 = vand.u32 %v1330, 2147483648
    %v1343 = vor.u32 1.1754944e-38, %v1342
    %v1344 = vsel %vm1341, %v1343, %v1339
    %v1345 = vmul.f32 1.0, %v1344
    %v1346 = vtanh.pop %v1325
    %v1348 = vrot.slane %v1326, 6
    %1349 = vrot.lane.b32.xlu0 %v1348, 32
    %v1350 = vpop.permute.xlu0 %1349
    %v1352 = vmul.f32 %v1345, %v1350
    %1354 = vrot.lane.b32.xlu0 %v1346, 64
    %v1355 = vpop.permute.xlu0 %1354
    %v1357 = vmul.f32 %v1345, %v1355
    %1359 = vrot.lane.b32.xlu0 %v1357, 32
    %v1360 = vpop.permute.xlu0 %1359
    %v1362 = vadd.f32 %v1352, %v1360
    %v1363 = vtanh.pop %v1362
    %1365 = vrot.lane.b32.xlu0 %v1363, 64
    %v1366 = vpop.permute.xlu0 %1365
    %v1368 = vmul.f32 %v1345, %v1366
    %1370 = vrot.lane.b32.xlu0 %v1368, 32
    %v1371 = vpop.permute.xlu0 %1370
    %1373 = vst.msk [vmem:[%s291 - $0x2] sm:$0xc] %vm464, %v1371
    %1375 = vrot.lane.b32.xlu0 %v1362, 96
    %v1376 = vpop.permute.xlu0 %1375
    %1378 = vst.msk [vmem:[%s330 - $0x2] sm:$0xc] %vm464, %v1376
    %v1379 = vpack.c.bf16 %v1368, %v1368
    %1381 = vrot.lane.b32.xlu0 %v1379, 32
    %v1382 = vpop.permute.xlu0 %1381
    %1384 = vst.msk [vmem:[%s390] sm:$0x2] %vm476, %v1382
    %v1385 = vld [vmem:[#allocation2 + $0x10] sm:$0xc0]
    %v1386 = vld [vmem:[#allocation3] sm:$0x3]
    %v1387 = vpack.c.bf16 %v1386, %v1386
    %v1389 = vsel %vm138, %v1387, 0
    %1391 = vmatpush.bf16.msra.mxu0 0
    %1392 = vmatpush.bf16.msra.mxu0 0
    %1393 = vmatpush.bf16.msra.mxu0 0
    %1394 = vmatpush.bf16.msra.mxu0 0
    %1395 = vmatpush.bf16.msra.mxu0 0
    %1396 = vmatpush.bf16.msra.mxu0 0
    %1397 = vmatpush.bf16.msra.mxu0 %v207
    %1398 = vmatpush.bf16.msra.mxu0 %v206
    %1399 = vmatmul.bf16.gmra.mxu0 %v1389
    %v1400 = vpop.f32.mrf.mxu0
    %v1401 = vadd.f32 0.0, %v1400
    %v1402 = vpop.f32.mrf.mxu0
    %1403 = vdwg.mxu0
    %v1405 = vrot.slane %v1401, 2
    %v1407 = vadd.f32 %v1385, %v1405
    %v1408 = vadd.f32 %v1407, %v228
    %v1409 = vld [vmem:[#allocation4] sm:$0x3]
    %v1410 = vxor.u32 %v1408, 2147483648
    %v1411 = vmul.f32 %v1410, 1.442695
    %v1412 = vpow.pop %v1411
    %v1413 = vadd.f32 %v1412, 1.0
    %v1414 = vrcp.pop %v1413
    %v1415 = vmul.f32 %v1413, %v1414
    %v1416 = vsub.f32 1.0, %v1415
    %v1417 = vmul.f32 %v1414, %v1416
    %v1418 = vadd.f32 %v1414, %v1417
    %vm1419 = vweird.f32 %v1413
    %vm1420 = vweird.f32 %v1414
    %vm1421 = vmor %vm1419, %vm1420
    %v1422 = vsel %vm1421, %v1414, %v1418
    %v1423 = vand.u32 2147483647, %v1413
    %vm1424 = vcmp.eq.f32.partialorder %v1423, 8.507059e+37
    %v1425 = vand.u32 %v1413, 2147483648
    %v1426 = vor.u32 1.1754944e-38, %v1425
    %v1427 = vsel %vm1424, %v1426, %v1422
    %v1428 = vmul.f32 1.0, %v1427
    %v1429 = vtanh.pop %v1408
    %v1431 = vrot.slane %v1409, 2
    %1432 = vrot.lane.b32.xlu0 %v1431, 32
    %v1433 = vpop.permute.xlu0 %1432
    %v1435 = vmul.f32 %v1428, %v1433
    %1437 = vrot.lane.b32.xlu0 %v1429, 64
    %v1438 = vpop.permute.xlu0 %1437
    %v1440 = vmul.f32 %v1428, %v1438
    %1442 = vrot.lane.b32.xlu0 %v1440, 32
    %v1443 = vpop.permute.xlu0 %1442
    %v1445 = vadd.f32 %v1435, %v1443
    %v1446 = vtanh.pop %v1445
    %1448 = vrot.lane.b32.xlu0 %v1446, 64
    %v1449 = vpop.permute.xlu0 %1448
    %v1451 = vmul.f32 %v1428, %v1449
    %1453 = vrot.lane.b32.xlu0 %v1451, 32
    %v1454 = vpop.permute.xlu0 %1453
    %1456 = vst.msk [vmem:[#allocation3 - $0x6] sm:$0xc0] %vm378, %v1454
    %1458 = vrot.lane.b32.xlu0 %v1445, 96
    %v1459 = vpop.permute.xlu0 %1458
    %1461 = vst.msk [vmem:[#allocation4 - $0x6] sm:$0xc0] %vm378, %v1459
    %v1462 = vpack.c.bf16 %v1451, %v1451
    %1464 = vrot.lane.b32.xlu0 %v1462, 32
    %v1465 = vpop.permute.xlu0 %1464
    %1467 = vst.msk [vmem:[#allocation14 + $0x4] sm:$0x8] %vm391, %v1465
    %v1468 = vld [vmem:[#allocation2 + $0x8] sm:$0x3]
    %v1469 = vld [vmem:[%s291] sm:$0x3]
    %v1470 = vpack.c.bf16 %v1469, %v1469
    %v1472 = vsel %vm138, %v1470, 0
    %1474 = vmatpush.bf16.msra.mxu0 0
    %1475 = vmatpush.bf16.msra.mxu0 0
    %1476 = vmatpush.bf16.msra.mxu0 0
    %1477 = vmatpush.bf16.msra.mxu0 0
    %1478 = vmatpush.bf16.msra.mxu0 0
    %1479 = vmatpush.bf16.msra.mxu0 0
    %1480 = vmatpush.bf16.msra.mxu0 %v303
    %1481 = vmatpush.bf16.msra.mxu0 %v302
    %1482 = vmatmul.bf16.gmra.mxu0 %v1472
    %v1483 = vpop.f32.mrf.mxu0
    %v1484 = vadd.f32 0.0, %v1483
    %v1485 = vpop.f32.mrf.mxu0
    %1486 = vdwg.mxu0
    %v1487 = vadd.f32 %v1468, %v1484
    %v1488 = vadd.f32 %v1487, %v327
    %v1489 = vld [vmem:[%s330] sm:$0x3]
    %v1490 = vxor.u32 %v1488, 2147483648
    %v1491 = vmul.f32 %v1490, 1.442695
    %v1492 = vpow.pop %v1491
    %v1493 = vadd.f32 %v1492, 1.0
    %v1494 = vrcp.pop %v1493
    %v1495 = vmul.f32 %v1493, %v1494
    %v1496 = vsub.f32 1.0, %v1495
    %v1497 = vmul.f32 %v1494, %v1496
    %v1498 = vadd.f32 %v1494, %v1497
    %vm1499 = vweird.f32 %v1493
    %vm1500 = vweird.f32 %v1494
    %vm1501 = vmor %vm1499, %vm1500
    %v1502 = vsel %vm1501, %v1494, %v1498
    %v1503 = vand.u32 2147483647, %v1493
    %vm1504 = vcmp.eq.f32.partialorder %v1503, 8.507059e+37
    %v1505 = vand.u32 %v1493, 2147483648
    %v1506 = vor.u32 1.1754944e-38, %v1505
    %v1507 = vsel %vm1504, %v1506, %v1502
    %v1508 = vmul.f32 1.0, %v1507
    %v1509 = vtanh.pop %v1488
    %1511 = vrot.lane.b32.xlu0 %v1489, 32
    %v1512 = vpop.permute.xlu0 %1511
    %v1514 = vmul.f32 %v1508, %v1512
    %1516 = vrot.lane.b32.xlu0 %v1509, 64
    %v1517 = vpop.permute.xlu0 %1516
    %v1519 = vmul.f32 %v1508, %v1517
    %1521 = vrot.lane.b32.xlu0 %v1519, 32
    %v1522 = vpop.permute.xlu0 %1521
    %v1524 = vadd.f32 %v1514, %v1522
    %v1525 = vtanh.pop %v1524
    %1527 = vrot.lane.b32.xlu0 %v1525, 64
    %v1528 = vpop.permute.xlu0 %1527
    %v1530 = vmul.f32 %v1508, %v1528
    %1532 = vrot.lane.b32.xlu0 %v1530, 32
    %v1533 = vpop.permute.xlu0 %1532
    %1535 = vst.msk [vmem:[%s291] sm:$0x3] %vm176, %v1533
    %1537 = vrot.lane.b32.xlu0 %v1524, 96
    %v1538 = vpop.permute.xlu0 %1537
    %1540 = vst.msk [vmem:[%s330] sm:$0x3] %vm176, %v1538
    %v1541 = vpack.c.bf16 %v1530, %v1530
    %1543 = vrot.lane.b32.xlu0 %v1541, 32
    %v1544 = vpop.permute.xlu0 %1543
    %1546 = vst.msk [vmem:[%s390] sm:$0x1] %vm288, %v1544
    %v1547 = vld [vmem:[#allocation3] sm:$0x3]
    %v1548 = vld [vmem:[#allocation3 + $0x2] sm:$0x3]
    %1549 = vst.msk [vmem:[#allocation15] sm:$0x3] %vm176, %v1547
    %1550 = vst.msk [vmem:[#allocation15 + $0x2] sm:$0x3] %vm176, %v1548
    %v1551 = vld [vmem:[#allocation4] sm:$0x3]
    %v1552 = vld [vmem:[#allocation4 + $0x2] sm:$0x3]
    %1553 = vst.msk [vmem:[#allocation17] sm:$0x3] %vm176, %v1551
    %1554 = vst.msk [vmem:[#allocation17 + $0x2] sm:$0x3] %vm176, %v1552
    // Predicated region
    $region46: #{tpu_custom_call.1} parent=1 // pred_check
      _
    $region47: #{tpu_custom_call.1} parent=1 // pred_check_branch
      %1556 = sbr.rel (0) target = $region49
    $region48: #{tpu_custom_call.1} parent=1 // pred_region
      %1558 = vsyncadd [#allocation7], 0
      %s1559 = sshll.u32 [#allocation14], 4
      %s1560 = int_to_ptr.vmem [resolvable:$true] %s1559
      %s1561 = sshll.u32 %s6, 4
      %s1562 = int_to_ptr.hbm [resolvable:$true] %s1561
      %1567 = dma.vmem_to_hbm [thread:$0]  %s1560, 256, %s1562, [#allocation7], 64, 64, 4
    $region49: #{tpu_custom_call.1} parent=1 // pred_fallthru
      _
    // Predicated region
    $region50: #{tpu_custom_call.1} parent=1 // pred_check
      _
    $region51: #{tpu_custom_call.1} parent=1 // pred_check_branch
      %1569 = sbr.rel (0) target = $region53
    $region52: #{tpu_custom_call.1} parent=1 // pred_region
      %1571 = vsyncadd [#allocation16], 0
      %s1572 = sshll.u32 [#allocation15], 4
      %s1573 = int_to_ptr.vmem [resolvable:$true] %s1572
      %s1574 = sshll.u32 %s7, 4
      %s1575 = int_to_ptr.hbm [resolvable:$true] %s1574
      %1580 = dma.vmem_to_hbm [thread:$0]  %s1573, 64, %s1575, [#allocation16], 32, 32, 2
    $region53: #{tpu_custom_call.1} parent=1 // pred_fallthru
      _
    // Predicated region
    $region54: #{tpu_custom_call.1} parent=1 // pred_check
      _
    $region55: #{tpu_custom_call.1} parent=1 // pred_check_branch
      %1582 = sbr.rel (0) target = $region57
    $region56: #{tpu_custom_call.1} parent=1 // pred_region
      %1584 = vsyncadd [#allocation16], 0
      %s1585 = sshll.u32 [#allocation17], 4
      %s1586 = int_to_ptr.vmem [resolvable:$true] %s1585
      %s1587 = sshll.u32 %s8, 4
      %s1588 = int_to_ptr.hbm [resolvable:$true] %s1587
      %1593 = dma.vmem_to_hbm [thread:$0]  %s1586, 64, %s1588, [#allocation16], 32, 32, 2
    $region57: #{tpu_custom_call.1} parent=1 // pred_fallthru
      _
    // Predicated region
    $region58: #{tpu_custom_call.1} parent=1 // pred_check
      _
    $region59: #{tpu_custom_call.1} parent=1 // pred_check_branch
      %1595 = sbr.rel (0) target = $region61
    $region60: #{tpu_custom_call.1} parent=1 // pred_region
      %1597 = dma.done [#allocation7], 256
    $region61: #{tpu_custom_call.1} parent=1 // pred_fallthru
      _
    // Predicated region
    $region62: #{tpu_custom_call.1} parent=1 // pred_check
      _
    $region63: #{tpu_custom_call.1} parent=1 // pred_check_branch
      %1599 = sbr.rel (0) target = $region65
    $region64: #{tpu_custom_call.1} parent=1 // pred_region
      %1601 = dma.done [#allocation16], 64
    $region65: #{tpu_custom_call.1} parent=1 // pred_fallthru
      _
    // Predicated region
    $region66: #{tpu_custom_call.1} parent=1 // pred_check
      _
    $region67: #{tpu_custom_call.1} parent=1 // pred_check_branch
      %1603 = sbr.rel (0) target = $region69
    $region68: #{tpu_custom_call.1} parent=1 // pred_region
      %1605 = dma.done [#allocation16], 64
    $region69: #{tpu_custom_call.1} parent=1 // pred_fallthru
      _
    %1606 = vsyncpa [#allocation6], 1
    %1607 = vsyncpa [#allocation9], 1
    %1608 = vsyncpa [#allocation12], 1
    %1609 = vsyncpa [#allocation7], 1
    %1610 = vsyncpa [#allocation16], 1

</llo_original>
